<compile_context>
chip_gen: v7x
topology: tpu7x:2x2x1
jax: 0.10.0
libtpu: 0.0.40
codegen_flags: <defaults>
</compile_context>

<pallas_src>
import functools

import jax
import jax.numpy as jnp
from jax.experimental import pallas as pl
from jax.experimental.pallas import tpu as pltpu


SWIN_IN = 256   # SwinEncoder2(256, 192, 2, 3) is hard-coded in the module
SWIN_DIM = 192

_VMEM_LIMIT = 48 * 1024 * 1024  # safe on v5e/v6e (128 MiB) and v7x (64 MiB)


def _pick_tile(total, preferred=(1024, 512, 256, 128, 64, 32, 16, 8)):
    """Largest preferred tile that divides `total`, else the full extent."""
    for t in preferred:
        if total % t == 0:
            return t
    return total


# --------------------------------------------------------------------------
# Kernel 1: channel attention (tiled avg+max pooling over tokens -> shared
# MLP) fused with the conv3 1x1 branch + ReLU.  Output: (N, 1, Cout).
# --------------------------------------------------------------------------
def _chan_att_conv3_kernel(x_ref, w1_ref, b1_ref, w2_ref, b2_ref,
                           w3_ref, b3_ref, o_ref, sum_acc, max_acc,
                           *, hw_total):
    i = pl.program_id(0)

    @pl.when(i == 0)
    def _():
        sum_acc[...] = jnp.zeros_like(sum_acc)
        max_acc[...] = jnp.full_like(max_acc, -jnp.inf)

    x = x_ref[...].astype(jnp.float32)               # (N, t_red, C)
    sum_acc[...] = sum_acc[...] + jnp.sum(x, axis=1)
    max_acc[...] = jnp.maximum(max_acc[...], jnp.max(x, axis=1))

    @pl.when(i == pl.num_programs(0) - 1)
    def _():
        avg = sum_acc[...] * (1.0 / hw_total)        # (N, C)
        mx = max_acc[...]

        def mlp(v):
            h = jnp.dot(v, w1_ref[...], preferred_element_type=jnp.float32)
            h = jnp.maximum(h + b1_ref[...], 0.0)
            return jnp.dot(h, w2_ref[...],
                           preferred_element_type=jnp.float32) + b2_ref[...]

        att = mlp(avg) + mlp(mx)                     # (N, C)
        o3 = jnp.dot(att, w3_ref[...], preferred_element_type=jnp.float32)
        o3 = jnp.maximum(o3 + b3_ref[...], 0.0)      # (N, Cout), ReLU'd branch
        o_ref[...] = o3[:, None, :].astype(o_ref.dtype)


def channel_att_conv3(x_tok, params, cout):
    """x_tok: (N, HW, C) float32 -> (N, 1, Cout) float32 (branch-3 output)."""
    N, HW, C = x_tok.shape
    hidden = params["mlp_w1"].shape[1]
    t_red = _pick_tile(HW)
    return pl.pallas_call(
        functools.partial(_chan_att_conv3_kernel, hw_total=float(HW)),
        out_shape=jax.ShapeDtypeStruct((N, 1, cout), jnp.float32),
        grid=(HW // t_red,),
        in_specs=[
            pl.BlockSpec((N, t_red, C), lambda i: (0, i, 0)),
            pl.BlockSpec((C, hidden), lambda i: (0, 0)),
            pl.BlockSpec((1, hidden), lambda i: (0, 0)),
            pl.BlockSpec((hidden, C), lambda i: (0, 0)),
            pl.BlockSpec((1, C), lambda i: (0, 0)),
            pl.BlockSpec((C, cout), lambda i: (0, 0)),
            pl.BlockSpec((1, cout), lambda i: (0, 0)),
        ],
        out_specs=pl.BlockSpec((N, 1, cout), lambda i: (0, 0, 0)),
        scratch_shapes=[pltpu.VMEM((N, C), jnp.float32),
                        pltpu.VMEM((N, C), jnp.float32)],
        compiler_params=pltpu.CompilerParams(
            dimension_semantics=("arbitrary",),       # reduction over tokens
            vmem_limit_bytes=_VMEM_LIMIT),
    )(x_tok,
      params["mlp_w1"].astype(jnp.float32),
      params["mlp_b1"].reshape(1, -1).astype(jnp.float32),
      params["mlp_w2"].astype(jnp.float32),
      params["mlp_b2"].reshape(1, -1).astype(jnp.float32),
      params["conv3_w"].astype(jnp.float32),
      params["conv3_b"].reshape(1, -1).astype(jnp.float32))


# --------------------------------------------------------------------------
# Kernel 2: the fused hot path.  Per token tile:
#   branch0 = x @ W0                       (1x1 conv)
#   branch1 = xcol(d=2) @ W1  (K = 9*Cin)  (3x3 dilated conv as one matmul)
#   branch2 = xcol(d=5) @ W2  (K = 9*Cin)
#   branch3 = broadcast of the precomputed attention-conv3 vector
#   y = relu(concat(branches) + bias)      -> lane-dense (tile, 256)
#   t = y @ Wp_in + bp_in                  (SwinEncoder2 input_proj)
#   [Swin BasicLayer: TODO pass-through]
#   t = LayerNorm(t) ; out = t @ Wp_out + bp_out  (output_proj)
# One 256-wide store per tile; all weights resident in VMEM.
# --------------------------------------------------------------------------
def _fused_main_kernel(x_ref, xc2_ref, xc5_ref, o3_ref,
                       w0_ref, w1_ref, w2_ref, b012_ref,
                       wp1_ref, bp1_ref, g_ref, bln_ref, wp2_ref, bp2_ref,
                       o_ref):
    x = x_ref[0]                                          # (thw, Cin) bf16
    y0 = jnp.dot(x, w0_ref[...], preferred_element_type=jnp.float32)
    y1 = jnp.dot(xc2_ref[0], w1_ref[...], preferred_element_type=jnp.float32)
    y2 = jnp.dot(xc5_ref[0], w2_ref[...], preferred_element_type=jnp.float32)
    y012 = jnp.concatenate([y0, y1, y2], axis=-1) + b012_ref[...]
    o3 = jnp.broadcast_to(o3_ref[0], (x.shape[0], o3_ref.shape[-1]))
    y = jnp.maximum(jnp.concatenate([y012, o3], axis=-1), 0.0)  # (thw, 256)

    # SwinEncoder2: input_proj -> encoder -> LayerNorm -> output_proj
    t = jnp.dot(y.astype(jnp.bfloat16), wp1_ref[...],
                preferred_element_type=jnp.float32) + bp1_ref[...]
    # TODO(synk): Swin BasicLayer (window attention, depth=2, heads=3) is
    # referenced by the module but its definition was not provided; tokens are
    # passed through unchanged here.
    mu = jnp.mean(t, axis=-1, keepdims=True)
    tc = t - mu
    var = jnp.mean(tc * tc, axis=-1, keepdims=True)
    tn = tc * jax.lax.rsqrt(var + 1e-5) * g_ref[...] + bln_ref[...]
    out = jnp.dot(tn.astype(jnp.bfloat16), wp2_ref[...],
                  preferred_element_type=jnp.float32) + bp2_ref[...]
    o_ref[0] = out.astype(o_ref.dtype)


def fused_branches_swin(x_tok, xc2, xc5, o3, params, cout):
    """x_tok (N,HW,Cin) bf16, xc2/xc5 (N,HW,9*Cin) bf16, o3 (N,1,Cout) f32."""
    N, HW, Cin = x_tok.shape
    K9 = 9 * Cin
    thw = _pick_tile(HW)
    out_c = 4 * cout
    dim = params["proj_in_w"].shape[1]
    cswin = params["proj_out_w"].shape[1]

    w0 = params["conv0_w"].astype(jnp.bfloat16)
    w1 = params["conv1_w"].reshape(K9, cout).astype(jnp.bfloat16)
    w2 = params["conv2_w"].reshape(K9, cout).astype(jnp.bfloat16)
    b012 = jnp.concatenate([params["conv0_b"], params["conv1_b"],
                            params["conv2_b"]]).reshape(1, 3 * cout)
    b012 = b012.astype(jnp.float32)
    wp1 = params["proj_in_w"].astype(jnp.bfloat16)
    bp1 = params["proj_in_b"].reshape(1, dim).astype(jnp.float32)
    g = params["ln_g"].reshape(1, dim).astype(jnp.float32)
    bln = params["ln_b"].reshape(1, dim).astype(jnp.float32)
    wp2 = params["proj_out_w"].astype(jnp.bfloat16)
    bp2 = params["proj_out_b"].reshape(1, cswin).astype(jnp.float32)

    return pl.pallas_call(
        _fused_main_kernel,
        out_shape=jax.ShapeDtypeStruct((N, HW, cswin), jnp.float32),
        grid=(N, HW // thw),
        in_specs=[
            pl.BlockSpec((1, thw, Cin), lambda n, t: (n, t, 0)),
            pl.BlockSpec((1, thw, K9), lambda n, t: (n, t, 0)),
            pl.BlockSpec((1, thw, K9), lambda n, t: (n, t, 0)),
            pl.BlockSpec((1, 1, cout), lambda n, t: (n, 0, 0)),
            pl.BlockSpec((Cin, cout), lambda n, t: (0, 0)),
            pl.BlockSpec((K9, cout), lambda n, t: (0, 0)),
            pl.BlockSpec((K9, cout), lambda n, t: (0, 0)),
            pl.BlockSpec((1, 3 * cout), lambda n, t: (0, 0)),
            pl.BlockSpec((out_c, dim), lambda n, t: (0, 0)),
            pl.BlockSpec((1, dim), lambda n, t: (0, 0)),
            pl.BlockSpec((1, dim), lambda n, t: (0, 0)),
            pl.BlockSpec((1, dim), lambda n, t: (0, 0)),
            pl.BlockSpec((dim, cswin), lambda n, t: (0, 0)),
            pl.BlockSpec((1, cswin), lambda n, t: (0, 0)),
        ],
        out_specs=pl.BlockSpec((1, thw, cswin), lambda n, t: (n, t, 0)),
        compiler_params=pltpu.CompilerParams(
            dimension_semantics=("parallel", "parallel"),  # megacore on v7x
            vmem_limit_bytes=_VMEM_LIMIT),
    )(x_tok, xc2, xc5, o3, w0, w1, w2, b012, wp1, bp1, g, bln, wp2, bp2)


# --------------------------------------------------------------------------
# JAX glue: im2col for a dilated 3x3 conv as a single (tokens, 9*Cin) slab.
# --------------------------------------------------------------------------
def _im2col_tokens(x_nhwc, dilation):
    N, H, W, C = x_nhwc.shape
    d = dilation
    xp = jnp.pad(x_nhwc, ((0, 0), (d, d), (d, d), (0, 0)))
    taps = [xp[:, ky * d:ky * d + H, kx * d:kx * d + W, :]
            for ky in range(3) for kx in range(3)]
    return jnp.concatenate(taps, axis=-1).reshape(N, H * W, 9 * C)


# --------------------------------------------------------------------------
# Parameters (deterministic, synthetic).  Conv weights channels-last:
#   1x1 conv -> (Cin, Cout);  3x3 conv -> (3, 3, Cin, Cout)
# --------------------------------------------------------------------------
def init_params(key, in_channels, out_channels):
    ks = jax.random.split(key, 8)
    s = 0.05
    hidden = in_channels // 16
    return {
        "conv0_w": jax.random.normal(ks[0], (in_channels, out_channels), jnp.float32) * s,
        "conv0_b": jnp.zeros((out_channels,), jnp.float32),
        "conv1_w": jax.random.normal(ks[1], (3, 3, in_channels, out_channels), jnp.float32) * s,
        "conv1_b": jnp.zeros((out_channels,), jnp.float32),
        "conv2_w": jax.random.normal(ks[2], (3, 3, in_channels, out_channels), jnp.float32) * s,
        "conv2_b": jnp.zeros((out_channels,), jnp.float32),
        "conv3_w": jax.random.normal(ks[3], (in_channels, out_channels), jnp.float32) * s,
        "conv3_b": jnp.zeros((out_channels,), jnp.float32),
        "mlp_w1": jax.random.normal(ks[4], (in_channels, hidden), jnp.float32) * s,
        "mlp_b1": jnp.zeros((hidden,), jnp.float32),
        "mlp_w2": jax.random.normal(ks[5], (hidden, in_channels), jnp.float32) * s,
        "mlp_b2": jnp.zeros((in_channels,), jnp.float32),
        "proj_in_w": jax.random.normal(ks[6], (SWIN_IN, SWIN_DIM), jnp.float32) * s,
        "proj_in_b": jnp.zeros((SWIN_DIM,), jnp.float32),
        "ln_g": jnp.ones((SWIN_DIM,), jnp.float32),
        "ln_b": jnp.zeros((SWIN_DIM,), jnp.float32),
        "proj_out_w": jax.random.normal(ks[7], (SWIN_DIM, SWIN_IN), jnp.float32) * s,
        "proj_out_b": jnp.zeros((SWIN_IN,), jnp.float32),
    }


# --------------------------------------------------------------------------
# Full ASPP forward (matches the PyTorch module's forward, dilations=(1,2,5,1))
# --------------------------------------------------------------------------
def aspp_forward(x_nchw, params, out_channels):
    x = jnp.transpose(x_nchw, (0, 2, 3, 1))              # NCHW -> NHWC (once)
    N, H, W, C = x.shape
    HW = H * W
    assert 4 * out_channels == SWIN_IN, "SwinEncoder2 expects 256 input channels"

    # channel attention (avg+max pooled MLP) fused with the conv3 branch + ReLU
    o3 = channel_att_conv3(x.reshape(N, HW, C), params, out_channels)  # (N,1,Cout)

    # bf16 activations for the MXU-heavy branches (f32 accumulation in-kernel)
    xb = x.astype(jnp.bfloat16)
    x_tok = xb.reshape(N, HW, C)
    xc2 = _im2col_tokens(xb, 2)                           # (N, HW, 9C)
    xc5 = _im2col_tokens(xb, 5)                           # (N, HW, 9C)

    # fused: 4 ASPP branches + concat + SwinEncoder2 proj_in/LN/proj_out
    y = fused_branches_swin(x_tok, xc2, xc5, o3, params, out_channels)
    y = y.reshape(N, H, W, SWIN_IN)
    return jnp.transpose(y, (0, 3, 1, 2))                 # NHWC -> NCHW (once)


if __name__ == "__main__":
    key = jax.random.PRNGKey(0)
    kx, kp = jax.random.split(key)

    in_channels = 32          # must be >= 16 (MLP bottleneck = in_channels // 16)
    out_channels = 64         # 4 * 64 = 256 channels feed the hard-coded SwinEncoder2
    N, H, W = 2, 16, 16

    x = jax.random.normal(kx, (N, in_channels, H, W), jnp.float32)
    params = init_params(kp, in_channels, out_channels)

    fwd = jax.jit(functools.partial(aspp_forward, out_channels=out_channels))
    y = fwd(x, params)
    y = jax.block_until_ready(y)
    assert y.shape == (N, 256, H, W), y.shape
    assert jnp.all(jnp.isfinite(y))
    print("KERNEL_OK")
</pallas_src>

<mosaic_0001>
module attributes {stable_mosaic.version = 11 : i64} {
  func.func @_chan_att_conv3_kernel(%arg0: i32, %arg1: memref<2x256x32xf32, #tpu.memory_space<vmem>>, %arg2: memref<32x2xf32, #tpu.memory_space<vmem>>, %arg3: memref<1x2xf32, #tpu.memory_space<vmem>>, %arg4: memref<2x32xf32, #tpu.memory_space<vmem>>, %arg5: memref<1x32xf32, #tpu.memory_space<vmem>>, %arg6: memref<32x64xf32, #tpu.memory_space<vmem>>, %arg7: memref<1x64xf32, #tpu.memory_space<vmem>>, %arg8: memref<2x1x64xf32, #tpu.memory_space<vmem>>, %arg9: memref<2x32xf32, #tpu.memory_space<vmem>>, %arg10: memref<2x32xf32, #tpu.memory_space<vmem>>) attributes {dimension_semantics = [#tpu.dimension_semantics<arbitrary>], iteration_bounds = array<i64: 1>, scalar_prefetch = 0 : i64, scratch_operands = 2 : i64, tpu.core_type = #tpu.core_type<tc>, window_params = [{transform_indices = @transform_0, window_bounds = array<i64: 2, 256, 32>}, {pipeline_mode = #tpu.pipeline_mode<synchronous>, transform_indices = @transform_1, window_bounds = array<i64: 32, 2>}, {pipeline_mode = #tpu.pipeline_mode<synchronous>, transform_indices = @transform_2, window_bounds = array<i64: 1, 2>}, {pipeline_mode = #tpu.pipeline_mode<synchronous>, transform_indices = @transform_3, window_bounds = array<i64: 2, 32>}, {pipeline_mode = #tpu.pipeline_mode<synchronous>, transform_indices = @transform_4, window_bounds = array<i64: 1, 32>}, {pipeline_mode = #tpu.pipeline_mode<synchronous>, transform_indices = @transform_5, window_bounds = array<i64: 32, 64>}, {pipeline_mode = #tpu.pipeline_mode<synchronous>, transform_indices = @transform_6, window_bounds = array<i64: 1, 64>}, {pipeline_mode = #tpu.pipeline_mode<synchronous>, transform_indices = @transform_7, window_bounds = array<i64: 2, 1, 64>}]} {
    %c0_i32 = arith.constant 0 : i32
    %0 = arith.cmpi eq, %arg0, %c0_i32 : i32
    %1 = arith.extui %0 : i1 to i32
    %c0_i32_0 = arith.constant 0 : i32
    %2 = arith.cmpi ne, %1, %c0_i32_0 : i32
    scf.if %2 {
      %cst_14 = arith.constant 0.000000e+00 : f32
      %15 = vector.broadcast %cst_14 : f32 to vector<2x32xf32>
      %c0_15 = arith.constant 0 : index
      %c0_16 = arith.constant 0 : index
      %16 = vector.load %arg9[%c0_15, %c0_16] : memref<2x32xf32, #tpu.memory_space<vmem>>, vector<2x32xf32>
      tpu.vector_store %arg9[%c0_15, %c0_16], %15 {strides = array<i32>} : memref<2x32xf32, #tpu.memory_space<vmem>>, vector<2x32xf32>,
      %cst_17 = arith.constant 0xFF800000 : f32
      %17 = vector.broadcast %cst_17 : f32 to vector<2x32xf32>
      %c0_18 = arith.constant 0 : index
      %c0_19 = arith.constant 0 : index
      %18 = vector.load %arg10[%c0_18, %c0_19] : memref<2x32xf32, #tpu.memory_space<vmem>>, vector<2x32xf32>
      tpu.vector_store %arg10[%c0_18, %c0_19], %17 {strides = array<i32>} : memref<2x32xf32, #tpu.memory_space<vmem>>, vector<2x32xf32>,
    } else {
    }
    %c0 = arith.constant 0 : index
    %c0_1 = arith.constant 0 : index
    %c0_2 = arith.constant 0 : index
    %3 = vector.load %arg1[%c0, %c0_1, %c0_2] : memref<2x256x32xf32, #tpu.memory_space<vmem>>, vector<2x256x32xf32>
    %c0_3 = arith.constant 0 : index
    %c0_4 = arith.constant 0 : index
    %4 = vector.load %arg9[%c0_3, %c0_4] : memref<2x32xf32, #tpu.memory_space<vmem>>, vector<2x32xf32>
    %cst = arith.constant dense<0.000000e+00> : vector<2x32xf32>
    %5 = vector.multi_reduction <add>, %3, %cst [1] : vector<2x256x32xf32> to vector<2x32xf32>
    %6 = arith.addf %4, %5 : vector<2x32xf32>
    %c0_5 = arith.constant 0 : index
    %c0_6 = arith.constant 0 : index
    %7 = vector.load %arg9[%c0_5, %c0_6] : memref<2x32xf32, #tpu.memory_space<vmem>>, vector<2x32xf32>
    tpu.vector_store %arg9[%c0_5, %c0_6], %6 {strides = array<i32>} : memref<2x32xf32, #tpu.memory_space<vmem>>, vector<2x32xf32>,
    %c0_7 = arith.constant 0 : index
    %c0_8 = arith.constant 0 : index
    %8 = vector.load %arg10[%c0_7, %c0_8] : memref<2x32xf32, #tpu.memory_space<vmem>>, vector<2x32xf32>
    %cst_9 = arith.constant dense<0xFF800000> : vector<2x32xf32>
    %9 = vector.multi_reduction <maximumf>, %3, %cst_9 [1] : vector<2x256x32xf32> to vector<2x32xf32>
    %10 = arith.maximumf %8, %9 : vector<2x32xf32>
    %c0_10 = arith.constant 0 : index
    %c0_11 = arith.constant 0 : index
    %11 = vector.load %arg10[%c0_10, %c0_11] : memref<2x32xf32, #tpu.memory_space<vmem>>, vector<2x32xf32>
    tpu.vector_store %arg10[%c0_10, %c0_11], %10 {strides = array<i32>} : memref<2x32xf32, #tpu.memory_space<vmem>>, vector<2x32xf32>,
    %c0_i32_12 = arith.constant 0 : i32
    %12 = arith.cmpi eq, %arg0, %c0_i32_12 : i32
    %13 = arith.extui %12 : i1 to i32
    %c0_i32_13 = arith.constant 0 : i32
    %14 = arith.cmpi ne, %13, %c0_i32_13 : i32
    scf.if %14 {
      %c0_14 = arith.constant 0 : index
      %c0_15 = arith.constant 0 : index
      %15 = vector.load %arg9[%c0_14, %c0_15] : memref<2x32xf32, #tpu.memory_space<vmem>>, vector<2x32xf32>
      %cst_16 = arith.constant 3.906250e-03 : f32
      %16 = vector.broadcast %cst_16 : f32 to vector<2x32xf32>
      %17 = arith.mulf %15, %16 : vector<2x32xf32>
      %c0_17 = arith.constant 0 : index
      %c0_18 = arith.constant 0 : index
      %18 = vector.load %arg10[%c0_17, %c0_18] : memref<2x32xf32, #tpu.memory_space<vmem>>, vector<2x32xf32>
      %c0_19 = arith.constant 0 : index
      %c0_20 = arith.constant 0 : index
      %19 = vector.load %arg2[%c0_19, %c0_20] : memref<32x2xf32, #tpu.memory_space<vmem>>, vector<32x2xf32>
      %cst_21 = arith.constant dense<0.000000e+00> : vector<2x2xf32>
      %20 = tpu.matmul %17, %19, %cst_21 {dimension_numbers = #tpu.dot_dimension_numbers<[1], [0], [0], [1], [0, 0, 1, 1], [], []>} : vector<2x32xf32>, vector<32x2xf32>, vector<2x2xf32> -> vector<2x2xf32>
      %c0_22 = arith.constant 0 : index
      %c0_23 = arith.constant 0 : index
      %21 = vector.load %arg3[%c0_22, %c0_23] : memref<1x2xf32, #tpu.memory_space<vmem>>, vector<1x2xf32>
      %22 = vector.broadcast %21 : vector<1x2xf32> to vector<2x2xf32>
      %23 = arith.addf %20, %22 : vector<2x2xf32>
      %cst_24 = arith.constant 0.000000e+00 : f32
      %24 = vector.broadcast %cst_24 : f32 to vector<2x2xf32>
      %25 = arith.maximumf %23, %24 : vector<2x2xf32>
      %c0_25 = arith.constant 0 : index
      %c0_26 = arith.constant 0 : index
      %26 = vector.load %arg4[%c0_25, %c0_26] : memref<2x32xf32, #tpu.memory_space<vmem>>, vector<2x32xf32>
      %cst_27 = arith.constant dense<0.000000e+00> : vector<2x32xf32>
      %27 = tpu.matmul %25, %26, %cst_27 {dimension_numbers = #tpu.dot_dimension_numbers<[1], [0], [0], [1], [0, 0, 1, 1], [], []>} : vector<2x2xf32>, vector<2x32xf32>, vector<2x32xf32> -> vector<2x32xf32>
      %c0_28 = arith.constant 0 : index
      %c0_29 = arith.constant 0 : index
      %28 = vector.load %arg5[%c0_28, %c0_29] : memref<1x32xf32, #tpu.memory_space<vmem>>, vector<1x32xf32>
      %29 = vector.broadcast %28 : vector<1x32xf32> to vector<2x32xf32>
      %30 = arith.addf %27, %29 : vector<2x32xf32>
      %c0_30 = arith.constant 0 : index
      %c0_31 = arith.constant 0 : index
      %31 = vector.load %arg2[%c0_30, %c0_31] : memref<32x2xf32, #tpu.memory_space<vmem>>, vector<32x2xf32>
      %cst_32 = arith.constant dense<0.000000e+00> : vector<2x2xf32>
      %32 = tpu.matmul %18, %31, %cst_32 {dimension_numbers = #tpu.dot_dimension_numbers<[1], [0], [0], [1], [0, 0, 1, 1], [], []>} : vector<2x32xf32>, vector<32x2xf32>, vector<2x2xf32> -> vector<2x2xf32>
      %c0_33 = arith.constant 0 : index
      %c0_34 = arith.constant 0 : index
      %33 = vector.load %arg3[%c0_33, %c0_34] : memref<1x2xf32, #tpu.memory_space<vmem>>, vector<1x2xf32>
      %34 = vector.broadcast %33 : vector<1x2xf32> to vector<2x2xf32>
      %35 = arith.addf %32, %34 : vector<2x2xf32>
      %cst_35 = arith.constant 0.000000e+00 : f32
      %36 = vector.broadcast %cst_35 : f32 to vector<2x2xf32>
      %37 = arith.maximumf %35, %36 : vector<2x2xf32>
      %c0_36 = arith.constant 0 : index
      %c0_37 = arith.constant 0 : index
      %38 = vector.load %arg4[%c0_36, %c0_37] : memref<2x32xf32, #tpu.memory_space<vmem>>, vector<2x32xf32>
      %cst_38 = arith.constant dense<0.000000e+00> : vector<2x32xf32>
      %39 = tpu.matmul %37, %38, %cst_38 {dimension_numbers = #tpu.dot_dimension_numbers<[1], [0], [0], [1], [0, 0, 1, 1], [], []>} : vector<2x2xf32>, vector<2x32xf32>, vector<2x32xf32> -> vector<2x32xf32>
      %c0_39 = arith.constant 0 : index
      %c0_40 = arith.constant 0 : index
      %40 = vector.load %arg5[%c0_39, %c0_40] : memref<1x32xf32, #tpu.memory_space<vmem>>, vector<1x32xf32>
      %41 = vector.broadcast %40 : vector<1x32xf32> to vector<2x32xf32>
      %42 = arith.addf %39, %41 : vector<2x32xf32>
      %43 = arith.addf %30, %42 : vector<2x32xf32>
      %c0_41 = arith.constant 0 : index
      %c0_42 = arith.constant 0 : index
      %44 = vector.load %arg6[%c0_41, %c0_42] : memref<32x64xf32, #tpu.memory_space<vmem>>, vector<32x64xf32>
      %cst_43 = arith.constant dense<0.000000e+00> : vector<2x64xf32>
      %45 = tpu.matmul %43, %44, %cst_43 {dimension_numbers = #tpu.dot_dimension_numbers<[1], [0], [0], [1], [0, 0, 1, 1], [], []>} : vector<2x32xf32>, vector<32x64xf32>, vector<2x64xf32> -> vector<2x64xf32>
      %c0_44 = arith.constant 0 : index
      %c0_45 = arith.constant 0 : index
      %46 = vector.load %arg7[%c0_44, %c0_45] : memref<1x64xf32, #tpu.memory_space<vmem>>, vector<1x64xf32>
      %47 = vector.broadcast %46 : vector<1x64xf32> to vector<2x64xf32>
      %48 = arith.addf %45, %47 : vector<2x64xf32>
      %cst_46 = arith.constant 0.000000e+00 : f32
      %49 = vector.broadcast %cst_46 : f32 to vector<2x64xf32>
      %50 = arith.maximumf %48, %49 : vector<2x64xf32>
      %51 = vector.shape_cast %50 : vector<2x64xf32> to vector<2x1x64xf32>
      %c0_47 = arith.constant 0 : index
      %c0_48 = arith.constant 0 : index
      %c0_49 = arith.constant 0 : index
      %52 = vector.load %arg8[%c0_47, %c0_48, %c0_49] : memref<2x1x64xf32, #tpu.memory_space<vmem>>, vector<2x1x64xf32>
      tpu.vector_store %arg8[%c0_47, %c0_48, %c0_49], %51 {strides = array<i32>} : memref<2x1x64xf32, #tpu.memory_space<vmem>>, vector<2x1x64xf32>,
    } else {
    }
    return
  }
  func.func @transform_0(%arg0: i32) -> (i32, i32, i32) {
    %c0_i32 = arith.constant 0 : i32
    %c0_i32_0 = arith.constant 0 : i32
    %c0_i32_1 = arith.constant 0 : i32
    return %c0_i32, %arg0, %c0_i32_0 : i32, i32, i32
  }
  func.func @transform_1(%arg0: i32) -> (i32, i32) {
    %c0_i32 = arith.constant 0 : i32
    %c0_i32_0 = arith.constant 0 : i32
    %c0_i32_1 = arith.constant 0 : i32
    return %c0_i32, %c0_i32_0 : i32, i32
  }
  func.func @transform_2(%arg0: i32) -> (i32, i32) {
    %c0_i32 = arith.constant 0 : i32
    %c0_i32_0 = arith.constant 0 : i32
    %c0_i32_1 = arith.constant 0 : i32
    return %c0_i32, %c0_i32_0 : i32, i32
  }
  func.func @transform_3(%arg0: i32) -> (i32, i32) {
    %c0_i32 = arith.constant 0 : i32
    %c0_i32_0 = arith.constant 0 : i32
    %c0_i32_1 = arith.constant 0 : i32
    return %c0_i32, %c0_i32_0 : i32, i32
  }
  func.func @transform_4(%arg0: i32) -> (i32, i32) {
    %c0_i32 = arith.constant 0 : i32
    %c0_i32_0 = arith.constant 0 : i32
    %c0_i32_1 = arith.constant 0 : i32
    return %c0_i32, %c0_i32_0 : i32, i32
  }
  func.func @transform_5(%arg0: i32) -> (i32, i32) {
    %c0_i32 = arith.constant 0 : i32
    %c0_i32_0 = arith.constant 0 : i32
    %c0_i32_1 = arith.constant 0 : i32
    return %c0_i32, %c0_i32_0 : i32, i32
  }
  func.func @transform_6(%arg0: i32) -> (i32, i32) {
    %c0_i32 = arith.constant 0 : i32
    %c0_i32_0 = arith.constant 0 : i32
    %c0_i32_1 = arith.constant 0 : i32
    return %c0_i32, %c0_i32_0 : i32, i32
  }
  func.func @transform_7(%arg0: i32) -> (i32, i32, i32) {
    %c0_i32 = arith.constant 0 : i32
    %c0_i32_0 = arith.constant 0 : i32
    %c0_i32_1 = arith.constant 0 : i32
    %c0_i32_2 = arith.constant 0 : i32
    return %c0_i32, %c0_i32_0, %c0_i32_1 : i32, i32, i32
  }
}

module attributes {stable_mosaic.version = 11 : i64} {
  func.func @_fused_main_kernel(%arg0: i32, %arg1: i32, %arg2: memref<1x256x32xbf16, #tpu.memory_space<vmem>>, %arg3: memref<1x256x288xbf16, #tpu.memory_space<vmem>>, %arg4: memref<1x256x288xbf16, #tpu.memory_space<vmem>>, %arg5: memref<1x1x64xf32, #tpu.memory_space<vmem>>, %arg6: memref<32x64xbf16, #tpu.memory_space<vmem>>, %arg7: memref<288x64xbf16, #tpu.memory_space<vmem>>, %arg8: memref<288x64xbf16, #tpu.memory_space<vmem>>, %arg9: memref<1x192xf32, #tpu.memory_space<vmem>>, %arg10: memref<256x192xbf16, #tpu.memory_space<vmem>>, %arg11: memref<1x192xf32, #tpu.memory_space<vmem>>, %arg12: memref<1x192xf32, #tpu.memory_space<vmem>>, %arg13: memref<1x192xf32, #tpu.memory_space<vmem>>, %arg14: memref<192x256xbf16, #tpu.memory_space<vmem>>, %arg15: memref<1x256xf32, #tpu.memory_space<vmem>>, %arg16: memref<1x256x256xf32, #tpu.memory_space<vmem>>) attributes {dimension_semantics = [#tpu.dimension_semantics<parallel>, #tpu.dimension_semantics<parallel>], iteration_bounds = array<i64: 2, 1>, scalar_prefetch = 0 : i64, scratch_operands = 0 : i64, tpu.core_type = #tpu.core_type<tc>, window_params = [{transform_indices = @transform_0, window_bounds = array<i64: 1, 256, 32>}, {transform_indices = @transform_1, window_bounds = array<i64: 1, 256, 288>}, {transform_indices = @transform_2, window_bounds = array<i64: 1, 256, 288>}, {transform_indices = @transform_3, window_bounds = array<i64: 1, 1, 64>}, {pipeline_mode = #tpu.pipeline_mode<synchronous>, transform_indices = @transform_4, window_bounds = array<i64: 32, 64>}, {pipeline_mode = #tpu.pipeline_mode<synchronous>, transform_indices = @transform_5, window_bounds = array<i64: 288, 64>}, {pipeline_mode = #tpu.pipeline_mode<synchronous>, transform_indices = @transform_6, window_bounds = array<i64: 288, 64>}, {pipeline_mode = #tpu.pipeline_mode<synchronous>, transform_indices = @transform_7, window_bounds = array<i64: 1, 192>}, {pipeline_mode = #tpu.pipeline_mode<synchronous>, transform_indices = @transform_8, window_bounds = array<i64: 256, 192>}, {pipeline_mode = #tpu.pipeline_mode<synchronous>, transform_indices = @transform_9, window_bounds = array<i64: 1, 192>}, {pipeline_mode = #tpu.pipeline_mode<synchronous>, transform_indices = @transform_10, window_bounds = array<i64: 1, 192>}, {pipeline_mode = #tpu.pipeline_mode<synchronous>, transform_indices = @transform_11, window_bounds = array<i64: 1, 192>}, {pipeline_mode = #tpu.pipeline_mode<synchronous>, transform_indices = @transform_12, window_bounds = array<i64: 192, 256>}, {pipeline_mode = #tpu.pipeline_mode<synchronous>, transform_indices = @transform_13, window_bounds = array<i64: 1, 256>}, {transform_indices = @transform_14, window_bounds = array<i64: 1, 256, 256>}]} {
    %c0 = arith.constant 0 : index
    %c0_0 = arith.constant 0 : index
    %c0_1 = arith.constant 0 : index
    %0 = vector.load %arg2[%c0, %c0_0, %c0_1] : memref<1x256x32xbf16, #tpu.memory_space<vmem>>, vector<1x256x32xbf16>
    %1 = vector.shape_cast %0 : vector<1x256x32xbf16> to vector<256x32xbf16>
    %c0_2 = arith.constant 0 : index
    %c0_3 = arith.constant 0 : index
    %2 = vector.load %arg6[%c0_2, %c0_3] : memref<32x64xbf16, #tpu.memory_space<vmem>>, vector<32x64xbf16>
    %cst = arith.constant dense<0.000000e+00> : vector<256x64xf32>
    %3 = tpu.matmul %1, %2, %cst {dimension_numbers = #tpu.dot_dimension_numbers<[1], [0], [0], [1], [0, 0, 1, 1], [], []>} : vector<256x32xbf16>, vector<32x64xbf16>, vector<256x64xf32> -> vector<256x64xf32>
    %c0_4 = arith.constant 0 : index
    %c0_5 = arith.constant 0 : index
    %c0_6 = arith.constant 0 : index
    %4 = vector.load %arg3[%c0_4, %c0_5, %c0_6] : memref<1x256x288xbf16, #tpu.memory_space<vmem>>, vector<1x256x288xbf16>
    %5 = vector.shape_cast %4 : vector<1x256x288xbf16> to vector<256x288xbf16>
    %c0_7 = arith.constant 0 : index
    %c0_8 = arith.constant 0 : index
    %6 = vector.load %arg7[%c0_7, %c0_8] : memref<288x64xbf16, #tpu.memory_space<vmem>>, vector<288x64xbf16>
    %cst_9 = arith.constant dense<0.000000e+00> : vector<256x64xf32>
    %7 = tpu.matmul %5, %6, %cst_9 {dimension_numbers = #tpu.dot_dimension_numbers<[1], [0], [0], [1], [0, 0, 1, 1], [], []>} : vector<256x288xbf16>, vector<288x64xbf16>, vector<256x64xf32> -> vector<256x64xf32>
    %c0_10 = arith.constant 0 : index
    %c0_11 = arith.constant 0 : index
    %c0_12 = arith.constant 0 : index
    %8 = vector.load %arg4[%c0_10, %c0_11, %c0_12] : memref<1x256x288xbf16, #tpu.memory_space<vmem>>, vector<1x256x288xbf16>
    %9 = vector.shape_cast %8 : vector<1x256x288xbf16> to vector<256x288xbf16>
    %c0_13 = arith.constant 0 : index
    %c0_14 = arith.constant 0 : index
    %10 = vector.load %arg8[%c0_13, %c0_14] : memref<288x64xbf16, #tpu.memory_space<vmem>>, vector<288x64xbf16>
    %cst_15 = arith.constant dense<0.000000e+00> : vector<256x64xf32>
    %11 = tpu.matmul %9, %10, %cst_15 {dimension_numbers = #tpu.dot_dimension_numbers<[1], [0], [0], [1], [0, 0, 1, 1], [], []>} : vector<256x288xbf16>, vector<288x64xbf16>, vector<256x64xf32> -> vector<256x64xf32>
    %12 = tpu.concatenate %3, %7, %11 in 1 : vector<256x64xf32>, vector<256x64xf32>, vector<256x64xf32> -> vector<256x192xf32>
    %c0_16 = arith.constant 0 : index
    %c0_17 = arith.constant 0 : index
    %13 = vector.load %arg9[%c0_16, %c0_17] : memref<1x192xf32, #tpu.memory_space<vmem>>, vector<1x192xf32>
    %14 = vector.broadcast %13 : vector<1x192xf32> to vector<256x192xf32>
    %15 = arith.addf %12, %14 : vector<256x192xf32>
    %c0_18 = arith.constant 0 : index
    %c0_19 = arith.constant 0 : index
    %c0_20 = arith.constant 0 : index
    %16 = vector.load %arg5[%c0_18, %c0_19, %c0_20] : memref<1x1x64xf32, #tpu.memory_space<vmem>>, vector<1x1x64xf32>
    %17 = vector.shape_cast %16 : vector<1x1x64xf32> to vector<1x64xf32>
    %18 = vector.shape_cast %17 : vector<1x64xf32> to vector<1x64xf32>
    %19 = vector.broadcast %18 : vector<1x64xf32> to vector<256x64xf32>
    %20 = tpu.concatenate %15, %19 in 1 : vector<256x192xf32>, vector<256x64xf32> -> vector<256x256xf32>
    %cst_21 = arith.constant 0.000000e+00 : f32
    %21 = vector.broadcast %cst_21 : f32 to vector<256x256xf32>
    %22 = arith.maximumf %20, %21 : vector<256x256xf32>
    %23 = arith.truncf %22 : vector<256x256xf32> to vector<256x256xbf16>
    %c0_22 = arith.constant 0 : index
    %c0_23 = arith.constant 0 : index
    %24 = vector.load %arg10[%c0_22, %c0_23] : memref<256x192xbf16, #tpu.memory_space<vmem>>, vector<256x192xbf16>
    %cst_24 = arith.constant dense<0.000000e+00> : vector<256x192xf32>
    %25 = tpu.matmul %23, %24, %cst_24 {dimension_numbers = #tpu.dot_dimension_numbers<[1], [0], [0], [1], [0, 0, 1, 1], [], []>} : vector<256x256xbf16>, vector<256x192xbf16>, vector<256x192xf32> -> vector<256x192xf32>
    %c0_25 = arith.constant 0 : index
    %c0_26 = arith.constant 0 : index
    %26 = vector.load %arg11[%c0_25, %c0_26] : memref<1x192xf32, #tpu.memory_space<vmem>>, vector<1x192xf32>
    %27 = vector.broadcast %26 : vector<1x192xf32> to vector<256x192xf32>
    %28 = arith.addf %25, %27 : vector<256x192xf32>
    %cst_27 = arith.constant dense<0.000000e+00> : vector<256xf32>
    %29 = vector.multi_reduction <add>, %28, %cst_27 [1] : vector<256x192xf32> to vector<256xf32>
    %30 = vector.shape_cast %29 : vector<256xf32> to vector<256x1xf32>
    %cst_28 = arith.constant 1.920000e+02 : f32
    %31 = vector.broadcast %cst_28 : f32 to vector<256x1xf32>
    %32 = arith.divf %30, %31 : vector<256x1xf32>
    %33 = vector.broadcast %32 : vector<256x1xf32> to vector<256x192xf32>
    %34 = arith.subf %28, %33 : vector<256x192xf32>
    %35 = arith.mulf %34, %34 : vector<256x192xf32>
    %cst_29 = arith.constant dense<0.000000e+00> : vector<256xf32>
    %36 = vector.multi_reduction <add>, %35, %cst_29 [1] : vector<256x192xf32> to vector<256xf32>
    %37 = vector.shape_cast %36 : vector<256xf32> to vector<256x1xf32>
    %cst_30 = arith.constant 1.920000e+02 : f32
    %38 = vector.broadcast %cst_30 : f32 to vector<256x1xf32>
    %39 = arith.divf %37, %38 : vector<256x1xf32>
    %cst_31 = arith.constant 9.99999974E-6 : f32
    %40 = vector.broadcast %cst_31 : f32 to vector<256x1xf32>
    %41 = arith.addf %39, %40 : vector<256x1xf32>
    %42 = math.rsqrt %41 : vector<256x1xf32>
    %43 = vector.broadcast %42 : vector<256x1xf32> to vector<256x192xf32>
    %44 = arith.mulf %34, %43 : vector<256x192xf32>
    %c0_32 = arith.constant 0 : index
    %c0_33 = arith.constant 0 : index
    %45 = vector.load %arg12[%c0_32, %c0_33] : memref<1x192xf32, #tpu.memory_space<vmem>>, vector<1x192xf32>
    %46 = vector.broadcast %45 : vector<1x192xf32> to vector<256x192xf32>
    %47 = arith.mulf %44, %46 : vector<256x192xf32>
    %c0_34 = arith.constant 0 : index
    %c0_35 = arith.constant 0 : index
    %48 = vector.load %arg13[%c0_34, %c0_35] : memref<1x192xf32, #tpu.memory_space<vmem>>, vector<1x192xf32>
    %49 = vector.broadcast %48 : vector<1x192xf32> to vector<256x192xf32>
    %50 = arith.addf %47, %49 : vector<256x192xf32>
    %51 = arith.truncf %50 : vector<256x192xf32> to vector<256x192xbf16>
    %c0_36 = arith.constant 0 : index
    %c0_37 = arith.constant 0 : index
    %52 = vector.load %arg14[%c0_36, %c0_37] : memref<192x256xbf16, #tpu.memory_space<vmem>>, vector<192x256xbf16>
    %cst_38 = arith.constant dense<0.000000e+00> : vector<256x256xf32>
    %53 = tpu.matmul %51, %52, %cst_38 {dimension_numbers = #tpu.dot_dimension_numbers<[1], [0], [0], [1], [0, 0, 1, 1], [], []>} : vector<256x192xbf16>, vector<192x256xbf16>, vector<256x256xf32> -> vector<256x256xf32>
    %c0_39 = arith.constant 0 : index
    %c0_40 = arith.constant 0 : index
    %54 = vector.load %arg15[%c0_39, %c0_40] : memref<1x256xf32, #tpu.memory_space<vmem>>, vector<1x256xf32>
    %55 = vector.broadcast %54 : vector<1x256xf32> to vector<256x256xf32>
    %56 = arith.addf %53, %55 : vector<256x256xf32>
    %c0_41 = arith.constant 0 : index
    %c0_42 = arith.constant 0 : index
    %c0_43 = arith.constant 0 : index
    %57 = vector.load %arg16[%c0_41, %c0_42, %c0_43] : memref<1x256x256xf32, #tpu.memory_space<vmem>>, vector<1x256x256xf32>
    %58 = vector.shape_cast %57 : vector<1x256x256xf32> to vector<256x256xf32>
    %59 = vector.shape_cast %56 : vector<256x256xf32> to vector<1x256x256xf32>
    tpu.vector_store %arg16[%c0_41, %c0_42, %c0_43], %59 {strides = array<i32>} : memref<1x256x256xf32, #tpu.memory_space<vmem>>, vector<1x256x256xf32>,
    return
  }
  func.func @transform_0(%arg0: i32, %arg1: i32) -> (i32, i32, i32) {
    %c0_i32 = arith.constant 0 : i32
    %c0_i32_0 = arith.constant 0 : i32
    return %arg0, %arg1, %c0_i32 : i32, i32, i32
  }
  func.func @transform_1(%arg0: i32, %arg1: i32) -> (i32, i32, i32) {
    %c0_i32 = arith.constant 0 : i32
    %c0_i32_0 = arith.constant 0 : i32
    return %arg0, %arg1, %c0_i32 : i32, i32, i32
  }
  func.func @transform_2(%arg0: i32, %arg1: i32) -> (i32, i32, i32) {
    %c0_i32 = arith.constant 0 : i32
    %c0_i32_0 = arith.constant 0 : i32
    return %arg0, %arg1, %c0_i32 : i32, i32, i32
  }
  func.func @transform_3(%arg0: i32, %arg1: i32) -> (i32, i32, i32) {
    %c0_i32 = arith.constant 0 : i32
    %c0_i32_0 = arith.constant 0 : i32
    %c0_i32_1 = arith.constant 0 : i32
    return %arg0, %c0_i32, %c0_i32_0 : i32, i32, i32
  }
  func.func @transform_4(%arg0: i32, %arg1: i32) -> (i32, i32) {
    %c0_i32 = arith.constant 0 : i32
    %c0_i32_0 = arith.constant 0 : i32
    %c0_i32_1 = arith.constant 0 : i32
    return %c0_i32, %c0_i32_0 : i32, i32
  }
  func.func @transform_5(%arg0: i32, %arg1: i32) -> (i32, i32) {
    %c0_i32 = arith.constant 0 : i32
    %c0_i32_0 = arith.constant 0 : i32
    %c0_i32_1 = arith.constant 0 : i32
    return %c0_i32, %c0_i32_0 : i32, i32
  }
  func.func @transform_6(%arg0: i32, %arg1: i32) -> (i32, i32) {
    %c0_i32 = arith.constant 0 : i32
    %c0_i32_0 = arith.constant 0 : i32
    %c0_i32_1 = arith.constant 0 : i32
    return %c0_i32, %c0_i32_0 : i32, i32
  }
  func.func @transform_7(%arg0: i32, %arg1: i32) -> (i32, i32) {
    %c0_i32 = arith.constant 0 : i32
    %c0_i32_0 = arith.constant 0 : i32
    %c0_i32_1 = arith.constant 0 : i32
    return %c0_i32, %c0_i32_0 : i32, i32
  }
  func.func @transform_8(%arg0: i32, %arg1: i32) -> (i32, i32) {
    %c0_i32 = arith.constant 0 : i32
    %c0_i32_0 = arith.constant 0 : i32
    %c0_i32_1 = arith.constant 0 : i32
    return %c0_i32, %c0_i32_0 : i32, i32
  }
  func.func @transform_9(%arg0: i32, %arg1: i32) -> (i32, i32) {
    %c0_i32 = arith.constant 0 : i32
    %c0_i32_0 = arith.constant 0 : i32
    %c0_i32_1 = arith.constant 0 : i32
    return %c0_i32, %c0_i32_0 : i32, i32
  }
  func.func @transform_10(%arg0: i32, %arg1: i32) -> (i32, i32) {
    %c0_i32 = arith.constant 0 : i32
    %c0_i32_0 = arith.constant 0 : i32
    %c0_i32_1 = arith.constant 0 : i32
    return %c0_i32, %c0_i32_0 : i32, i32
  }
  func.func @transform_11(%arg0: i32, %arg1: i32) -> (i32, i32) {
    %c0_i32 = arith.constant 0 : i32
    %c0_i32_0 = arith.constant 0 : i32
    %c0_i32_1 = arith.constant 0 : i32
    return %c0_i32, %c0_i32_0 : i32, i32
  }
  func.func @transform_12(%arg0: i32, %arg1: i32) -> (i32, i32) {
    %c0_i32 = arith.constant 0 : i32
    %c0_i32_0 = arith.constant 0 : i32
    %c0_i32_1 = arith.constant 0 : i32
    return %c0_i32, %c0_i32_0 : i32, i32
  }
  func.func @transform_13(%arg0: i32, %arg1: i32) -> (i32, i32) {
    %c0_i32 = arith.constant 0 : i32
    %c0_i32_0 = arith.constant 0 : i32
    %c0_i32_1 = arith.constant 0 : i32
    return %c0_i32, %c0_i32_0 : i32, i32
  }
  func.func @transform_14(%arg0: i32, %arg1: i32) -> (i32, i32, i32) {
    %c0_i32 = arith.constant 0 : i32
    %c0_i32_0 = arith.constant 0 : i32
    return %arg0, %arg1, %c0_i32 : i32, i32, i32
  }
}

</mosaic_0001>

<llo_original>
// kernel: aspp_forward.2
$region0: #{aspp_forward.2}
  #allocation0 [shape = 'u32[]', space=smem, size = 0x4, offset = 0x4, fixed_abs, tag = 'smem constant byte address 0x4 - core index']
  #allocation1 [shape = 'u32[144,128]{1,0:T(1,128)}', space=vmem, size = 0x12000, scoped, tag = 'internal scratch']
  #allocation2 [shape = 'f32[2,32]{1,0:T(2,128)}', space=vmem, size = 0x400, scoped, tag = 'scratch operand']
  #allocation3 [shape = 'f32[2,32]{1,0:T(2,128)}', space=vmem, size = 0x400, scoped, tag = 'scratch operand']
  %s0 = inlined_call_operand.vmem [shape: f32[2,256,32], index: 0, kind: input, shape index: {}]
  %s1 = inlined_call_operand.vmem [shape: f32[32,2], index: 1, kind: input, shape index: {}]
  %s2 = inlined_call_operand.vmem [shape: f32[1,2], index: 2, kind: input, shape index: {}]
  %s3 = inlined_call_operand.vmem [shape: f32[2,32], index: 3, kind: input, shape index: {}]
  %s4 = inlined_call_operand.vmem [shape: f32[1,32], index: 4, kind: input, shape index: {}]
  %s5 = inlined_call_operand.vmem [shape: f32[32,64], index: 5, kind: input, shape index: {}]
  %s6 = inlined_call_operand.vmem [shape: f32[1,64], index: 6, kind: input, shape index: {}]
  %s7 = inlined_call_operand.vmem [shape: f32[2,1,64], index: 7, kind: output, shape index: {}]
  %s8 = sld [smem:[#allocation0]]
  $region46: #{aspp_forward.2} parent=0
    _
  %s10 = ssub.s32 1, %s8
  %s11 = scalar_select 0, %s10, %s8
  // Predicated region
  $region2: #{aspp_forward.2} parent=0 // pred_check
    _
  $region3: #{aspp_forward.2} parent=0 // pred_check_branch
    %13 = sbr.rel (0) target = $region5
  $region4: #{aspp_forward.2} parent=0 // pred_region
    _
  $region5: #{aspp_forward.2} parent=0 // pred_fallthru
    _
  // Predicated region
  $region6: #{aspp_forward.2} parent=0 // pred_check
    _
  $region7: #{aspp_forward.2} parent=0 // pred_check_branch
    %15 = sbr.rel (0) target = $region9
  $region8: #{aspp_forward.2} parent=0 // pred_region
    _
  $region9: #{aspp_forward.2} parent=0 // pred_fallthru
    _
  // Predicated region
  $region10: #{aspp_forward.2} parent=0 // pred_check
    _
  $region11: #{aspp_forward.2} parent=0 // pred_check_branch
    %17 = sbr.rel (0) target = $region13
  $region12: #{aspp_forward.2} parent=0 // pred_region
    _
  $region13: #{aspp_forward.2} parent=0 // pred_fallthru
    _
  // Predicated region
  $region14: #{aspp_forward.2} parent=0 // pred_check
    _
  $region15: #{aspp_forward.2} parent=0 // pred_check_branch
    %19 = sbr.rel (0) target = $region17
  $region16: #{aspp_forward.2} parent=0 // pred_region
    _
  $region17: #{aspp_forward.2} parent=0 // pred_fallthru
    _
  // Predicated region
  $region18: #{aspp_forward.2} parent=0 // pred_check
    _
  $region19: #{aspp_forward.2} parent=0 // pred_check_branch
    %21 = sbr.rel (0) target = $region21
  $region20: #{aspp_forward.2} parent=0 // pred_region
    _
  $region21: #{aspp_forward.2} parent=0 // pred_fallthru
    _
  // Predicated region
  $region22: #{aspp_forward.2} parent=0 // pred_check
    _
  $region23: #{aspp_forward.2} parent=0 // pred_check_branch
    %23 = sbr.rel (0) target = $region25
  $region24: #{aspp_forward.2} parent=0 // pred_region
    _
  $region25: #{aspp_forward.2} parent=0 // pred_fallthru
    _
  // Predicated region
  $region26: #{aspp_forward.2} parent=0 // pred_check
    _
  $region27: #{aspp_forward.2} parent=0 // pred_check_branch
    %25 = sbr.rel (0) target = $region29
  $region28: #{aspp_forward.2} parent=0 // pred_region
    _
  $region29: #{aspp_forward.2} parent=0 // pred_fallthru
    _
  %p26 = scmp.eq.s32.totalorder 0, 0
  // Predicated region
  $region30: #{aspp_forward.2} parent=0 // pred_check
    %p27 = pneg %p26
  $region31: #{aspp_forward.2} parent=0 // pred_check_branch
    %29 = sbr.rel (%p27) target = $region33
  $region32: #{aspp_forward.2} parent=0 // pred_region
    %vm30 = vcmask 254976
    %31 = vst.msk [vmem:[#allocation2] sm:$0x3] %vm30, 0.0
    %32 = vst.msk [vmem:[#allocation3] sm:$0x3] %vm30, -inf
  $region33: #{aspp_forward.2} parent=0 // pred_fallthru
    _
  %v33 = vld [vmem:[%s0] sm:$0xff]
  %v34 = vld [vmem:[%s0 + $0x8] sm:$0xff]
  %v35 = vld [vmem:[%s0 + $0x10] sm:$0xff]
  %v36 = vld [vmem:[%s0 + $0x18] sm:$0xff]
  %v37 = vld [vmem:[%s0 + $0x20] sm:$0xff]
  %v38 = vld [vmem:[%s0 + $0x28] sm:$0xff]
  %v39 = vld [vmem:[%s0 + $0x30] sm:$0xff]
  %v40 = vld [vmem:[%s0 + $0x38] sm:$0xff]
  %v41 = vld [vmem:[%s0 + $0x40] sm:$0xff]
  %v42 = vld [vmem:[%s0 + $0x48] sm:$0xff]
  %v43 = vld [vmem:[%s0 + $0x50] sm:$0xff]
  %v44 = vld [vmem:[%s0 + $0x58] sm:$0xff]
  %v45 = vld [vmem:[%s0 + $0x60] sm:$0xff]
  %v46 = vld [vmem:[%s0 + $0x68] sm:$0xff]
  %v47 = vld [vmem:[%s0 + $0x70] sm:$0xff]
  %v48 = vld [vmem:[%s0 + $0x78] sm:$0xff]
  %v49 = vld [vmem:[%s0 + $0x80] sm:$0xff]
  %v50 = vld [vmem:[%s0 + $0x88] sm:$0xff]
  %v51 = vld [vmem:[%s0 + $0x90] sm:$0xff]
  %v52 = vld [vmem:[%s0 + $0x98] sm:$0xff]
  %v53 = vld [vmem:[%s0 + $0xa0] sm:$0xff]
  %v54 = vld [vmem:[%s0 + $0xa8] sm:$0xff]
  %v55 = vld [vmem:[%s0 + $0xb0] sm:$0xff]
  %v56 = vld [vmem:[%s0 + $0xb8] sm:$0xff]
  %v57 = vld [vmem:[%s0 + $0xc0] sm:$0xff]
  %v58 = vld [vmem:[%s0 + $0xc8] sm:$0xff]
  %v59 = vld [vmem:[%s0 + $0xd0] sm:$0xff]
  %v60 = vld [vmem:[%s0 + $0xd8] sm:$0xff]
  %v61 = vld [vmem:[%s0 + $0xe0] sm:$0xff]
  %v62 = vld [vmem:[%s0 + $0xe8] sm:$0xff]
  %v63 = vld [vmem:[%s0 + $0xf0] sm:$0xff]
  %v64 = vld [vmem:[%s0 + $0xf8] sm:$0xff]
  %v65 = vld [vmem:[%s0 + $0x100] sm:$0xff]
  %v66 = vld [vmem:[%s0 + $0x108] sm:$0xff]
  %v67 = vld [vmem:[%s0 + $0x110] sm:$0xff]
  %v68 = vld [vmem:[%s0 + $0x118] sm:$0xff]
  %v69 = vld [vmem:[%s0 + $0x120] sm:$0xff]
  %v70 = vld [vmem:[%s0 + $0x128] sm:$0xff]
  %v71 = vld [vmem:[%s0 + $0x130] sm:$0xff]
  %v72 = vld [vmem:[%s0 + $0x138] sm:$0xff]
  %v73 = vld [vmem:[%s0 + $0x140] sm:$0xff]
  %v74 = vld [vmem:[%s0 + $0x148] sm:$0xff]
  %v75 = vld [vmem:[%s0 + $0x150] sm:$0xff]
  %v76 = vld [vmem:[%s0 + $0x158] sm:$0xff]
  %v77 = vld [vmem:[%s0 + $0x160] sm:$0xff]
  %v78 = vld [vmem:[%s0 + $0x168] sm:$0xff]
  %v79 = vld [vmem:[%s0 + $0x170] sm:$0xff]
  %v80 = vld [vmem:[%s0 + $0x178] sm:$0xff]
  %v81 = vld [vmem:[%s0 + $0x180] sm:$0xff]
  %v82 = vld [vmem:[%s0 + $0x188] sm:$0xff]
  %v83 = vld [vmem:[%s0 + $0x190] sm:$0xff]
  %v84 = vld [vmem:[%s0 + $0x198] sm:$0xff]
  %v85 = vld [vmem:[%s0 + $0x1a0] sm:$0xff]
  %v86 = vld [vmem:[%s0 + $0x1a8] sm:$0xff]
  %v87 = vld [vmem:[%s0 + $0x1b0] sm:$0xff]
  %v88 = vld [vmem:[%s0 + $0x1b8] sm:$0xff]
  %v89 = vld [vmem:[%s0 + $0x1c0] sm:$0xff]
  %v90 = vld [vmem:[%s0 + $0x1c8] sm:$0xff]
  %v91 = vld [vmem:[%s0 + $0x1d0] sm:$0xff]
  %v92 = vld [vmem:[%s0 + $0x1d8] sm:$0xff]
  %v93 = vld [vmem:[%s0 + $0x1e0] sm:$0xff]
  %v94 = vld [vmem:[%s0 + $0x1e8] sm:$0xff]
  %v95 = vld [vmem:[%s0 + $0x1f0] sm:$0xff]
  %v96 = vld [vmem:[%s0 + $0x1f8] sm:$0xff]
  %v97 = vld [vmem:[#allocation2] sm:$0x3]
  %vm98 = vcmask 261120
  %v99 = vsel %vm98, %v33, 0.0
  %v100 = vsel %vm98, %v34, 0.0
  %v101 = vadd.f32 %v99, %v100
  %v102 = vsel %vm98, %v35, 0.0
  %v103 = vadd.f32 %v101, %v102
  %v104 = vsel %vm98, %v36, 0.0
  %v105 = vadd.f32 %v103, %v104
  %v106 = vsel %vm98, %v37, 0.0
  %v107 = vadd.f32 %v105, %v106
  %v108 = vsel %vm98, %v38, 0.0
  %v109 = vadd.f32 %v107, %v108
  %v110 = vsel %vm98, %v39, 0.0
  %v111 = vadd.f32 %v109, %v110
  %v112 = vsel %vm98, %v40, 0.0
  %v113 = vadd.f32 %v111, %v112
  %v114 = vsel %vm98, %v41, 0.0
  %v115 = vadd.f32 %v113, %v114
  %v116 = vsel %vm98, %v42, 0.0
  %v117 = vadd.f32 %v115, %v116
  %v118 = vsel %vm98, %v43, 0.0
  %v119 = vadd.f32 %v117, %v118
  %v120 = vsel %vm98, %v44, 0.0
  %v121 = vadd.f32 %v119, %v120
  %v122 = vsel %vm98, %v45, 0.0
  %v123 = vadd.f32 %v121, %v122
  %v124 = vsel %vm98, %v46, 0.0
  %v125 = vadd.f32 %v123, %v124
  %v126 = vsel %vm98, %v47, 0.0
  %v127 = vadd.f32 %v125, %v126
  %v128 = vsel %vm98, %v48, 0.0
  %v129 = vadd.f32 %v127, %v128
  %v130 = vsel %vm98, %v49, 0.0
  %v131 = vadd.f32 %v129, %v130
  %v132 = vsel %vm98, %v50, 0.0
  %v133 = vadd.f32 %v131, %v132
  %v134 = vsel %vm98, %v51, 0.0
  %v135 = vadd.f32 %v133, %v134
  %v136 = vsel %vm98, %v52, 0.0
  %v137 = vadd.f32 %v135, %v136
  %v138 = vsel %vm98, %v53, 0.0
  %v139 = vadd.f32 %v137, %v138
  %v140 = vsel %vm98, %v54, 0.0
  %v141 = vadd.f32 %v139, %v140
  %v142 = vsel %vm98, %v55, 0.0
  %v143 = vadd.f32 %v141, %v142
  %v144 = vsel %vm98, %v56, 0.0
  %v145 = vadd.f32 %v143, %v144
  %v146 = vsel %vm98, %v57, 0.0
  %v147 = vadd.f32 %v145, %v146
  %v148 = vsel %vm98, %v58, 0.0
  %v149 = vadd.f32 %v147, %v148
  %v150 = vsel %vm98, %v59, 0.0
  %v151 = vadd.f32 %v149, %v150
  %v152 = vsel %vm98, %v60, 0.0
  %v153 = vadd.f32 %v151, %v152
  %v154 = vsel %vm98, %v61, 0.0
  %v155 = vadd.f32 %v153, %v154
  %v156 = vsel %vm98, %v62, 0.0
  %v157 = vadd.f32 %v155, %v156
  %v158 = vsel %vm98, %v63, 0.0
  %v159 = vadd.f32 %v157, %v158
  %v160 = vsel %vm98, %v64, 0.0
  %v161 = vadd.f32 %v159, %v160
  %v162 = vrot.slane %v161, 4
  %v163 = vadd.f32 %v161, %v162
  %v164 = vrot.slane %v163, 2
  %v165 = vadd.f32 %v163, %v164
  %v166 = vrot.slane %v165, 1
  %v167 = vadd.f32 %v165, %v166
  %v168 = vsel %vm98, %v65, 0.0
  %v169 = vsel %vm98, %v66, 0.0
  %v170 = vadd.f32 %v168, %v169
  %v171 = vsel %vm98, %v67, 0.0
  %v172 = vadd.f32 %v170, %v171
  %v173 = vsel %vm98, %v68, 0.0
  %v174 = vadd.f32 %v172, %v173
  %v175 = vsel %vm98, %v69, 0.0
  %v176 = vadd.f32 %v174, %v175
  %v177 = vsel %vm98, %v70, 0.0
  %v178 = vadd.f32 %v176, %v177
  %v179 = vsel %vm98, %v71, 0.0
  %v180 = vadd.f32 %v178, %v179
  %v181 = vsel %vm98, %v72, 0.0
  %v182 = vadd.f32 %v180, %v181
  %v183 = vsel %vm98, %v73, 0.0
  %v184 = vadd.f32 %v182, %v183
  %v185 = vsel %vm98, %v74, 0.0
  %v186 = vadd.f32 %v184, %v185
  %v187 = vsel %vm98, %v75, 0.0
  %v188 = vadd.f32 %v186, %v187
  %v189 = vsel %vm98, %v76, 0.0
  %v190 = vadd.f32 %v188, %v189
  %v191 = vsel %vm98, %v77, 0.0
  %v192 = vadd.f32 %v190, %v191
  %v193 = vsel %vm98, %v78, 0.0
  %v194 = vadd.f32 %v192, %v193
  %v195 = vsel %vm98, %v79, 0.0
  %v196 = vadd.f32 %v194, %v195
  %v197 = vsel %vm98, %v80, 0.0
  %v198 = vadd.f32 %v196, %v197
  %v199 = vsel %vm98, %v81, 0.0
  %v200 = vadd.f32 %v198, %v199
  %v201 = vsel %vm98, %v82, 0.0
  %v202 = vadd.f32 %v200, %v201
  %v203 = vsel %vm98, %v83, 0.0
  %v204 = vadd.f32 %v202, %v203
  %v205 = vsel %vm98, %v84, 0.0
  %v206 = vadd.f32 %v204, %v205
  %v207 = vsel %vm98, %v85, 0.0
  %v208 = vadd.f32 %v206, %v207
  %v209 = vsel %vm98, %v86, 0.0
  %v210 = vadd.f32 %v208, %v209
  %v211 = vsel %vm98, %v87, 0.0
  %v212 = vadd.f32 %v210, %v211
  %v213 = vsel %vm98, %v88, 0.0
  %v214 = vadd.f32 %v212, %v213
  %v215 = vsel %vm98, %v89, 0.0
  %v216 = vadd.f32 %v214, %v215
  %v217 = vsel %vm98, %v90, 0.0
  %v218 = vadd.f32 %v216, %v217
  %v219 = vsel %vm98, %v91, 0.0
  %v220 = vadd.f32 %v218, %v219
  %v221 = vsel %vm98, %v92, 0.0
  %v222 = vadd.f32 %v220, %v221
  %v223 = vsel %vm98, %v93, 0.0
  %v224 = vadd.f32 %v222, %v223
  %v225 = vsel %vm98, %v94, 0.0
  %v226 = vadd.f32 %v224, %v225
  %v227 = vsel %vm98, %v95, 0.0
  %v228 = vadd.f32 %v226, %v227
  %v229 = vsel %vm98, %v96, 0.0
  %v230 = vadd.f32 %v228, %v229
  %v231 = vrot.slane %v230, 4
  %v232 = vadd.f32 %v230, %v231
  %v233 = vrot.slane %v232, 2
  %v234 = vadd.f32 %v232, %v233
  %v235 = vrot.slane %v234, 1
  %v236 = vadd.f32 %v234, %v235
  %vm239 = vcmask 1041409
  %v240 = vsel %vm239, %v236, %v167
  %v242 = vadd.f32 %v97, %v240
  %vm243 = vcmask 254976
  %244 = vst.msk [vmem:[#allocation2] sm:$0x3] %vm243, %v242
  %v245 = vld [vmem:[#allocation3] sm:$0x3]
  %v246 = vsel %vm98, %v33, -inf
  %v247 = vsel %vm98, %v34, -inf
  %v248 = vsel %vm98, %v35, -inf
  %v249 = vmax.f32 %v246, %v248
  %v250 = vsel %vm98, %v36, -inf
  %v251 = vmax.f32 %v247, %v250
  %v252 = vsel %vm98, %v37, -inf
  %v253 = vmax.f32 %v249, %v252
  %v254 = vsel %vm98, %v38, -inf
  %v255 = vmax.f32 %v251, %v254
  %v256 = vsel %vm98, %v39, -inf
  %v257 = vmax.f32 %v253, %v256
  %v258 = vsel %vm98, %v40, -inf
  %v259 = vmax.f32 %v255, %v258
  %v260 = vsel %vm98, %v41, -inf
  %v261 = vmax.f32 %v257, %v260
  %v262 = vsel %vm98, %v42, -inf
  %v263 = vmax.f32 %v259, %v262
  %v264 = vsel %vm98, %v43, -inf
  %v265 = vmax.f32 %v261, %v264
  %v266 = vsel %vm98, %v44, -inf
  %v267 = vmax.f32 %v263, %v266
  %v268 = vsel %vm98, %v45, -inf
  %v269 = vmax.f32 %v265, %v268
  %v270 = vsel %vm98, %v46, -inf
  %v271 = vmax.f32 %v267, %v270
  %v272 = vsel %vm98, %v47, -inf
  %v273 = vmax.f32 %v269, %v272
  %v274 = vsel %vm98, %v48, -inf
  %v275 = vmax.f32 %v271, %v274
  %v276 = vsel %vm98, %v49, -inf
  %v277 = vmax.f32 %v273, %v276
  %v278 = vsel %vm98, %v50, -inf
  %v279 = vmax.f32 %v275, %v278
  %v280 = vsel %vm98, %v51, -inf
  %v281 = vmax.f32 %v277, %v280
  %v282 = vsel %vm98, %v52, -inf
  %v283 = vmax.f32 %v279, %v282
  %v284 = vsel %vm98, %v53, -inf
  %v285 = vmax.f32 %v281, %v284
  %v286 = vsel %vm98, %v54, -inf
  %v287 = vmax.f32 %v283, %v286
  %v288 = vsel %vm98, %v55, -inf
  %v289 = vmax.f32 %v285, %v288
  %v290 = vsel %vm98, %v56, -inf
  %v291 = vmax.f32 %v287, %v290
  %v292 = vsel %vm98, %v57, -inf
  %v293 = vmax.f32 %v289, %v292
  %v294 = vsel %vm98, %v58, -inf
  %v295 = vmax.f32 %v291, %v294
  %v296 = vsel %vm98, %v59, -inf
  %v297 = vmax.f32 %v293, %v296
  %v298 = vsel %vm98, %v60, -inf
  %v299 = vmax.f32 %v295, %v298
  %v300 = vsel %vm98, %v61, -inf
  %v301 = vmax.f32 %v297, %v300
  %v302 = vsel %vm98, %v62, -inf
  %v303 = vmax.f32 %v299, %v302
  %v304 = vsel %vm98, %v63, -inf
  %v305 = vmax.f32 %v301, %v304
  %v306 = vsel %vm98, %v64, -inf
  %v307 = vmax.f32 %v303, %v306
  %v308 = vmax.f32 %v305, %v307
  %v309 = vrot.slane %v308, 4
  %v310 = vmax.f32 %v308, %v309
  %v311 = vrot.slane %v310, 2
  %v312 = vmax.f32 %v310, %v311
  %v313 = vrot.slane %v312, 1
  %v314 = vmax.f32 %v312, %v313
  %v315 = vsel %vm98, %v65, -inf
  %v316 = vsel %vm98, %v66, -inf
  %v317 = vsel %vm98, %v67, -inf
  %v318 = vmax.f32 %v315, %v317
  %v319 = vsel %vm98, %v68, -inf
  %v320 = vmax.f32 %v316, %v319
  %v321 = vsel %vm98, %v69, -inf
  %v322 = vmax.f32 %v318, %v321
  %v323 = vsel %vm98, %v70, -inf
  %v324 = vmax.f32 %v320, %v323
  %v325 = vsel %vm98, %v71, -inf
  %v326 = vmax.f32 %v322, %v325
  %v327 = vsel %vm98, %v72, -inf
  %v328 = vmax.f32 %v324, %v327
  %v329 = vsel %vm98, %v73, -inf
  %v330 = vmax.f32 %v326, %v329
  %v331 = vsel %vm98, %v74, -inf
  %v332 = vmax.f32 %v328, %v331
  %v333 = vsel %vm98, %v75, -inf
  %v334 = vmax.f32 %v330, %v333
  %v335 = vsel %vm98, %v76, -inf
  %v336 = vmax.f32 %v332, %v335
  %v337 = vsel %vm98, %v77, -inf
  %v338 = vmax.f32 %v334, %v337
  %v339 = vsel %vm98, %v78, -inf
  %v340 = vmax.f32 %v336, %v339
  %v341 = vsel %vm98, %v79, -inf
  %v342 = vmax.f32 %v338, %v341
  %v343 = vsel %vm98, %v80, -inf
  %v344 = vmax.f32 %v340, %v343
  %v345 = vsel %vm98, %v81, -inf
  %v346 = vmax.f32 %v342, %v345
  %v347 = vsel %vm98, %v82, -inf
  %v348 = vmax.f32 %v344, %v347
  %v349 = vsel %vm98, %v83, -inf
  %v350 = vmax.f32 %v346, %v349
  %v351 = vsel %vm98, %v84, -inf
  %v352 = vmax.f32 %v348, %v351
  %v353 = vsel %vm98, %v85, -inf
  %v354 = vmax.f32 %v350, %v353
  %v355 = vsel %vm98, %v86, -inf
  %v356 = vmax.f32 %v352, %v355
  %v357 = vsel %vm98, %v87, -inf
  %v358 = vmax.f32 %v354, %v357
  %v359 = vsel %vm98, %v88, -inf
  %v360 = vmax.f32 %v356, %v359
  %v361 = vsel %vm98, %v89, -inf
  %v362 = vmax.f32 %v358, %v361
  %v363 = vsel %vm98, %v90, -inf
  %v364 = vmax.f32 %v360, %v363
  %v365 = vsel %vm98, %v91, -inf
  %v366 = vmax.f32 %v362, %v365
  %v367 = vsel %vm98, %v92, -inf
  %v368 = vmax.f32 %v364, %v367
  %v369 = vsel %vm98, %v93, -inf
  %v370 = vmax.f32 %v366, %v369
  %v371 = vsel %vm98, %v94, -inf
  %v372 = vmax.f32 %v368, %v371
  %v373 = vsel %vm98, %v95, -inf
  %v374 = vmax.f32 %v370, %v373
  %v375 = vsel %vm98, %v96, -inf
  %v376 = vmax.f32 %v372, %v375
  %v377 = vmax.f32 %v374, %v376
  %v378 = vrot.slane %v377, 4
  %v379 = vmax.f32 %v377, %v378
  %v380 = vrot.slane %v379, 2
  %v381 = vmax.f32 %v379, %v380
  %v382 = vrot.slane %v381, 1
  %v383 = vmax.f32 %v381, %v382
  %v386 = vsel %vm239, %v383, %v314
  %v388 = vmax.f32 %v245, %v386
  %389 = vst.msk [vmem:[#allocation3] sm:$0x3] %vm243, %v388
  // Predicated region
  $region34: #{aspp_forward.2} parent=0 // pred_check
    %p390 = pneg %p26
  $region35: #{aspp_forward.2} parent=0 // pred_check_branch
    %392 = sbr.rel (%p390) target = $region37
  $region36: #{aspp_forward.2} parent=0 // pred_region
    %v393 = vld [vmem:[#allocation2] sm:$0x3]
    %v394 = vmul.f32 %v393, 0.00390625
    %v395 = vld [vmem:[#allocation3] sm:$0x3]
    %v396 = vld [vmem:[%s1] sm:$0xff]
    %v397 = vld [vmem:[%s1 + $0x8] sm:$0xff]
    %v398 = vld [vmem:[%s1 + $0x10] sm:$0xff]
    %v399 = vld [vmem:[%s1 + $0x18] sm:$0xff]
    %v400 = vld [vmem:[%s2] sm:$0x1]
    %v402 = vlaneseq
    %v403 = vshrl.u32 %v402, 7
    %v404 = vsub.s32 0, %v403
    %v405 = vrot.slane %v400, %v404
    %v408 = vsel %vm98, %v394, 0
    %410 = vmatprep.subr.mxu0 0.0
    %411 = vmatpush1.msra.mxu0 %v396
    %412 = vmatprep.subr.mxu0 0.0
    %413 = vmatpush1.msra.mxu0 %v397
    %414 = vmatprep.subr.mxu0 0.0
    %415 = vmatpush1.msra.mxu0 %v398
    %416 = vmatprep.subr.mxu0 0.0
    %417 = vmatpush1.msra.mxu0 %v399
    %418 = vmatprep.subr.mxu0 0.0
    %419 = vmatpush1.msra.mxu0 0.0
    %420 = vmatprep.subr.mxu0 0.0
    %421 = vmatpush1.msra.mxu0 0.0
    %422 = vmatprep.subr.mxu0 0.0
    %423 = vmatpush1.msra.mxu0 0.0
    %424 = vmatprep.subr.mxu0 0.0
    %425 = vmatpush1.msra.mxu0 0.0
    %426 = vmatprep.subr.mxu0 0.0
    %427 = vmatpush1.msra.mxu0 0.0
    %428 = vmatprep.subr.mxu0 0.0
    %429 = vmatpush1.msra.mxu0 0.0
    %430 = vmatprep.subr.mxu0 0.0
    %431 = vmatpush1.msra.mxu0 0.0
    %432 = vmatprep.subr.mxu0 0.0
    %433 = vmatpush1.msra.mxu0 0.0
    %434 = vmatprep.subr.mxu0 0.0
    %435 = vmatpush1.msra.mxu0 0.0
    %436 = vmatprep.subr.mxu0 0.0
    %437 = vmatpush1.msra.mxu0 0.0
    %438 = vmatprep.subr.mxu0 0.0
    %439 = vmatpush1.msra.mxu0 0.0
    %440 = vmatprep.subr.mxu0 0.0
    %441 = vmatpush1.msra.mxu0 0.0
    %442 = vmatprep.subr.mxu0 0.0
    %443 = vmatpush1.msra.mxu0 0.0
    %444 = vmatprep.subr.mxu0 0.0
    %445 = vmatpush1.msra.mxu0 0.0
    %446 = vmatprep.subr.mxu0 0.0
    %447 = vmatpush1.msra.mxu0 0.0
    %448 = vmatprep.subr.mxu0 0.0
    %449 = vmatpush1.msra.mxu0 0.0
    %450 = vmatprep.subr.mxu0 0.0
    %451 = vmatpush1.msra.mxu0 0.0
    %452 = vmatprep.subr.mxu0 0.0
    %453 = vmatpush1.msra.mxu0 0.0
    %454 = vmatprep.subr.mxu0 0.0
    %455 = vmatpush1.msra.mxu0 0.0
    %456 = vmatprep.subr.mxu0 0.0
    %457 = vmatpush1.msra.mxu0 0.0
    %458 = vmatprep.subr.mxu0 0.0
    %459 = vmatpush1.msra.mxu0 0.0
    %460 = vmatprep.subr.mxu0 0.0
    %461 = vmatpush1.msra.mxu0 0.0
    %462 = vmatprep.subr.mxu0 0.0
    %463 = vmatpush1.msra.mxu0 0.0
    %464 = vmatprep.subr.mxu0 0.0
    %465 = vmatpush1.msra.mxu0 0.0
    %466 = vmatprep.subr.mxu0 0.0
    %467 = vmatpush1.msra.mxu0 0.0
    %468 = vmatprep.subr.mxu0 0.0
    %469 = vmatpush1.msra.mxu0 0.0
    %470 = vmatprep.subr.mxu0 0.0
    %471 = vmatpush1.msra.mxu0 0.0
    %472 = vmatprep.subr.mxu0 0.0
    %473 = vmatpush1.msra.mxu0 0.0
    %474 = vmatprep.mubr.f32.mxu0 0.0
    %475 = vmatmul.mubr.f32.gmra.mrb[0].mxu0 %v408
    %v476 = vpop.f32.mrb[0].mxu0
    %v477 = vadd.f32 %v405, %v476
    %v478 = vpop.f32.mrb[0].mxu0
    %479 = vdwg.mxu0
    %v480 = vmax.f32 %v477, 0.0
    %v481 = vld [vmem:[%s3] sm:$0x3]
    %v482 = vld [vmem:[%s4] sm:$0x1]
    %v484 = vlaneseq
    %v485 = vshrl.u32 %v484, 7
    %v486 = vsub.s32 0, %v485
    %v487 = vrot.slane %v482, %v486
    %vm489 = vcmask 15360
    %v491 = vsel %vm489, %v480, 0
    %vm493 = vcmask 1041408
    %v495 = vsel %vm493, %v481, 0
    %497 = vmatprep.subr.mxu0 0.0
    %498 = vmatpush1.msra.mxu0 %v495
    %499 = vmatprep.subr.mxu0 0.0
    %500 = vmatpush1.msra.mxu0 0.0
    %501 = vmatprep.subr.mxu0 0.0
    %502 = vmatpush1.msra.mxu0 0.0
    %503 = vmatprep.subr.mxu0 0.0
    %504 = vmatpush1.msra.mxu0 0.0
    %505 = vmatprep.subr.mxu0 0.0
    %506 = vmatpush1.msra.mxu0 0.0
    %507 = vmatprep.subr.mxu0 0.0
    %508 = vmatpush1.msra.mxu0 0.0
    %509 = vmatprep.subr.mxu0 0.0
    %510 = vmatpush1.msra.mxu0 0.0
    %511 = vmatprep.subr.mxu0 0.0
    %512 = vmatpush1.msra.mxu0 0.0
    %513 = vmatprep.subr.mxu0 0.0
    %514 = vmatpush1.msra.mxu0 0.0
    %515 = vmatprep.subr.mxu0 0.0
    %516 = vmatpush1.msra.mxu0 0.0
    %517 = vmatprep.subr.mxu0 0.0
    %518 = vmatpush1.msra.mxu0 0.0
    %519 = vmatprep.subr.mxu0 0.0
    %520 = vmatpush1.msra.mxu0 0.0
    %521 = vmatprep.subr.mxu0 0.0
    %522 = vmatpush1.msra.mxu0 0.0
    %523 = vmatprep.subr.mxu0 0.0
    %524 = vmatpush1.msra.mxu0 0.0
    %525 = vmatprep.subr.mxu0 0.0
    %526 = vmatpush1.msra.mxu0 0.0
    %527 = vmatprep.subr.mxu0 0.0
    %528 = vmatpush1.msra.mxu0 0.0
    %529 = vmatprep.subr.mxu0 0.0
    %530 = vmatpush1.msra.mxu0 0.0
    %531 = vmatprep.subr.mxu0 0.0
    %532 = vmatpush1.msra.mxu0 0.0
    %533 = vmatprep.subr.mxu0 0.0
    %534 = vmatpush1.msra.mxu0 0.0
    %535 = vmatprep.subr.mxu0 0.0
    %536 = vmatpush1.msra.mxu0 0.0
    %537 = vmatprep.subr.mxu0 0.0
    %538 = vmatpush1.msra.mxu0 0.0
    %539 = vmatprep.subr.mxu0 0.0
    %540 = vmatpush1.msra.mxu0 0.0
    %541 = vmatprep.subr.mxu0 0.0
    %542 = vmatpush1.msra.mxu0 0.0
    %543 = vmatprep.subr.mxu0 0.0
    %544 = vmatpush1.msra.mxu0 0.0
    %545 = vmatprep.subr.mxu0 0.0
    %546 = vmatpush1.msra.mxu0 0.0
    %547 = vmatprep.subr.mxu0 0.0
    %548 = vmatpush1.msra.mxu0 0.0
    %549 = vmatprep.subr.mxu0 0.0
    %550 = vmatpush1.msra.mxu0 0.0
    %551 = vmatprep.subr.mxu0 0.0
    %552 = vmatpush1.msra.mxu0 0.0
    %553 = vmatprep.subr.mxu0 0.0
    %554 = vmatpush1.msra.mxu0 0.0
    %555 = vmatprep.subr.mxu0 0.0
    %556 = vmatpush1.msra.mxu0 0.0
    %557 = vmatprep.subr.mxu0 0.0
    %558 = vmatpush1.msra.mxu0 0.0
    %559 = vmatprep.subr.mxu0 0.0
    %560 = vmatpush1.msra.mxu0 0.0
    %561 = vmatprep.mubr.f32.mxu0 0.0
    %562 = vmatmul.mubr.f32.gmra.mrb[0].mxu0 %v491
    %v563 = vpop.f32.mrb[0].mxu0
    %v564 = vadd.f32 %v487, %v563
    %v565 = vpop.f32.mrb[0].mxu0
    %566 = vdwg.mxu0
    %v568 = vsel %vm98, %v395, 0
    %570 = vmatprep.subr.mxu0 0.0
    %571 = vmatpush1.msra.mxu0 %v396
    %572 = vmatprep.subr.mxu0 0.0
    %573 = vmatpush1.msra.mxu0 %v397
    %574 = vmatprep.subr.mxu0 0.0
    %575 = vmatpush1.msra.mxu0 %v398
    %576 = vmatprep.subr.mxu0 0.0
    %577 = vmatpush1.msra.mxu0 %v399
    %578 = vmatprep.subr.mxu0 0.0
    %579 = vmatpush1.msra.mxu0 0.0
    %580 = vmatprep.subr.mxu0 0.0
    %581 = vmatpush1.msra.mxu0 0.0
    %582 = vmatprep.subr.mxu0 0.0
    %583 = vmatpush1.msra.mxu0 0.0
    %584 = vmatprep.subr.mxu0 0.0
    %585 = vmatpush1.msra.mxu0 0.0
    %586 = vmatprep.subr.mxu0 0.0
    %587 = vmatpush1.msra.mxu0 0.0
    %588 = vmatprep.subr.mxu0 0.0
    %589 = vmatpush1.msra.mxu0 0.0
    %590 = vmatprep.subr.mxu0 0.0
    %591 = vmatpush1.msra.mxu0 0.0
    %592 = vmatprep.subr.mxu0 0.0
    %593 = vmatpush1.msra.mxu0 0.0
    %594 = vmatprep.subr.mxu0 0.0
    %595 = vmatpush1.msra.mxu0 0.0
    %596 = vmatprep.subr.mxu0 0.0
    %597 = vmatpush1.msra.mxu0 0.0
    %598 = vmatprep.subr.mxu0 0.0
    %599 = vmatpush1.msra.mxu0 0.0
    %600 = vmatprep.subr.mxu0 0.0
    %601 = vmatpush1.msra.mxu0 0.0
    %602 = vmatprep.subr.mxu0 0.0
    %603 = vmatpush1.msra.mxu0 0.0
    %604 = vmatprep.subr.mxu0 0.0
    %605 = vmatpush1.msra.mxu0 0.0
    %606 = vmatprep.subr.mxu0 0.0
    %607 = vmatpush1.msra.mxu0 0.0
    %608 = vmatprep.subr.mxu0 0.0
    %609 = vmatpush1.msra.mxu0 0.0
    %610 = vmatprep.subr.mxu0 0.0
    %611 = vmatpush1.msra.mxu0 0.0
    %612 = vmatprep.subr.mxu0 0.0
    %613 = vmatpush1.msra.mxu0 0.0
    %614 = vmatprep.subr.mxu0 0.0
    %615 = vmatpush1.msra.mxu0 0.0
    %616 = vmatprep.subr.mxu0 0.0
    %617 = vmatpush1.msra.mxu0 0.0
    %618 = vmatprep.subr.mxu0 0.0
    %619 = vmatpush1.msra.mxu0 0.0
    %620 = vmatprep.subr.mxu0 0.0
    %621 = vmatpush1.msra.mxu0 0.0
    %622 = vmatprep.subr.mxu0 0.0
    %623 = vmatpush1.msra.mxu0 0.0
    %624 = vmatprep.subr.mxu0 0.0
    %625 = vmatpush1.msra.mxu0 0.0
    %626 = vmatprep.subr.mxu0 0.0
    %627 = vmatpush1.msra.mxu0 0.0
    %628 = vmatprep.subr.mxu0 0.0
    %629 = vmatpush1.msra.mxu0 0.0
    %630 = vmatprep.subr.mxu0 0.0
    %631 = vmatpush1.msra.mxu0 0.0
    %632 = vmatprep.subr.mxu0 0.0
    %633 = vmatpush1.msra.mxu0 0.0
    %634 = vmatprep.mubr.f32.mxu0 0.0
    %635 = vmatmul.mubr.f32.gmra.mrb[0].mxu0 %v568
    %v636 = vpop.f32.mrb[0].mxu0
    %v637 = vadd.f32 %v405, %v636
    %v638 = vpop.f32.mrb[0].mxu0
    %639 = vdwg.mxu0
    %v640 = vmax.f32 %v637, 0.0
    %v642 = vsel %vm489, %v640, 0
    %644 = vmatprep.subr.mxu0 0.0
    %645 = vmatpush1.msra.mxu0 %v495
    %646 = vmatprep.subr.mxu0 0.0
    %647 = vmatpush1.msra.mxu0 0.0
    %648 = vmatprep.subr.mxu0 0.0
    %649 = vmatpush1.msra.mxu0 0.0
    %650 = vmatprep.subr.mxu0 0.0
    %651 = vmatpush1.msra.mxu0 0.0
    %652 = vmatprep.subr.mxu0 0.0
    %653 = vmatpush1.msra.mxu0 0.0
    %654 = vmatprep.subr.mxu0 0.0
    %655 = vmatpush1.msra.mxu0 0.0
    %656 = vmatprep.subr.mxu0 0.0
    %657 = vmatpush1.msra.mxu0 0.0
    %658 = vmatprep.subr.mxu0 0.0
    %659 = vmatpush1.msra.mxu0 0.0
    %660 = vmatprep.subr.mxu0 0.0
    %661 = vmatpush1.msra.mxu0 0.0
    %662 = vmatprep.subr.mxu0 0.0
    %663 = vmatpush1.msra.mxu0 0.0
    %664 = vmatprep.subr.mxu0 0.0
    %665 = vmatpush1.msra.mxu0 0.0
    %666 = vmatprep.subr.mxu0 0.0
    %667 = vmatpush1.msra.mxu0 0.0
    %668 = vmatprep.subr.mxu0 0.0
    %669 = vmatpush1.msra.mxu0 0.0
    %670 = vmatprep.subr.mxu0 0.0
    %671 = vmatpush1.msra.mxu0 0.0
    %672 = vmatprep.subr.mxu0 0.0
    %673 = vmatpush1.msra.mxu0 0.0
    %674 = vmatprep.subr.mxu0 0.0
    %675 = vmatpush1.msra.mxu0 0.0
    %676 = vmatprep.subr.mxu0 0.0
    %677 = vmatpush1.msra.mxu0 0.0
    %678 = vmatprep.subr.mxu0 0.0
    %679 = vmatpush1.msra.mxu0 0.0
    %680 = vmatprep.subr.mxu0 0.0
    %681 = vmatpush1.msra.mxu0 0.0
    %682 = vmatprep.subr.mxu0 0.0
    %683 = vmatpush1.msra.mxu0 0.0
    %684 = vmatprep.subr.mxu0 0.0
    %685 = vmatpush1.msra.mxu0 0.0
    %686 = vmatprep.subr.mxu0 0.0
    %687 = vmatpush1.msra.mxu0 0.0
    %688 = vmatprep.subr.mxu0 0.0
    %689 = vmatpush1.msra.mxu0 0.0
    %690 = vmatprep.subr.mxu0 0.0
    %691 = vmatpush1.msra.mxu0 0.0
    %692 = vmatprep.subr.mxu0 0.0
    %693 = vmatpush1.msra.mxu0 0.0
    %694 = vmatprep.subr.mxu0 0.0
    %695 = vmatpush1.msra.mxu0 0.0
    %696 = vmatprep.subr.mxu0 0.0
    %697 = vmatpush1.msra.mxu0 0.0
    %698 = vmatprep.subr.mxu0 0.0
    %699 = vmatpush1.msra.mxu0 0.0
    %700 = vmatprep.subr.mxu0 0.0
    %701 = vmatpush1.msra.mxu0 0.0
    %702 = vmatprep.subr.mxu0 0.0
    %703 = vmatpush1.msra.mxu0 0.0
    %704 = vmatprep.subr.mxu0 0.0
    %705 = vmatpush1.msra.mxu0 0.0
    %706 = vmatprep.subr.mxu0 0.0
    %707 = vmatpush1.msra.mxu0 0.0
    %708 = vmatprep.mubr.f32.mxu0 0.0
    %709 = vmatmul.mubr.f32.gmra.mrb[0].mxu0 %v642
    %v710 = vpop.f32.mrb[0].mxu0
    %v711 = vadd.f32 %v487, %v710
    %v712 = vpop.f32.mrb[0].mxu0
    %713 = vdwg.mxu0
    %v714 = vadd.f32 %v564, %v711
    %v715 = vld [vmem:[%s5] sm:$0xff]
    %v716 = vld [vmem:[%s5 + $0x8] sm:$0xff]
    %v717 = vld [vmem:[%s5 + $0x10] sm:$0xff]
    %v718 = vld [vmem:[%s5 + $0x18] sm:$0xff]
    %v719 = vld [vmem:[%s6] sm:$0x1]
    %v721 = vlaneseq
    %v722 = vshrl.u32 %v721, 7
    %v723 = vsub.s32 0, %v722
    %v724 = vrot.slane %v719, %v723
    %v727 = vsel %vm98, %v714, 0
    %729 = vmatprep.subr.mxu0 0.0
    %730 = vmatpush1.msra.mxu0 %v715
    %731 = vmatprep.subr.mxu0 0.0
    %732 = vmatpush1.msra.mxu0 %v716
    %733 = vmatprep.subr.mxu0 0.0
    %734 = vmatpush1.msra.mxu0 %v717
    %735 = vmatprep.subr.mxu0 0.0
    %736 = vmatpush1.msra.mxu0 %v718
    %737 = vmatprep.subr.mxu0 0.0
    %738 = vmatpush1.msra.mxu0 0.0
    %739 = vmatprep.subr.mxu0 0.0
    %740 = vmatpush1.msra.mxu0 0.0
    %741 = vmatprep.subr.mxu0 0.0
    %742 = vmatpush1.msra.mxu0 0.0
    %743 = vmatprep.subr.mxu0 0.0
    %744 = vmatpush1.msra.mxu0 0.0
    %745 = vmatprep.subr.mxu0 0.0
    %746 = vmatpush1.msra.mxu0 0.0
    %747 = vmatprep.subr.mxu0 0.0
    %748 = vmatpush1.msra.mxu0 0.0
    %749 = vmatprep.subr.mxu0 0.0
    %750 = vmatpush1.msra.mxu0 0.0
    %751 = vmatprep.subr.mxu0 0.0
    %752 = vmatpush1.msra.mxu0 0.0
    %753 = vmatprep.subr.mxu0 0.0
    %754 = vmatpush1.msra.mxu0 0.0
    %755 = vmatprep.subr.mxu0 0.0
    %756 = vmatpush1.msra.mxu0 0.0
    %757 = vmatprep.subr.mxu0 0.0
    %758 = vmatpush1.msra.mxu0 0.0
    %759 = vmatprep.subr.mxu0 0.0
    %760 = vmatpush1.msra.mxu0 0.0
    %761 = vmatprep.subr.mxu0 0.0
    %762 = vmatpush1.msra.mxu0 0.0
    %763 = vmatprep.subr.mxu0 0.0
    %764 = vmatpush1.msra.mxu0 0.0
    %765 = vmatprep.subr.mxu0 0.0
    %766 = vmatpush1.msra.mxu0 0.0
    %767 = vmatprep.subr.mxu0 0.0
    %768 = vmatpush1.msra.mxu0 0.0
    %769 = vmatprep.subr.mxu0 0.0
    %770 = vmatpush1.msra.mxu0 0.0
    %771 = vmatprep.subr.mxu0 0.0
    %772 = vmatpush1.msra.mxu0 0.0
    %773 = vmatprep.subr.mxu0 0.0
    %774 = vmatpush1.msra.mxu0 0.0
    %775 = vmatprep.subr.mxu0 0.0
    %776 = vmatpush1.msra.mxu0 0.0
    %777 = vmatprep.subr.mxu0 0.0
    %778 = vmatpush1.msra.mxu0 0.0
    %779 = vmatprep.subr.mxu0 0.0
    %780 = vmatpush1.msra.mxu0 0.0
    %781 = vmatprep.subr.mxu0 0.0
    %782 = vmatpush1.msra.mxu0 0.0
    %783 = vmatprep.subr.mxu0 0.0
    %784 = vmatpush1.msra.mxu0 0.0
    %785 = vmatprep.subr.mxu0 0.0
    %786 = vmatpush1.msra.mxu0 0.0
    %787 = vmatprep.subr.mxu0 0.0
    %788 = vmatpush1.msra.mxu0 0.0
    %789 = vmatprep.subr.mxu0 0.0
    %790 = vmatpush1.msra.mxu0 0.0
    %791 = vmatprep.subr.mxu0 0.0
    %792 = vmatpush1.msra.mxu0 0.0
    %793 = vmatprep.mubr.f32.mxu0 0.0
    %794 = vmatmul.mubr.f32.gmra.mrb[0].mxu0 %v727
    %v795 = vpop.f32.mrb[0].mxu0
    %v796 = vadd.f32 %v724, %v795
    %v797 = vpop.f32.mrb[0].mxu0
    %798 = vdwg.mxu0
    %v799 = vmax.f32 %v796, 0.0
    %v802 = vunpack.c.l.s4 1966171168
    %v803 = vunpack.c.0.s8 %v802
    %v804 = vlaneseq
    %v805 = vshrl.u32 %v804, 7
    %v806 = vsub.s32 %v803, %v805
    %v807 = vrot.slane %v799, %v806
    %v808 = vcombine.high %v807, %v807
    %v810 = vunpack.c.l.s4 1966171168
    %v811 = vunpack.c.0.s8 %v810
    %v812 = vlaneseq
    %v813 = vshrl.u32 %v812, 7
    %v814 = vsub.s32 %v811, %v813
    %v815 = vrot.slane %v807, %v814
    %v817 = vunpack.c.l.s4 1966171168
    %v818 = vunpack.c.0.s8 %v817
    %v819 = vlaneseq
    %v820 = vshrl.u32 %v819, 7
    %v821 = vsub.s32 %v818, %v820
    %v822 = vrot.slane %v808, %v821
    %vm825 = vcmask 516096
    %826 = vst.msk [vmem:[%s7] sm:$0x1] %vm825, %v815
    %827 = vst.msk [vmem:[%s7 + $0x1] sm:$0x1] %vm825, %v822
  $region37: #{aspp_forward.2} parent=0 // pred_fallthru
    _
  // Predicated region
  $region38: #{aspp_forward.2} parent=0 // pred_check
    _
  $region39: #{aspp_forward.2} parent=0 // pred_check_branch
    %829 = sbr.rel (0) target = $region41
  $region40: #{aspp_forward.2} parent=0 // pred_region
    _
  $region41: #{aspp_forward.2} parent=0 // pred_fallthru
    _
  // Predicated region
  $region42: #{aspp_forward.2} parent=0 // pred_check
    _
  $region43: #{aspp_forward.2} parent=0 // pred_check_branch
    %831 = sbr.rel (0) target = $region45
  $region44: #{aspp_forward.2} parent=0 // pred_region
    _
  $region45: #{aspp_forward.2} parent=0 // pred_fallthru
    _

// kernel: aspp_forward.3
$region0: #{aspp_forward.3}
  #allocation0 [shape = 'u32[]', space=smem, size = 0x4, offset = 0x4, fixed_abs, tag = 'smem constant byte address 0x4 - core index']
  #allocation1 [shape = 'u32[144,128]{1,0:T(1,128)}', space=vmem, size = 0x12000, scoped, tag = 'internal scratch']
  %s0 = inlined_call_operand.vmem [shape: bf16[2,256,32], index: 0, kind: input, shape index: {}]
  %s1 = inlined_call_operand.vmem [shape: bf16[2,256,288], index: 1, kind: input, shape index: {}]
  %s2 = inlined_call_operand.vmem [shape: bf16[2,256,288], index: 2, kind: input, shape index: {}]
  %s3 = inlined_call_operand.vmem [shape: f32[2,1,64], index: 3, kind: input, shape index: {}]
  %s4 = inlined_call_operand.vmem [shape: bf16[32,64], index: 4, kind: input, shape index: {}]
  %s5 = inlined_call_operand.vmem [shape: bf16[288,64], index: 5, kind: input, shape index: {}]
  %s6 = inlined_call_operand.vmem [shape: bf16[288,64], index: 6, kind: input, shape index: {}]
  %s7 = inlined_call_operand.vmem [shape: f32[1,192], index: 7, kind: input, shape index: {}]
  %s8 = inlined_call_operand.vmem [shape: bf16[256,192], index: 8, kind: input, shape index: {}]
  %s9 = inlined_call_operand.vmem [shape: f32[1,192], index: 9, kind: input, shape index: {}]
  %s10 = inlined_call_operand.vmem [shape: f32[1,192], index: 10, kind: input, shape index: {}]
  %s11 = inlined_call_operand.vmem [shape: f32[1,192], index: 11, kind: input, shape index: {}]
  %s12 = inlined_call_operand.vmem [shape: bf16[192,256], index: 12, kind: input, shape index: {}]
  %s13 = inlined_call_operand.vmem [shape: f32[1,256], index: 13, kind: input, shape index: {}]
  %s14 = inlined_call_operand.hbm [shape: f32[2,256,256], index: 14, kind: output, shape index: {}]
  %s15 = sld [smem:[#allocation0]]
  $region89: #{aspp_forward.3} parent=0
    _
  %s17 = ssub.s32 1, %s15
  %s18 = scalar_select 0, %s17, %s15
  $region1: #{aspp_forward.3} parent=0
    #allocation2 [shape = 'u8[524288]{0}', space=vmem, size = 0x80000, scoped, tag = 'output window, operand 0']
    #allocation3 [shape = 's32[2]{0}', space=sflag, size = 0x8, scoped, tag = 'scoped memory for aspp_forward.3']
    %19 = vsyncpa [#allocation3], 0
    %s20 = scalar_lea.sflag [#allocation3], 1
    %21 = vsyncpa %s20, 0
    loop: start=0, step=1, limit=4
    $region2: #{aspp_forward.3} parent=1 // loop_pre_header
      _
    $region3: #{aspp_forward.3} parent=1 // loop_header
      %s23 = sphi 0, %s27
      %p24 = scmp.ge.s32.totalorder %s23, 4
      %s30 = sphi 0, %s42
      %s31 = sphi 0, %s38
      %s32 = sphi 0, %s30
      %s33 = sphi 0, %s31
      %s34 = sphi 0, %s32
      %s35 = sphi 0, %s33
      %s47 = sphi 0, %s49
      %s50 = sphi 0, %s47
      %s51 = sphi 0, %s50
      %s67 = sphi 0, %s51
      %s75 = sphi 0, %s77
      %s78 = sphi 0, %s75
      %s79 = sphi 0, %s78
      %s95 = sphi 0, %s79
      %s103 = sphi 0, %s105
      %s106 = sphi 0, %s103
      %s107 = sphi 0, %s106
      %s123 = sphi 0, %s107
      %s129 = sphi 0, %s131
      %s132 = sphi 0, %s129
      %s133 = sphi 0, %s132
      %s149 = sphi 0, %s133
      %s153 = sphi 0, %s153
      %s155 = sphi 0, %s153
      %s156 = sphi 0, %s155
      %s170 = sphi 0, %s156
      %s174 = sphi 0, %s174
      %s176 = sphi 0, %s174
      %s177 = sphi 0, %s176
      %s191 = sphi 0, %s177
      %s195 = sphi 0, %s195
      %s197 = sphi 0, %s195
      %s198 = sphi 0, %s197
      %s212 = sphi 0, %s198
      %s216 = sphi 0, %s216
      %s218 = sphi 0, %s216
      %s219 = sphi 0, %s218
      %s233 = sphi 0, %s219
      %s237 = sphi 0, %s237
      %s239 = sphi 0, %s237
      %s240 = sphi 0, %s239
      %s254 = sphi 0, %s240
      %s258 = sphi 0, %s258
      %s260 = sphi 0, %s258
      %s261 = sphi 0, %s260
      %s275 = sphi 0, %s261
      %s279 = sphi 0, %s279
      %s281 = sphi 0, %s279
      %s282 = sphi 0, %s281
      %s296 = sphi 0, %s282
      %s300 = sphi 0, %s300
      %s302 = sphi 0, %s300
      %s303 = sphi 0, %s302
      %s317 = sphi 0, %s303
      %s321 = sphi 0, %s321
      %s323 = sphi 0, %s321
      %s324 = sphi 0, %s323
      %s338 = sphi 0, %s324
      %s342 = sphi 0, %s342
      %s344 = sphi 0, %s342
      %s345 = sphi 0, %s344
      %s359 = sphi 0, %s345
      %s367 = sphi 0, %s369
      %s370 = sphi 0, %s367
      %s371 = sphi 0, %s370
      %s387 = sphi 0, %s371
    $region4: #{aspp_forward.3} parent=1 // loop_header_branch
      %26 = sbr.rel (%p24) target = $region8
    $region5: #{aspp_forward.3} parent=1 // loop_body
      %s28 = ssub.s32 %s23, 1
      %s29 = ssub.s32 %s23, 2
      %s36 = sadd.s32 1, %s31
      %p37 = scmp.ge.s32.totalorder %s36, 1
      %s38 = scalar_select %p37, 0, %s36
      %s39 = sadd.s32 1, %s30
      %s40 = scalar_select %p37, %s39, %s30
      %p41 = scmp.ge.s32.totalorder %s40, 2
      %s42 = scalar_select %p41, 0, %s40
      %s43 = ssub.s32 %s30, %s42
      %s44 = ssub.s32 %s31, %s38
      %s45 = sor.u32 %s43, %s44
      %p46 = scmp.eq.s32.totalorder %s45, 0
      %s48 = sadd.s32 %s47, 1
      %s49 = scalar_select %p46, %s47, %s48
      %p52 = pneg %p46
      %p53 = scmp.eq.s32.totalorder %s23, 1
      %p54 = por %p52, %p53
      %p55 = scmp.ne.s32.totalorder %s47, %s50
      %p56 = scmp.eq.s32.totalorder %s23, 0
      %p57 = por %p55, %p56
      %p58 = scmp.ne.s32.totalorder %s47, %s50
      %p59 = scmp.eq.s32.totalorder %s28, 1
      %p60 = por %p58, %p59
      %p61 = scmp.ne.s32.totalorder %s50, %s51
      %p62 = scmp.eq.s32.totalorder %s28, 0
      %p63 = por %p61, %p62
      %p64 = scmp.ne.s32.totalorder %s50, %s51
      %p65 = scmp.eq.s32.totalorder %s29, 1
      %p66 = por %p64, %p65
      %p68 = scmp.ne.s32.totalorder %s51, %s67
      %p69 = scmp.eq.s32.totalorder %s29, 0
      %p70 = por %p68, %p69
      %s71 = ssub.s32 %s30, %s42
      %s72 = ssub.s32 %s31, %s38
      %s73 = sor.u32 %s71, %s72
      %p74 = scmp.eq.s32.totalorder %s73, 0
      %s76 = sadd.s32 %s75, 1
      %s77 = scalar_select %p74, %s75, %s76
      %p80 = pneg %p74
      %p81 = scmp.eq.s32.totalorder %s23, 1
      %p82 = por %p80, %p81
      %p83 = scmp.ne.s32.totalorder %s75, %s78
      %p84 = scmp.eq.s32.totalorder %s23, 0
      %p85 = por %p83, %p84
      %p86 = scmp.ne.s32.totalorder %s75, %s78
      %p87 = scmp.eq.s32.totalorder %s28, 1
      %p88 = por %p86, %p87
      %p89 = scmp.ne.s32.totalorder %s78, %s79
      %p90 = scmp.eq.s32.totalorder %s28, 0
      %p91 = por %p89, %p90
      %p92 = scmp.ne.s32.totalorder %s78, %s79
      %p93 = scmp.eq.s32.totalorder %s29, 1
      %p94 = por %p92, %p93
      %p96 = scmp.ne.s32.totalorder %s79, %s95
      %p97 = scmp.eq.s32.totalorder %s29, 0
      %p98 = por %p96, %p97
      %s99 = ssub.s32 %s30, %s42
      %s100 = ssub.s32 %s31, %s38
      %s101 = sor.u32 %s99, %s100
      %p102 = scmp.eq.s32.totalorder %s101, 0
      %s104 = sadd.s32 %s103, 1
      %s105 = scalar_select %p102, %s103, %s104
      %p108 = pneg %p102
      %p109 = scmp.eq.s32.totalorder %s23, 1
      %p110 = por %p108, %p109
      %p111 = scmp.ne.s32.totalorder %s103, %s106
      %p112 = scmp.eq.s32.totalorder %s23, 0
      %p113 = por %p111, %p112
      %p114 = scmp.ne.s32.totalorder %s103, %s106
      %p115 = scmp.eq.s32.totalorder %s28, 1
      %p116 = por %p114, %p115
      %p117 = scmp.ne.s32.totalorder %s106, %s107
      %p118 = scmp.eq.s32.totalorder %s28, 0
      %p119 = por %p117, %p118
      %p120 = scmp.ne.s32.totalorder %s106, %s107
      %p121 = scmp.eq.s32.totalorder %s29, 1
      %p122 = por %p120, %p121
      %p124 = scmp.ne.s32.totalorder %s107, %s123
      %p125 = scmp.eq.s32.totalorder %s29, 0
      %p126 = por %p124, %p125
      %s127 = ssub.s32 %s30, %s42
      %p128 = scmp.eq.s32.totalorder %s127, 0
      %s130 = sadd.s32 %s129, 1
      %s131 = scalar_select %p128, %s129, %s130
      %p134 = pneg %p128
      %p135 = scmp.eq.s32.totalorder %s23, 1
      %p136 = por %p134, %p135
      %p137 = scmp.ne.s32.totalorder %s129, %s132
      %p138 = scmp.eq.s32.totalorder %s23, 0
      %p139 = por %p137, %p138
      %p140 = scmp.ne.s32.totalorder %s129, %s132
      %p141 = scmp.eq.s32.totalorder %s28, 1
      %p142 = por %p140, %p141
      %p143 = scmp.ne.s32.totalorder %s132, %s133
      %p144 = scmp.eq.s32.totalorder %s28, 0
      %p145 = por %p143, %p144
      %p146 = scmp.ne.s32.totalorder %s132, %s133
      %p147 = scmp.eq.s32.totalorder %s29, 1
      %p148 = por %p146, %p147
      %p150 = scmp.ne.s32.totalorder %s133, %s149
      %p151 = scmp.eq.s32.totalorder %s29, 0
      %p152 = por %p150, %p151
      %s154 = sadd.s32 %s153, 1
      %p157 = scmp.eq.s32.totalorder %s23, 1
      %p158 = scmp.ne.s32.totalorder %s153, %s155
      %p159 = scmp.eq.s32.totalorder %s23, 0
      %p160 = por %p158, %p159
      %p161 = scmp.ne.s32.totalorder %s153, %s155
      %p162 = scmp.eq.s32.totalorder %s28, 1
      %p163 = por %p161, %p162
      %p164 = scmp.ne.s32.totalorder %s155, %s156
      %p165 = scmp.eq.s32.totalorder %s28, 0
      %p166 = por %p164, %p165
      %p167 = scmp.ne.s32.totalorder %s155, %s156
      %p168 = scmp.eq.s32.totalorder %s29, 1
      %p169 = por %p167, %p168
      %p171 = scmp.ne.s32.totalorder %s156, %s170
      %p172 = scmp.eq.s32.totalorder %s29, 0
      %p173 = por %p171, %p172
      %s175 = sadd.s32 %s174, 1
      %p178 = scmp.eq.s32.totalorder %s23, 1
      %p179 = scmp.ne.s32.totalorder %s174, %s176
      %p180 = scmp.eq.s32.totalorder %s23, 0
      %p181 = por %p179, %p180
      %p182 = scmp.ne.s32.totalorder %s174, %s176
      %p183 = scmp.eq.s32.totalorder %s28, 1
      %p184 = por %p182, %p183
      %p185 = scmp.ne.s32.totalorder %s176, %s177
      %p186 = scmp.eq.s32.totalorder %s28, 0
      %p187 = por %p185, %p186
      %p188 = scmp.ne.s32.totalorder %s176, %s177
      %p189 = scmp.eq.s32.totalorder %s29, 1
      %p190 = por %p188, %p189
      %p192 = scmp.ne.s32.totalorder %s177, %s191
      %p193 = scmp.eq.s32.totalorder %s29, 0
      %p194 = por %p192, %p193
      %s196 = sadd.s32 %s195, 1
      %p199 = scmp.eq.s32.totalorder %s23, 1
      %p200 = scmp.ne.s32.totalorder %s195, %s197
      %p201 = scmp.eq.s32.totalorder %s23, 0
      %p202 = por %p200, %p201
      %p203 = scmp.ne.s32.totalorder %s195, %s197
      %p204 = scmp.eq.s32.totalorder %s28, 1
      %p205 = por %p203, %p204
      %p206 = scmp.ne.s32.totalorder %s197, %s198
      %p207 = scmp.eq.s32.totalorder %s28, 0
      %p208 = por %p206, %p207
      %p209 = scmp.ne.s32.totalorder %s197, %s198
      %p210 = scmp.eq.s32.totalorder %s29, 1
      %p211 = por %p209, %p210
      %p213 = scmp.ne.s32.totalorder %s198, %s212
      %p214 = scmp.eq.s32.totalorder %s29, 0
      %p215 = por %p213, %p214
      %s217 = sadd.s32 %s216, 1
      %p220 = scmp.eq.s32.totalorder %s23, 1
      %p221 = scmp.ne.s32.totalorder %s216, %s218
      %p222 = scmp.eq.s32.totalorder %s23, 0
      %p223 = por %p221, %p222
      %p224 = scmp.ne.s32.totalorder %s216, %s218
      %p225 = scmp.eq.s32.totalorder %s28, 1
      %p226 = por %p224, %p225
      %p227 = scmp.ne.s32.totalorder %s218, %s219
      %p228 = scmp.eq.s32.totalorder %s28, 0
      %p229 = por %p227, %p228
      %p230 = scmp.ne.s32.totalorder %s218, %s219
      %p231 = scmp.eq.s32.totalorder %s29, 1
      %p232 = por %p230, %p231
      %p234 = scmp.ne.s32.totalorder %s219, %s233
      %p235 = scmp.eq.s32.totalorder %s29, 0
      %p236 = por %p234, %p235
      %s238 = sadd.s32 %s237, 1
      %p241 = scmp.eq.s32.totalorder %s23, 1
      %p242 = scmp.ne.s32.totalorder %s237, %s239
      %p243 = scmp.eq.s32.totalorder %s23, 0
      %p244 = por %p242, %p243
      %p245 = scmp.ne.s32.totalorder %s237, %s239
      %p246 = scmp.eq.s32.totalorder %s28, 1
      %p247 = por %p245, %p246
      %p248 = scmp.ne.s32.totalorder %s239, %s240
      %p249 = scmp.eq.s32.totalorder %s28, 0
      %p250 = por %p248, %p249
      %p251 = scmp.ne.s32.totalorder %s239, %s240
      %p252 = scmp.eq.s32.totalorder %s29, 1
      %p253 = por %p251, %p252
      %p255 = scmp.ne.s32.totalorder %s240, %s254
      %p256 = scmp.eq.s32.totalorder %s29, 0
      %p257 = por %p255, %p256
      %s259 = sadd.s32 %s258, 1
      %p262 = scmp.eq.s32.totalorder %s23, 1
      %p263 = scmp.ne.s32.totalorder %s258, %s260
      %p264 = scmp.eq.s32.totalorder %s23, 0
      %p265 = por %p263, %p264
      %p266 = scmp.ne.s32.totalorder %s258, %s260
      %p267 = scmp.eq.s32.totalorder %s28, 1
      %p268 = por %p266, %p267
      %p269 = scmp.ne.s32.totalorder %s260, %s261
      %p270 = scmp.eq.s32.totalorder %s28, 0
      %p271 = por %p269, %p270
      %p272 = scmp.ne.s32.totalorder %s260, %s261
      %p273 = scmp.eq.s32.totalorder %s29, 1
      %p274 = por %p272, %p273
      %p276 = scmp.ne.s32.totalorder %s261, %s275
      %p277 = scmp.eq.s32.totalorder %s29, 0
      %p278 = por %p276, %p277
      %s280 = sadd.s32 %s279, 1
      %p283 = scmp.eq.s32.totalorder %s23, 1
      %p284 = scmp.ne.s32.totalorder %s279, %s281
      %p285 = scmp.eq.s32.totalorder %s23, 0
      %p286 = por %p284, %p285
      %p287 = scmp.ne.s32.totalorder %s279, %s281
      %p288 = scmp.eq.s32.totalorder %s28, 1
      %p289 = por %p287, %p288
      %p290 = scmp.ne.s32.totalorder %s281, %s282
      %p291 = scmp.eq.s32.totalorder %s28, 0
      %p292 = por %p290, %p291
      %p293 = scmp.ne.s32.totalorder %s281, %s282
      %p294 = scmp.eq.s32.totalorder %s29, 1
      %p295 = por %p293, %p294
      %p297 = scmp.ne.s32.totalorder %s282, %s296
      %p298 = scmp.eq.s32.totalorder %s29, 0
      %p299 = por %p297, %p298
      %s301 = sadd.s32 %s300, 1
      %p304 = scmp.eq.s32.totalorder %s23, 1
      %p305 = scmp.ne.s32.totalorder %s300, %s302
      %p306 = scmp.eq.s32.totalorder %s23, 0
      %p307 = por %p305, %p306
      %p308 = scmp.ne.s32.totalorder %s300, %s302
      %p309 = scmp.eq.s32.totalorder %s28, 1
      %p310 = por %p308, %p309
      %p311 = scmp.ne.s32.totalorder %s302, %s303
      %p312 = scmp.eq.s32.totalorder %s28, 0
      %p313 = por %p311, %p312
      %p314 = scmp.ne.s32.totalorder %s302, %s303
      %p315 = scmp.eq.s32.totalorder %s29, 1
      %p316 = por %p314, %p315
      %p318 = scmp.ne.s32.totalorder %s303, %s317
      %p319 = scmp.eq.s32.totalorder %s29, 0
      %p320 = por %p318, %p319
      %s322 = sadd.s32 %s321, 1
      %p325 = scmp.eq.s32.totalorder %s23, 1
      %p326 = scmp.ne.s32.totalorder %s321, %s323
      %p327 = scmp.eq.s32.totalorder %s23, 0
      %p328 = por %p326, %p327
      %p329 = scmp.ne.s32.totalorder %s321, %s323
      %p330 = scmp.eq.s32.totalorder %s28, 1
      %p331 = por %p329, %p330
      %p332 = scmp.ne.s32.totalorder %s323, %s324
      %p333 = scmp.eq.s32.totalorder %s28, 0
      %p334 = por %p332, %p333
      %p335 = scmp.ne.s32.totalorder %s323, %s324
      %p336 = scmp.eq.s32.totalorder %s29, 1
      %p337 = por %p335, %p336
      %p339 = scmp.ne.s32.totalorder %s324, %s338
      %p340 = scmp.eq.s32.totalorder %s29, 0
      %p341 = por %p339, %p340
      %s343 = sadd.s32 %s342, 1
      %p346 = scmp.eq.s32.totalorder %s23, 1
      %p347 = scmp.ne.s32.totalorder %s342, %s344
      %p348 = scmp.eq.s32.totalorder %s23, 0
      %p349 = por %p347, %p348
      %p350 = scmp.ne.s32.totalorder %s342, %s344
      %p351 = scmp.eq.s32.totalorder %s28, 1
      %p352 = por %p350, %p351
      %p353 = scmp.ne.s32.totalorder %s344, %s345
      %p354 = scmp.eq.s32.totalorder %s28, 0
      %p355 = por %p353, %p354
      %p356 = scmp.ne.s32.totalorder %s344, %s345
      %p357 = scmp.eq.s32.totalorder %s29, 1
      %p358 = por %p356, %p357
      %p360 = scmp.ne.s32.totalorder %s345, %s359
      %p361 = scmp.eq.s32.totalorder %s29, 0
      %p362 = por %p360, %p361
      %s363 = ssub.s32 %s30, %s42
      %s364 = ssub.s32 %s31, %s38
      %s365 = sor.u32 %s363, %s364
      %p366 = scmp.eq.s32.totalorder %s365, 0
      %s368 = sadd.s32 %s367, 1
      %s369 = scalar_select %p366, %s367, %s368
      %p372 = pneg %p366
      %p373 = scmp.eq.s32.totalorder %s23, 1
      %p374 = por %p372, %p373
      %p375 = scmp.ne.s32.totalorder %s367, %s370
      %p376 = scmp.eq.s32.totalorder %s23, 0
      %p377 = por %p375, %p376
      %p378 = scmp.ne.s32.totalorder %s367, %s370
      %p379 = scmp.eq.s32.totalorder %s28, 1
      %p380 = por %p378, %p379
      %p381 = scmp.ne.s32.totalorder %s370, %s371
      %p382 = scmp.eq.s32.totalorder %s28, 0
      %p383 = por %p381, %p382
      %p384 = scmp.ne.s32.totalorder %s370, %s371
      %p385 = scmp.eq.s32.totalorder %s29, 1
      %p386 = por %p384, %p385
      %p388 = scmp.ne.s32.totalorder %s371, %s387
      %p389 = scmp.eq.s32.totalorder %s29, 0
      %p390 = por %p388, %p389
      %p391 = scmp.le.s32.totalorder 1, %s23
      %p392 = scmp.lt.s32.totalorder %s23, 3
      %p393 = pnand %p391, %p392
      %p394 = pneg %p393
      // Predicated region
      $region9: #{aspp_forward.3} parent=5 // pred_check
        _
      $region10: #{aspp_forward.3} parent=5 // pred_check_branch
        %396 = sbr.rel (%p393) target = $region12
      $region11: #{aspp_forward.3} parent=5 // pred_region
        %s397 = ssub.s32 %s23, 1
        // Predicated region
        $region13: #{aspp_forward.3} parent=11 // pred_check
          %p398 = pneg %p166
        $region14: #{aspp_forward.3} parent=11 // pred_check_branch
          %400 = sbr.rel (%p398) target = $region16
        $region15: #{aspp_forward.3} parent=11 // pred_region
          _
        $region16: #{aspp_forward.3} parent=11 // pred_fallthru
          _
        // Predicated region
        $region17: #{aspp_forward.3} parent=11 // pred_check
          %p401 = pneg %p187
        $region18: #{aspp_forward.3} parent=11 // pred_check_branch
          %403 = sbr.rel (%p401) target = $region20
        $region19: #{aspp_forward.3} parent=11 // pred_region
          _
        $region20: #{aspp_forward.3} parent=11 // pred_fallthru
          _
        // Predicated region
        $region21: #{aspp_forward.3} parent=11 // pred_check
          %p404 = pneg %p208
        $region22: #{aspp_forward.3} parent=11 // pred_check_branch
          %406 = sbr.rel (%p404) target = $region24
        $region23: #{aspp_forward.3} parent=11 // pred_region
          _
        $region24: #{aspp_forward.3} parent=11 // pred_fallthru
          _
        // Predicated region
        $region25: #{aspp_forward.3} parent=11 // pred_check
          %p407 = pneg %p229
        $region26: #{aspp_forward.3} parent=11 // pred_check_branch
          %409 = sbr.rel (%p407) target = $region28
        $region27: #{aspp_forward.3} parent=11 // pred_region
          _
        $region28: #{aspp_forward.3} parent=11 // pred_fallthru
          _
        // Predicated region
        $region29: #{aspp_forward.3} parent=11 // pred_check
          %p410 = pneg %p250
        $region30: #{aspp_forward.3} parent=11 // pred_check_branch
          %412 = sbr.rel (%p410) target = $region32
        $region31: #{aspp_forward.3} parent=11 // pred_region
          _
        $region32: #{aspp_forward.3} parent=11 // pred_fallthru
          _
        // Predicated region
        $region33: #{aspp_forward.3} parent=11 // pred_check
          %p413 = pneg %p271
        $region34: #{aspp_forward.3} parent=11 // pred_check_branch
          %415 = sbr.rel (%p413) target = $region36
        $region35: #{aspp_forward.3} parent=11 // pred_region
          _
        $region36: #{aspp_forward.3} parent=11 // pred_fallthru
          _
        // Predicated region
        $region37: #{aspp_forward.3} parent=11 // pred_check
          %p416 = pneg %p292
        $region38: #{aspp_forward.3} parent=11 // pred_check_branch
          %418 = sbr.rel (%p416) target = $region40
        $region39: #{aspp_forward.3} parent=11 // pred_region
          _
        $region40: #{aspp_forward.3} parent=11 // pred_fallthru
          _
        // Predicated region
        $region41: #{aspp_forward.3} parent=11 // pred_check
          %p419 = pneg %p313
        $region42: #{aspp_forward.3} parent=11 // pred_check_branch
          %421 = sbr.rel (%p419) target = $region44
        $region43: #{aspp_forward.3} parent=11 // pred_region
          _
        $region44: #{aspp_forward.3} parent=11 // pred_fallthru
          _
        // Predicated region
        $region45: #{aspp_forward.3} parent=11 // pred_check
          %p422 = pneg %p334
        $region46: #{aspp_forward.3} parent=11 // pred_check_branch
          %424 = sbr.rel (%p422) target = $region48
        $region47: #{aspp_forward.3} parent=11 // pred_region
          _
        $region48: #{aspp_forward.3} parent=11 // pred_fallthru
          _
        // Predicated region
        $region49: #{aspp_forward.3} parent=11 // pred_check
          %p425 = pneg %p355
        $region50: #{aspp_forward.3} parent=11 // pred_check_branch
          %427 = sbr.rel (%p425) target = $region52
        $region51: #{aspp_forward.3} parent=11 // pred_region
          _
        $region52: #{aspp_forward.3} parent=11 // pred_fallthru
          _
      $region12: #{aspp_forward.3} parent=5 // pred_fallthru
        _
      %p428 = scmp.lt.s32.totalorder %s23, 2
      // Predicated region
      $region53: #{aspp_forward.3} parent=5 // pred_check
        %p429 = pneg %p428
      $region54: #{aspp_forward.3} parent=5 // pred_check_branch
        %431 = sbr.rel (%p429) target = $region56
      $region55: #{aspp_forward.3} parent=5 // pred_region
        // Predicated region
        $region57: #{aspp_forward.3} parent=55 // pred_check
          %p432 = pneg %p57
        $region58: #{aspp_forward.3} parent=55 // pred_check_branch
          %434 = sbr.rel (%p432) target = $region60
        $region59: #{aspp_forward.3} parent=55 // pred_region
          %s435 = smul.u32 32, %s31
          %p436 = scmp.lt.s32.totalorder %s30, 1
          %s437 = scalar_select %p436, %s30, 1
          %p438 = scmp.lt.s32.totalorder %s435, 31
          %s439 = scalar_select %p438, %s435, 31
          %s440 = smul.addr %s437, 32
          %s441 = sadd.s32 %s439, %s440
          %s442 = smul.addr %s441, 4
          %s443 = scalar_lea.vmem %s0, %s442
          %s444 = smul.u32 32, %s31
        $region60: #{aspp_forward.3} parent=55 // pred_fallthru
          _
        // Predicated region
        $region61: #{aspp_forward.3} parent=55 // pred_check
          %p445 = pneg %p85
        $region62: #{aspp_forward.3} parent=55 // pred_check_branch
          %447 = sbr.rel (%p445) target = $region64
        $region63: #{aspp_forward.3} parent=55 // pred_region
          %s448 = smul.u32 32, %s31
          %p449 = scmp.lt.s32.totalorder %s30, 1
          %s450 = scalar_select %p449, %s30, 1
          %p451 = scmp.lt.s32.totalorder %s448, 31
          %s452 = scalar_select %p451, %s448, 31
          %s453 = smul.addr %s452, 3
          %s454 = smul.addr %s450, 96
          %s455 = sadd.s32 %s453, %s454
          %s456 = smul.addr %s455, 4
          %s457 = scalar_lea.vmem %s1, %s456
          %s458 = smul.u32 32, %s31
        $region64: #{aspp_forward.3} parent=55 // pred_fallthru
          _
        // Predicated region
        $region65: #{aspp_forward.3} parent=55 // pred_check
          %p459 = pneg %p113
        $region66: #{aspp_forward.3} parent=55 // pred_check_branch
          %461 = sbr.rel (%p459) target = $region68
        $region67: #{aspp_forward.3} parent=55 // pred_region
          %s462 = smul.u32 32, %s31
          %p463 = scmp.lt.s32.totalorder %s30, 1
          %s464 = scalar_select %p463, %s30, 1
          %p465 = scmp.lt.s32.totalorder %s462, 31
          %s466 = scalar_select %p465, %s462, 31
          %s467 = smul.addr %s466, 3
          %s468 = smul.addr %s464, 96
          %s469 = sadd.s32 %s467, %s468
          %s470 = smul.addr %s469, 4
          %s471 = scalar_lea.vmem %s2, %s470
          %s472 = smul.u32 32, %s31
        $region68: #{aspp_forward.3} parent=55 // pred_fallthru
          _
        // Predicated region
        $region69: #{aspp_forward.3} parent=55 // pred_check
          %p473 = pneg %p139
        $region70: #{aspp_forward.3} parent=55 // pred_check_branch
          %475 = sbr.rel (%p473) target = $region72
        $region71: #{aspp_forward.3} parent=55 // pred_region
          %p476 = scmp.lt.s32.totalorder %s30, 1
          %s477 = scalar_select %p476, %s30, 1
          %s478 = scalar_lea.vmem %s3, %s477
        $region72: #{aspp_forward.3} parent=55 // pred_fallthru
          _
      $region56: #{aspp_forward.3} parent=5 // pred_fallthru
        _
      %p479 = scmp.le.s32.totalorder 1, %s23
      %p480 = scmp.lt.s32.totalorder %s23, 3
      %p481 = pnand %p479, %p480
      %p482 = pneg %p481
      // Predicated region
      $region73: #{aspp_forward.3} parent=5 // pred_check
        _
      $region74: #{aspp_forward.3} parent=5 // pred_check_branch
        %484 = sbr.rel (%p481) target = $region76
      $region75: #{aspp_forward.3} parent=5 // pred_region
        %s485 = ssub.s32 %s23, 1
        %s486 = smul.u32 32, %s33
        %p487 = scmp.lt.s32.totalorder %s32, 1
        %s488 = scalar_select %p487, %s32, 1
        %p489 = scmp.lt.s32.totalorder %s486, 31
        %s490 = scalar_select %p489, %s486, 31
        %s491 = smul.addr %s488, 32
        %s492 = sadd.s32 %s490, %s491
        %s493 = smul.addr %s492, 4
        %s494 = scalar_lea.vmem %s0, %s493
        %p495 = pneg %p63
        %p496 = pneg %p60
        %s497 = smul.u32 32, %s33
        %p498 = scmp.lt.s32.totalorder %s32, 1
        %s499 = scalar_select %p498, %s32, 1
        %p500 = scmp.lt.s32.totalorder %s497, 31
        %s501 = scalar_select %p500, %s497, 31
        %s502 = smul.addr %s501, 3
        %s503 = smul.addr %s499, 96
        %s504 = sadd.s32 %s502, %s503
        %s505 = smul.addr %s504, 4
        %s506 = scalar_lea.vmem %s1, %s505
        %p507 = pneg %p91
        %p508 = pneg %p88
        %s509 = smul.u32 32, %s33
        %p510 = scmp.lt.s32.totalorder %s32, 1
        %s511 = scalar_select %p510, %s32, 1
        %p512 = scmp.lt.s32.totalorder %s509, 31
        %s513 = scalar_select %p512, %s509, 31
        %s514 = smul.addr %s513, 3
        %s515 = smul.addr %s511, 96
        %s516 = sadd.s32 %s514, %s515
        %s517 = smul.addr %s516, 4
        %s518 = scalar_lea.vmem %s2, %s517
        %p519 = pneg %p119
        %p520 = pneg %p116
        %p521 = scmp.lt.s32.totalorder %s32, 1
        %s522 = scalar_select %p521, %s32, 1
        %s523 = scalar_lea.vmem %s3, %s522
        %p524 = pneg %p145
        %p525 = pneg %p142
        %p526 = pneg %p166
        %p527 = pneg %p163
        %p528 = pneg %p187
        %p529 = pneg %p184
        %p530 = pneg %p208
        %p531 = pneg %p205
        %p532 = pneg %p229
        %p533 = pneg %p226
        %p534 = pneg %p250
        %p535 = pneg %p247
        %p536 = pneg %p271
        %p537 = pneg %p268
        %p538 = pneg %p292
        %p539 = pneg %p289
        %p540 = pneg %p313
        %p541 = pneg %p310
        %p542 = pneg %p334
        %p543 = pneg %p331
        %p544 = pneg %p355
        %p545 = pneg %p352
        %p546 = pneg %p383
        %p547 = pneg %p380
        %s548 = sand.u32 %s370, 1
        %s549 = scalar_lea.sflag [#allocation3], %s548
        %s550 = sand.u32 %s370, 1
        %s551 = smul.addr %s550, 512
        %s552 = scalar_lea.vmem [#allocation2], %s551
        %s553 = smul.u32 32, %s33
        %p554 = scmp.lt.s32.totalorder %s32, 1
        %s555 = scalar_select %p554, %s32, 1
        %p556 = scmp.lt.s32.totalorder %s553, 31
        %s557 = scalar_select %p556, %s553, 31
        %s558 = smul.addr %s555, 32
        %s559 = sadd.s32 %s557, %s558
        %s560 = smul.addr %s559, 4
        %s561 = scalar_lea.vmem %s0, %s560
        %s562 = smul.u32 32, %s33
        %s563 = smul.u32 32, %s33
        %p564 = scmp.lt.s32.totalorder %s32, 1
        %s565 = scalar_select %p564, %s32, 1
        %p566 = scmp.lt.s32.totalorder %s563, 31
        %s567 = scalar_select %p566, %s563, 31
        %s568 = smul.addr %s567, 3
        %s569 = smul.addr %s565, 96
        %s570 = sadd.s32 %s568, %s569
        %s571 = smul.addr %s570, 4
        %s572 = scalar_lea.vmem %s1, %s571
        %s573 = smul.u32 32, %s33
        %s574 = smul.u32 32, %s33
        %p575 = scmp.lt.s32.totalorder %s32, 1
        %s576 = scalar_select %p575, %s32, 1
        %p577 = scmp.lt.s32.totalorder %s574, 31
        %s578 = scalar_select %p577, %s574, 31
        %s579 = smul.addr %s578, 3
        %s580 = smul.addr %s576, 96
        %s581 = sadd.s32 %s579, %s580
        %s582 = smul.addr %s581, 4
        %s583 = scalar_lea.vmem %s2, %s582
        %s584 = smul.u32 32, %s33
        %p585 = scmp.lt.s32.totalorder %s32, 1
        %s586 = scalar_select %p585, %s32, 1
        %s587 = scalar_lea.vmem %s3, %s586
        %s588 = smul.u32 32, %s33
        %v590 = vld [vmem:[%s561] sm:$0xf]
        %v591 = vld [vmem:[%s561 + $0x4] sm:$0xf]
        %v592 = vld [vmem:[%s561 + $0x8] sm:$0xf]
        %v593 = vld [vmem:[%s561 + $0xc] sm:$0xf]
        %v594 = vld [vmem:[%s561 + $0x10] sm:$0xf]
        %v595 = vld [vmem:[%s561 + $0x14] sm:$0xf]
        %v596 = vld [vmem:[%s561 + $0x18] sm:$0xf]
        %v597 = vld [vmem:[%s561 + $0x1c] sm:$0xf]
        %v598 = vld [vmem:[%s561 + $0x20] sm:$0xf]
        %v599 = vld [vmem:[%s561 + $0x24] sm:$0xf]
        %v600 = vld [vmem:[%s561 + $0x28] sm:$0xf]
        %v601 = vld [vmem:[%s561 + $0x2c] sm:$0xf]
        %v602 = vld [vmem:[%s561 + $0x30] sm:$0xf]
        %v603 = vld [vmem:[%s561 + $0x34] sm:$0xf]
        %v604 = vld [vmem:[%s561 + $0x38] sm:$0xf]
        %v605 = vld [vmem:[%s561 + $0x3c] sm:$0xf]
        %v606 = vld [vmem:[%s561 + $0x40] sm:$0xf]
        %v607 = vld [vmem:[%s561 + $0x44] sm:$0xf]
        %v608 = vld [vmem:[%s561 + $0x48] sm:$0xf]
        %v609 = vld [vmem:[%s561 + $0x4c] sm:$0xf]
        %v610 = vld [vmem:[%s561 + $0x50] sm:$0xf]
        %v611 = vld [vmem:[%s561 + $0x54] sm:$0xf]
        %v612 = vld [vmem:[%s561 + $0x58] sm:$0xf]
        %v613 = vld [vmem:[%s561 + $0x5c] sm:$0xf]
        %v614 = vld [vmem:[%s561 + $0x60] sm:$0xf]
        %v615 = vld [vmem:[%s561 + $0x64] sm:$0xf]
        %v616 = vld [vmem:[%s561 + $0x68] sm:$0xf]
        %v617 = vld [vmem:[%s561 + $0x6c] sm:$0xf]
        %v618 = vld [vmem:[%s561 + $0x70] sm:$0xf]
        %v619 = vld [vmem:[%s561 + $0x74] sm:$0xf]
        %v620 = vld [vmem:[%s561 + $0x78] sm:$0xf]
        %v621 = vld [vmem:[%s561 + $0x7c] sm:$0xf]
        %v622 = vld [vmem:[%s4] sm:$0xf]
        %v623 = vld [vmem:[%s4 + $0x4] sm:$0xf]
        %v624 = vld [vmem:[%s4 + $0x8] sm:$0xf]
        %v625 = vld [vmem:[%s4 + $0xc] sm:$0xf]
        %v658 = vunpack.c.l.b16 %v590
        %v659 = vunpack.c.l.b16 %v591
        %v660 = vunpack.c.l.b16 %v592
        %v661 = vunpack.c.l.b16 %v593
        %v662 = vunpack.c.l.b16 %v594
        %v663 = vunpack.c.l.b16 %v595
        %v664 = vunpack.c.l.b16 %v596
        %v665 = vunpack.c.l.b16 %v597
        %v666 = vunpack.c.l.b16 %v598
        %v667 = vunpack.c.l.b16 %v599
        %v668 = vunpack.c.l.b16 %v600
        %v669 = vunpack.c.l.b16 %v601
        %v670 = vunpack.c.l.b16 %v602
        %v671 = vunpack.c.l.b16 %v603
        %v672 = vunpack.c.l.b16 %v604
        %v673 = vunpack.c.l.b16 %v605
        %v674 = vunpack.c.l.b16 %v606
        %v675 = vunpack.c.l.b16 %v607
        %v676 = vunpack.c.l.b16 %v608
        %v677 = vunpack.c.l.b16 %v609
        %v678 = vunpack.c.l.b16 %v610
        %v679 = vunpack.c.l.b16 %v611
        %v680 = vunpack.c.l.b16 %v612
        %v681 = vunpack.c.l.b16 %v613
        %v682 = vunpack.c.l.b16 %v614
        %v683 = vunpack.c.l.b16 %v615
        %v684 = vunpack.c.l.b16 %v616
        %v685 = vunpack.c.l.b16 %v617
        %v686 = vunpack.c.l.b16 %v618
        %v687 = vunpack.c.l.b16 %v619
        %v688 = vunpack.c.l.b16 %v620
        %v689 = vunpack.c.l.b16 %v621
        %v690 = vpack.c.b16 %v659, %v658
        %v691 = vpack.c.b16 %v661, %v660
        %v692 = vpack.c.b16 %v663, %v662
        %v693 = vpack.c.b16 %v665, %v664
        %v694 = vpack.c.b16 %v667, %v666
        %v695 = vpack.c.b16 %v669, %v668
        %v696 = vpack.c.b16 %v671, %v670
        %v697 = vpack.c.b16 %v673, %v672
        %v698 = vpack.c.b16 %v675, %v674
        %v699 = vpack.c.b16 %v677, %v676
        %v700 = vpack.c.b16 %v679, %v678
        %v701 = vpack.c.b16 %v681, %v680
        %v702 = vpack.c.b16 %v683, %v682
        %v703 = vpack.c.b16 %v685, %v684
        %v704 = vpack.c.b16 %v687, %v686
        %v705 = vpack.c.b16 %v689, %v688
        %v710 = vunpack.c.l.b16 %v622
        %v711 = vunpack.c.l.b16 %v623
        %v712 = vunpack.c.l.b16 %v624
        %v713 = vunpack.c.l.b16 %v625
        %v714 = vpack.c.b16 %v711, %v710
        %v715 = vpack.c.b16 %v713, %v712
        %vm718 = vcmask 261120
        %v720 = vsel %vm718, %v690, 0
        %v723 = vsel %vm718, %v691, 0
        %v726 = vsel %vm718, %v692, 0
        %v729 = vsel %vm718, %v693, 0
        %v732 = vsel %vm718, %v694, 0
        %v735 = vsel %vm718, %v695, 0
        %v738 = vsel %vm718, %v696, 0
        %v741 = vsel %vm718, %v697, 0
        %v744 = vsel %vm718, %v698, 0
        %v747 = vsel %vm718, %v699, 0
        %v750 = vsel %vm718, %v700, 0
        %v753 = vsel %vm718, %v701, 0
        %v756 = vsel %vm718, %v702, 0
        %v759 = vsel %vm718, %v703, 0
        %v762 = vsel %vm718, %v704, 0
        %v765 = vsel %vm718, %v705, 0
        %767 = vmatprep.subr.bf16.mxu0 0
        %768 = vmatpush1.bf16.msra.mxu0 %v714
        %769 = vmatprep.subr.bf16.mxu0 0
        %770 = vmatpush1.bf16.msra.mxu0 %v715
        %771 = vmatprep.subr.bf16.mxu0 0
        %772 = vmatpush1.bf16.msra.mxu0 0
        %773 = vmatprep.subr.bf16.mxu0 0
        %774 = vmatpush1.bf16.msra.mxu0 0
        %775 = vmatprep.subr.bf16.mxu0 0
        %776 = vmatpush1.bf16.msra.mxu0 0
        %777 = vmatprep.subr.bf16.mxu0 0
        %778 = vmatpush1.bf16.msra.mxu0 0
        %779 = vmatprep.subr.bf16.mxu0 0
        %780 = vmatpush1.bf16.msra.mxu0 0
        %781 = vmatprep.subr.bf16.mxu0 0
        %782 = vmatpush1.bf16.msra.mxu0 0
        %783 = vmatprep.subr.bf16.mxu0 0
        %784 = vmatpush1.bf16.msra.mxu0 0
        %785 = vmatprep.subr.bf16.mxu0 0
        %786 = vmatpush1.bf16.msra.mxu0 0
        %787 = vmatprep.subr.bf16.mxu0 0
        %788 = vmatpush1.bf16.msra.mxu0 0
        %789 = vmatprep.subr.bf16.mxu0 0
        %790 = vmatpush1.bf16.msra.mxu0 0
        %791 = vmatprep.subr.bf16.mxu0 0
        %792 = vmatpush1.bf16.msra.mxu0 0
        %793 = vmatprep.subr.bf16.mxu0 0
        %794 = vmatpush1.bf16.msra.mxu0 0
        %795 = vmatprep.subr.bf16.mxu0 0
        %796 = vmatpush1.bf16.msra.mxu0 0
        %797 = vmatprep.subr.bf16.mxu0 0
        %798 = vmatpush1.bf16.msra.mxu0 0
        %799 = vmatprep.mubr.bf16.mxu0 0
        %800 = vmatmul.mubr.bf16.gmra.mrb[0].mxu0 %v720
        %v801 = vpop.f32.mrb[0].mxu0
        %v802 = vadd.f32 0.0, %v801
        %v803 = vpop.f32.mrb[0].mxu0
        %v804 = vpop.f32.mrb[0].mxu0
        %v805 = vadd.f32 0.0, %v804
        %v806 = vpop.f32.mrb[0].mxu0
        %807 = vmatprep.mubr.bf16.mxu0 0
        %808 = vmatmul.mubr.bf16.gmra.mrb[0].mxu0 %v723
        %v809 = vpop.f32.mrb[0].mxu0
        %v810 = vadd.f32 0.0, %v809
        %v811 = vpop.f32.mrb[0].mxu0
        %v812 = vpop.f32.mrb[0].mxu0
        %v813 = vadd.f32 0.0, %v812
        %v814 = vpop.f32.mrb[0].mxu0
        %815 = vmatprep.mubr.bf16.mxu0 0
        %816 = vmatmul.mubr.bf16.gmra.mrb[0].mxu0 %v726
        %v817 = vpop.f32.mrb[0].mxu0
        %v818 = vadd.f32 0.0, %v817
        %v819 = vpop.f32.mrb[0].mxu0
        %v820 = vpop.f32.mrb[0].mxu0
        %v821 = vadd.f32 0.0, %v820
        %v822 = vpop.f32.mrb[0].mxu0
        %823 = vmatprep.mubr.bf16.mxu0 0
        %824 = vmatmul.mubr.bf16.gmra.mrb[0].mxu0 %v729
        %v825 = vpop.f32.mrb[0].mxu0
        %v826 = vadd.f32 0.0, %v825
        %v827 = vpop.f32.mrb[0].mxu0
        %v828 = vpop.f32.mrb[0].mxu0
        %v829 = vadd.f32 0.0, %v828
        %v830 = vpop.f32.mrb[0].mxu0
        %831 = vmatprep.mubr.bf16.mxu0 0
        %832 = vmatmul.mubr.bf16.gmra.mrb[0].mxu0 %v732
        %v833 = vpop.f32.mrb[0].mxu0
        %v834 = vadd.f32 0.0, %v833
        %v835 = vpop.f32.mrb[0].mxu0
        %v836 = vpop.f32.mrb[0].mxu0
        %v837 = vadd.f32 0.0, %v836
        %v838 = vpop.f32.mrb[0].mxu0
        %839 = vmatprep.mubr.bf16.mxu0 0
        %840 = vmatmul.mubr.bf16.gmra.mrb[0].mxu0 %v735
        %v841 = vpop.f32.mrb[0].mxu0
        %v842 = vadd.f32 0.0, %v841
        %v843 = vpop.f32.mrb[0].mxu0
        %v844 = vpop.f32.mrb[0].mxu0
        %v845 = vadd.f32 0.0, %v844
        %v846 = vpop.f32.mrb[0].mxu0
        %847 = vmatprep.mubr.bf16.mxu0 0
        %848 = vmatmul.mubr.bf16.gmra.mrb[0].mxu0 %v738
        %v849 = vpop.f32.mrb[0].mxu0
        %v850 = vadd.f32 0.0, %v849
        %v851 = vpop.f32.mrb[0].mxu0
        %v852 = vpop.f32.mrb[0].mxu0
        %v853 = vadd.f32 0.0, %v852
        %v854 = vpop.f32.mrb[0].mxu0
        %855 = vmatprep.mubr.bf16.mxu0 0
        %856 = vmatmul.mubr.bf16.gmra.mrb[0].mxu0 %v741
        %v857 = vpop.f32.mrb[0].mxu0
        %v858 = vadd.f32 0.0, %v857
        %v859 = vpop.f32.mrb[0].mxu0
        %v860 = vpop.f32.mrb[0].mxu0
        %v861 = vadd.f32 0.0, %v860
        %v862 = vpop.f32.mrb[0].mxu0
        %863 = vmatprep.mubr.bf16.mxu0 0
        %864 = vmatmul.mubr.bf16.gmra.mrb[0].mxu0 %v744
        %v865 = vpop.f32.mrb[0].mxu0
        %v866 = vadd.f32 0.0, %v865
        %v867 = vpop.f32.mrb[0].mxu0
        %v868 = vpop.f32.mrb[0].mxu0
        %v869 = vadd.f32 0.0, %v868
        %v870 = vpop.f32.mrb[0].mxu0
        %871 = vmatprep.mubr.bf16.mxu0 0
        %872 = vmatmul.mubr.bf16.gmra.mrb[0].mxu0 %v747
        %v873 = vpop.f32.mrb[0].mxu0
        %v874 = vadd.f32 0.0, %v873
        %v875 = vpop.f32.mrb[0].mxu0
        %v876 = vpop.f32.mrb[0].mxu0
        %v877 = vadd.f32 0.0, %v876
        %v878 = vpop.f32.mrb[0].mxu0
        %879 = vmatprep.mubr.bf16.mxu0 0
        %880 = vmatmul.mubr.bf16.gmra.mrb[0].mxu0 %v750
        %v881 = vpop.f32.mrb[0].mxu0
        %v882 = vadd.f32 0.0, %v881
        %v883 = vpop.f32.mrb[0].mxu0
        %v884 = vpop.f32.mrb[0].mxu0
        %v885 = vadd.f32 0.0, %v884
        %v886 = vpop.f32.mrb[0].mxu0
        %887 = vmatprep.mubr.bf16.mxu0 0
        %888 = vmatmul.mubr.bf16.gmra.mrb[0].mxu0 %v753
        %v889 = vpop.f32.mrb[0].mxu0
        %v890 = vadd.f32 0.0, %v889
        %v891 = vpop.f32.mrb[0].mxu0
        %v892 = vpop.f32.mrb[0].mxu0
        %v893 = vadd.f32 0.0, %v892
        %v894 = vpop.f32.mrb[0].mxu0
        %895 = vmatprep.mubr.bf16.mxu0 0
        %896 = vmatmul.mubr.bf16.gmra.mrb[0].mxu0 %v756
        %v897 = vpop.f32.mrb[0].mxu0
        %v898 = vadd.f32 0.0, %v897
        %v899 = vpop.f32.mrb[0].mxu0
        %v900 = vpop.f32.mrb[0].mxu0
        %v901 = vadd.f32 0.0, %v900
        %v902 = vpop.f32.mrb[0].mxu0
        %903 = vmatprep.mubr.bf16.mxu0 0
        %904 = vmatmul.mubr.bf16.gmra.mrb[0].mxu0 %v759
        %v905 = vpop.f32.mrb[0].mxu0
        %v906 = vadd.f32 0.0, %v905
        %v907 = vpop.f32.mrb[0].mxu0
        %v908 = vpop.f32.mrb[0].mxu0
        %v909 = vadd.f32 0.0, %v908
        %v910 = vpop.f32.mrb[0].mxu0
        %911 = vmatprep.mubr.bf16.mxu0 0
        %912 = vmatmul.mubr.bf16.gmra.mrb[0].mxu0 %v762
        %v913 = vpop.f32.mrb[0].mxu0
        %v914 = vadd.f32 0.0, %v913
        %v915 = vpop.f32.mrb[0].mxu0
        %v916 = vpop.f32.mrb[0].mxu0
        %v917 = vadd.f32 0.0, %v916
        %v918 = vpop.f32.mrb[0].mxu0
        %919 = vmatprep.mubr.bf16.mxu0 0
        %920 = vmatmul.mubr.bf16.gmra.mrb[0].mxu0 %v765
        %v921 = vpop.f32.mrb[0].mxu0
        %v922 = vadd.f32 0.0, %v921
        %v923 = vpop.f32.mrb[0].mxu0
        %v924 = vpop.f32.mrb[0].mxu0
        %v925 = vadd.f32 0.0, %v924
        %v926 = vpop.f32.mrb[0].mxu0
        %927 = vdwg.mxu0
        %v928 = vld [vmem:[%s572] sm:$0xff]
        %v929 = vld [vmem:[%s572 + $0x8] sm:$0xf]
        %v930 = vld [vmem:[%s572 + $0xc] sm:$0xff]
        %v931 = vld [vmem:[%s572 + $0x14] sm:$0xf]
        %v932 = vld [vmem:[%s572 + $0x18] sm:$0xff]
        %v933 = vld [vmem:[%s572 + $0x20] sm:$0xf]
        %v934 = vld [vmem:[%s572 + $0x24] sm:$0xff]
        %v935 = vld [vmem:[%s572 + $0x2c] sm:$0xf]
        %v936 = vld [vmem:[%s572 + $0x30] sm:$0xff]
        %v937 = vld [vmem:[%s572 + $0x38] sm:$0xf]
        %v938 = vld [vmem:[%s572 + $0x3c] sm:$0xff]
        %v939 = vld [vmem:[%s572 + $0x44] sm:$0xf]
        %v940 = vld [vmem:[%s572 + $0x48] sm:$0xff]
        %v941 = vld [vmem:[%s572 + $0x50] sm:$0xf]
        %v942 = vld [vmem:[%s572 + $0x54] sm:$0xff]
        %v943 = vld [vmem:[%s572 + $0x5c] sm:$0xf]
        %v944 = vld [vmem:[%s572 + $0x60] sm:$0xff]
        %v945 = vld [vmem:[%s572 + $0x68] sm:$0xf]
        %v946 = vld [vmem:[%s572 + $0x6c] sm:$0xff]
        %v947 = vld [vmem:[%s572 + $0x74] sm:$0xf]
        %v948 = vld [vmem:[%s572 + $0x78] sm:$0xff]
        %v949 = vld [vmem:[%s572 + $0x80] sm:$0xf]
        %v950 = vld [vmem:[%s572 + $0x84] sm:$0xff]
        %v951 = vld [vmem:[%s572 + $0x8c] sm:$0xf]
        %v952 = vld [vmem:[%s572 + $0x90] sm:$0xff]
        %v953 = vld [vmem:[%s572 + $0x98] sm:$0xf]
        %v954 = vld [vmem:[%s572 + $0x9c] sm:$0xff]
        %v955 = vld [vmem:[%s572 + $0xa4] sm:$0xf]
        %v956 = vld [vmem:[%s572 + $0xa8] sm:$0xff]
        %v957 = vld [vmem:[%s572 + $0xb0] sm:$0xf]
        %v958 = vld [vmem:[%s572 + $0xb4] sm:$0xff]
        %v959 = vld [vmem:[%s572 + $0xbc] sm:$0xf]
        %v960 = vld [vmem:[%s572 + $0xc0] sm:$0xff]
        %v961 = vld [vmem:[%s572 + $0xc8] sm:$0xf]
        %v962 = vld [vmem:[%s572 + $0xcc] sm:$0xff]
        %v963 = vld [vmem:[%s572 + $0xd4] sm:$0xf]
        %v964 = vld [vmem:[%s572 + $0xd8] sm:$0xff]
        %v965 = vld [vmem:[%s572 + $0xe0] sm:$0xf]
        %v966 = vld [vmem:[%s572 + $0xe4] sm:$0xff]
        %v967 = vld [vmem:[%s572 + $0xec] sm:$0xf]
        %v968 = vld [vmem:[%s572 + $0xf0] sm:$0xff]
        %v969 = vld [vmem:[%s572 + $0xf8] sm:$0xf]
        %v970 = vld [vmem:[%s572 + $0xfc] sm:$0xff]
        %v971 = vld [vmem:[%s572 + $0x104] sm:$0xf]
        %v972 = vld [vmem:[%s572 + $0x108] sm:$0xff]
        %v973 = vld [vmem:[%s572 + $0x110] sm:$0xf]
        %v974 = vld [vmem:[%s572 + $0x114] sm:$0xff]
        %v975 = vld [vmem:[%s572 + $0x11c] sm:$0xf]
        %v976 = vld [vmem:[%s572 + $0x120] sm:$0xff]
        %v977 = vld [vmem:[%s572 + $0x128] sm:$0xf]
        %v978 = vld [vmem:[%s572 + $0x12c] sm:$0xff]
        %v979 = vld [vmem:[%s572 + $0x134] sm:$0xf]
        %v980 = vld [vmem:[%s572 + $0x138] sm:$0xff]
        %v981 = vld [vmem:[%s572 + $0x140] sm:$0xf]
        %v982 = vld [vmem:[%s572 + $0x144] sm:$0xff]
        %v983 = vld [vmem:[%s572 + $0x14c] sm:$0xf]
        %v984 = vld [vmem:[%s572 + $0x150] sm:$0xff]
        %v985 = vld [vmem:[%s572 + $0x158] sm:$0xf]
        %v986 = vld [vmem:[%s572 + $0x15c] sm:$0xff]
        %v987 = vld [vmem:[%s572 + $0x164] sm:$0xf]
        %v988 = vld [vmem:[%s572 + $0x168] sm:$0xff]
        %v989 = vld [vmem:[%s572 + $0x170] sm:$0xf]
        %v990 = vld [vmem:[%s572 + $0x174] sm:$0xff]
        %v991 = vld [vmem:[%s572 + $0x17c] sm:$0xf]
        %v992 = vld [vmem:[%s5] sm:$0xf]
        %v993 = vld [vmem:[%s5 + $0x4] sm:$0xf]
        %v994 = vld [vmem:[%s5 + $0x8] sm:$0xf]
        %v995 = vld [vmem:[%s5 + $0xc] sm:$0xf]
        %v996 = vld [vmem:[%s5 + $0x10] sm:$0xf]
        %v997 = vld [vmem:[%s5 + $0x14] sm:$0xf]
        %v998 = vld [vmem:[%s5 + $0x18] sm:$0xf]
        %v999 = vld [vmem:[%s5 + $0x1c] sm:$0xf]
        %v1000 = vld [vmem:[%s5 + $0x20] sm:$0xf]
        %v1001 = vld [vmem:[%s5 + $0x24] sm:$0xf]
        %v1002 = vld [vmem:[%s5 + $0x28] sm:$0xf]
        %v1003 = vld [vmem:[%s5 + $0x2c] sm:$0xf]
        %v1004 = vld [vmem:[%s5 + $0x30] sm:$0xf]
        %v1005 = vld [vmem:[%s5 + $0x34] sm:$0xf]
        %v1006 = vld [vmem:[%s5 + $0x38] sm:$0xf]
        %v1007 = vld [vmem:[%s5 + $0x3c] sm:$0xf]
        %v1008 = vld [vmem:[%s5 + $0x40] sm:$0xf]
        %v1009 = vld [vmem:[%s5 + $0x44] sm:$0xf]
        %v1010 = vld [vmem:[%s5 + $0x48] sm:$0xf]
        %v1011 = vld [vmem:[%s5 + $0x4c] sm:$0xf]
        %v1012 = vld [vmem:[%s5 + $0x50] sm:$0xf]
        %v1013 = vld [vmem:[%s5 + $0x54] sm:$0xf]
        %v1014 = vld [vmem:[%s5 + $0x58] sm:$0xf]
        %v1015 = vld [vmem:[%s5 + $0x5c] sm:$0xf]
        %v1016 = vld [vmem:[%s5 + $0x60] sm:$0xf]
        %v1017 = vld [vmem:[%s5 + $0x64] sm:$0xf]
        %v1018 = vld [vmem:[%s5 + $0x68] sm:$0xf]
        %v1019 = vld [vmem:[%s5 + $0x6c] sm:$0xf]
        %v1020 = vld [vmem:[%s5 + $0x70] sm:$0xf]
        %v1021 = vld [vmem:[%s5 + $0x74] sm:$0xf]
        %v1022 = vld [vmem:[%s5 + $0x78] sm:$0xf]
        %v1023 = vld [vmem:[%s5 + $0x7c] sm:$0xf]
        %v1024 = vld [vmem:[%s5 + $0x80] sm:$0xf]
        %v1025 = vld [vmem:[%s5 + $0x84] sm:$0xf]
        %v1026 = vld [vmem:[%s5 + $0x88] sm:$0xf]
        %v1027 = vld [vmem:[%s5 + $0x8c] sm:$0xf]
        %v1092 = vunpack.c.l.b16 %v928
        %v1093 = vunpack.c.h.b16 %v928
        %v1094 = vunpack.c.l.b16 %v929
        %v1095 = vunpack.c.l.b16 %v930
        %v1096 = vunpack.c.h.b16 %v930
        %v1097 = vunpack.c.l.b16 %v931
        %v1098 = vunpack.c.l.b16 %v932
        %v1099 = vunpack.c.h.b16 %v932
        %v1100 = vunpack.c.l.b16 %v933
        %v1101 = vunpack.c.l.b16 %v934
        %v1102 = vunpack.c.h.b16 %v934
        %v1103 = vunpack.c.l.b16 %v935
        %v1104 = vunpack.c.l.b16 %v936
        %v1105 = vunpack.c.h.b16 %v936
        %v1106 = vunpack.c.l.b16 %v937
        %v1107 = vunpack.c.l.b16 %v938
        %v1108 = vunpack.c.h.b16 %v938
        %v1109 = vunpack.c.l.b16 %v939
        %v1110 = vunpack.c.l.b16 %v940
        %v1111 = vunpack.c.h.b16 %v940
        %v1112 = vunpack.c.l.b16 %v941
        %v1113 = vunpack.c.l.b16 %v942
        %v1114 = vunpack.c.h.b16 %v942
        %v1115 = vunpack.c.l.b16 %v943
        %v1116 = vunpack.c.l.b16 %v944
        %v1117 = vunpack.c.h.b16 %v944
        %v1118 = vunpack.c.l.b16 %v945
        %v1119 = vunpack.c.l.b16 %v946
        %v1120 = vunpack.c.h.b16 %v946
        %v1121 = vunpack.c.l.b16 %v947
        %v1122 = vunpack.c.l.b16 %v948
        %v1123 = vunpack.c.h.b16 %v948
        %v1124 = vunpack.c.l.b16 %v949
        %v1125 = vunpack.c.l.b16 %v950
        %v1126 = vunpack.c.h.b16 %v950
        %v1127 = vunpack.c.l.b16 %v951
        %v1128 = vunpack.c.l.b16 %v952
        %v1129 = vunpack.c.h.b16 %v952
        %v1130 = vunpack.c.l.b16 %v953
        %v1131 = vunpack.c.l.b16 %v954
        %v1132 = vunpack.c.h.b16 %v954
        %v1133 = vunpack.c.l.b16 %v955
        %v1134 = vunpack.c.l.b16 %v956
        %v1135 = vunpack.c.h.b16 %v956
        %v1136 = vunpack.c.l.b16 %v957
        %v1137 = vunpack.c.l.b16 %v958
        %v1138 = vunpack.c.h.b16 %v958
        %v1139 = vunpack.c.l.b16 %v959
        %v1140 = vunpack.c.l.b16 %v960
        %v1141 = vunpack.c.h.b16 %v960
        %v1142 = vunpack.c.l.b16 %v961
        %v1143 = vunpack.c.l.b16 %v962
        %v1144 = vunpack.c.h.b16 %v962
        %v1145 = vunpack.c.l.b16 %v963
        %v1146 = vunpack.c.l.b16 %v964
        %v1147 = vunpack.c.h.b16 %v964
        %v1148 = vunpack.c.l.b16 %v965
        %v1149 = vunpack.c.l.b16 %v966
        %v1150 = vunpack.c.h.b16 %v966
        %v1151 = vunpack.c.l.b16 %v967
        %v1152 = vunpack.c.l.b16 %v968
        %v1153 = vunpack.c.h.b16 %v968
        %v1154 = vunpack.c.l.b16 %v969
        %v1155 = vunpack.c.l.b16 %v970
        %v1156 = vunpack.c.h.b16 %v970
        %v1157 = vunpack.c.l.b16 %v971
        %v1158 = vunpack.c.l.b16 %v972
        %v1159 = vunpack.c.h.b16 %v972
        %v1160 = vunpack.c.l.b16 %v973
        %v1161 = vunpack.c.l.b16 %v974
        %v1162 = vunpack.c.h.b16 %v974
        %v1163 = vunpack.c.l.b16 %v975
        %v1164 = vunpack.c.l.b16 %v976
        %v1165 = vunpack.c.h.b16 %v976
        %v1166 = vunpack.c.l.b16 %v977
        %v1167 = vunpack.c.l.b16 %v978
        %v1168 = vunpack.c.h.b16 %v978
        %v1169 = vunpack.c.l.b16 %v979
        %v1170 = vunpack.c.l.b16 %v980
        %v1171 = vunpack.c.h.b16 %v980
        %v1172 = vunpack.c.l.b16 %v981
        %v1173 = vunpack.c.l.b16 %v982
        %v1174 = vunpack.c.h.b16 %v982
        %v1175 = vunpack.c.l.b16 %v983
        %v1176 = vunpack.c.l.b16 %v984
        %v1177 = vunpack.c.h.b16 %v984
        %v1178 = vunpack.c.l.b16 %v985
        %v1179 = vunpack.c.l.b16 %v986
        %v1180 = vunpack.c.h.b16 %v986
        %v1181 = vunpack.c.l.b16 %v987
        %v1182 = vunpack.c.l.b16 %v988
        %v1183 = vunpack.c.h.b16 %v988
        %v1184 = vunpack.c.l.b16 %v989
        %v1185 = vunpack.c.l.b16 %v990
        %v1186 = vunpack.c.h.b16 %v990
        %v1187 = vunpack.c.l.b16 %v991
        %v1188 = vpack.c.b16 %v1095, %v1092
        %v1189 = vpack.c.b16 %v1096, %v1093
        %v1190 = vpack.c.b16 %v1097, %v1094
        %v1191 = vpack.c.b16 %v1101, %v1098
        %v1192 = vpack.c.b16 %v1102, %v1099
        %v1193 = vpack.c.b16 %v1103, %v1100
        %v1194 = vpack.c.b16 %v1107, %v1104
        %v1195 = vpack.c.b16 %v1108, %v1105
        %v1196 = vpack.c.b16 %v1109, %v1106
        %v1197 = vpack.c.b16 %v1113, %v1110
        %v1198 = vpack.c.b16 %v1114, %v1111
        %v1199 = vpack.c.b16 %v1115, %v1112
        %v1200 = vpack.c.b16 %v1119, %v1116
        %v1201 = vpack.c.b16 %v1120, %v1117
        %v1202 = vpack.c.b16 %v1121, %v1118
        %v1203 = vpack.c.b16 %v1125, %v1122
        %v1204 = vpack.c.b16 %v1126, %v1123
        %v1205 = vpack.c.b16 %v1127, %v1124
        %v1206 = vpack.c.b16 %v1131, %v1128
        %v1207 = vpack.c.b16 %v1132, %v1129
        %v1208 = vpack.c.b16 %v1133, %v1130
        %v1209 = vpack.c.b16 %v1137, %v1134
        %v1210 = vpack.c.b16 %v1138, %v1135
        %v1211 = vpack.c.b16 %v1139, %v1136
        %v1212 = vpack.c.b16 %v1143, %v1140
        %v1213 = vpack.c.b16 %v1144, %v1141
        %v1214 = vpack.c.b16 %v1145, %v1142
        %v1215 = vpack.c.b16 %v1149, %v1146
        %v1216 = vpack.c.b16 %v1150, %v1147
        %v1217 = vpack.c.b16 %v1151, %v1148
        %v1218 = vpack.c.b16 %v1155, %v1152
        %v1219 = vpack.c.b16 %v1156, %v1153
        %v1220 = vpack.c.b16 %v1157, %v1154
        %v1221 = vpack.c.b16 %v1161, %v1158
        %v1222 = vpack.c.b16 %v1162, %v1159
        %v1223 = vpack.c.b16 %v1163, %v1160
        %v1224 = vpack.c.b16 %v1167, %v1164
        %v1225 = vpack.c.b16 %v1168, %v1165
        %v1226 = vpack.c.b16 %v1169, %v1166
        %v1227 = vpack.c.b16 %v1173, %v1170
        %v1228 = vpack.c.b16 %v1174, %v1171
        %v1229 = vpack.c.b16 %v1175, %v1172
        %v1230 = vpack.c.b16 %v1179, %v1176
        %v1231 = vpack.c.b16 %v1180, %v1177
        %v1232 = vpack.c.b16 %v1181, %v1178
        %v1233 = vpack.c.b16 %v1185, %v1182
        %v1234 = vpack.c.b16 %v1186, %v1183
        %v1235 = vpack.c.b16 %v1187, %v1184
        %v1304 = vunpack.c.l.b16 %v992
        %v1305 = vunpack.c.l.b16 %v993
        %v1306 = vunpack.c.l.b16 %v994
        %v1307 = vunpack.c.l.b16 %v995
        %v1308 = vunpack.c.l.b16 %v996
        %v1309 = vunpack.c.l.b16 %v997
        %v1310 = vunpack.c.l.b16 %v998
        %v1311 = vunpack.c.l.b16 %v999
        %v1312 = vunpack.c.l.b16 %v1000
        %v1313 = vunpack.c.l.b16 %v1001
        %v1314 = vunpack.c.l.b16 %v1002
        %v1315 = vunpack.c.l.b16 %v1003
        %v1316 = vunpack.c.l.b16 %v1004
        %v1317 = vunpack.c.l.b16 %v1005
        %v1318 = vunpack.c.l.b16 %v1006
        %v1319 = vunpack.c.l.b16 %v1007
        %v1320 = vunpack.c.l.b16 %v1008
        %v1321 = vunpack.c.l.b16 %v1009
        %v1322 = vunpack.c.l.b16 %v1010
        %v1323 = vunpack.c.l.b16 %v1011
        %v1324 = vunpack.c.l.b16 %v1012
        %v1325 = vunpack.c.l.b16 %v1013
        %v1326 = vunpack.c.l.b16 %v1014
        %v1327 = vunpack.c.l.b16 %v1015
        %v1328 = vunpack.c.l.b16 %v1016
        %v1329 = vunpack.c.l.b16 %v1017
        %v1330 = vunpack.c.l.b16 %v1018
        %v1331 = vunpack.c.l.b16 %v1019
        %v1332 = vunpack.c.l.b16 %v1020
        %v1333 = vunpack.c.l.b16 %v1021
        %v1334 = vunpack.c.l.b16 %v1022
        %v1335 = vunpack.c.l.b16 %v1023
        %v1336 = vunpack.c.l.b16 %v1024
        %v1337 = vunpack.c.l.b16 %v1025
        %v1338 = vunpack.c.l.b16 %v1026
        %v1339 = vunpack.c.l.b16 %v1027
        %v1340 = vpack.c.b16 %v1305, %v1304
        %v1341 = vpack.c.b16 %v1307, %v1306
        %v1342 = vpack.c.b16 %v1309, %v1308
        %v1343 = vpack.c.b16 %v1311, %v1310
        %v1344 = vpack.c.b16 %v1313, %v1312
        %v1345 = vpack.c.b16 %v1315, %v1314
        %v1346 = vpack.c.b16 %v1317, %v1316
        %v1347 = vpack.c.b16 %v1319, %v1318
        %v1348 = vpack.c.b16 %v1321, %v1320
        %v1349 = vpack.c.b16 %v1323, %v1322
        %v1350 = vpack.c.b16 %v1325, %v1324
        %v1351 = vpack.c.b16 %v1327, %v1326
        %v1352 = vpack.c.b16 %v1329, %v1328
        %v1353 = vpack.c.b16 %v1331, %v1330
        %v1354 = vpack.c.b16 %v1333, %v1332
        %v1355 = vpack.c.b16 %v1335, %v1334
        %v1356 = vpack.c.b16 %v1337, %v1336
        %v1357 = vpack.c.b16 %v1339, %v1338
        %v1377 = vsel %vm718, %v1190, 0
        %v1380 = vsel %vm718, %v1193, 0
        %v1383 = vsel %vm718, %v1196, 0
        %v1386 = vsel %vm718, %v1199, 0
        %v1389 = vsel %vm718, %v1202, 0
        %v1392 = vsel %vm718, %v1205, 0
        %v1395 = vsel %vm718, %v1208, 0
        %v1398 = vsel %vm718, %v1211, 0
        %v1401 = vsel %vm718, %v1214, 0
        %v1404 = vsel %vm718, %v1217, 0
        %v1407 = vsel %vm718, %v1220, 0
        %v1410 = vsel %vm718, %v1223, 0
        %v1413 = vsel %vm718, %v1226, 0
        %v1416 = vsel %vm718, %v1229, 0
        %v1419 = vsel %vm718, %v1232, 0
        %v1422 = vsel %vm718, %v1235, 0
        %1424 = vmatprep.subr.bf16.mxu0 0
        %1425 = vmatpush1.bf16.msra.mxu0 %v1340
        %1426 = vmatprep.subr.bf16.mxu0 0
        %1427 = vmatpush1.bf16.msra.mxu0 %v1341
        %1428 = vmatprep.subr.bf16.mxu0 0
        %1429 = vmatpush1.bf16.msra.mxu0 %v1342
        %1430 = vmatprep.subr.bf16.mxu0 0
        %1431 = vmatpush1.bf16.msra.mxu0 %v1343
        %1432 = vmatprep.subr.bf16.mxu0 0
        %1433 = vmatpush1.bf16.msra.mxu0 %v1344
        %1434 = vmatprep.subr.bf16.mxu0 0
        %1435 = vmatpush1.bf16.msra.mxu0 %v1345
        %1436 = vmatprep.subr.bf16.mxu0 0
        %1437 = vmatpush1.bf16.msra.mxu0 %v1346
        %1438 = vmatprep.subr.bf16.mxu0 0
        %1439 = vmatpush1.bf16.msra.mxu0 %v1347
        %1440 = vmatprep.subr.bf16.mxu0 0
        %1441 = vmatpush1.bf16.msra.mxu0 %v1348
        %1442 = vmatprep.subr.bf16.mxu0 0
        %1443 = vmatpush1.bf16.msra.mxu0 %v1349
        %1444 = vmatprep.subr.bf16.mxu0 0
        %1445 = vmatpush1.bf16.msra.mxu0 %v1350
        %1446 = vmatprep.subr.bf16.mxu0 0
        %1447 = vmatpush1.bf16.msra.mxu0 %v1351
        %1448 = vmatprep.subr.bf16.mxu0 0
        %1449 = vmatpush1.bf16.msra.mxu0 %v1352
        %1450 = vmatprep.subr.bf16.mxu0 0
        %1451 = vmatpush1.bf16.msra.mxu0 %v1353
        %1452 = vmatprep.subr.bf16.mxu0 0
        %1453 = vmatpush1.bf16.msra.mxu0 %v1354
        %1454 = vmatprep.subr.bf16.mxu0 0
        %1455 = vmatpush1.bf16.msra.mxu0 %v1355
        %1456 = vmatprep.mubr.bf16.mxu0 %v1189
        %1457 = vmatmul.mubr.bf16.gmra.mrb[0].mxu0 %v1188
        %v1458 = vpop.f32.mrb[0].mxu0
        %v1459 = vadd.f32 0.0, %v1458
        %v1460 = vpop.f32.mrb[0].mxu0
        %v1461 = vpop.f32.mrb[0].mxu0
        %v1462 = vadd.f32 0.0, %v1461
        %v1463 = vpop.f32.mrb[0].mxu0
        %1464 = vmatprep.mubr.bf16.mxu0 %v1192
        %1465 = vmatmul.mubr.bf16.gmra.mrb[0].mxu0 %v1191
        %v1466 = vpop.f32.mrb[0].mxu0
        %v1467 = vadd.f32 0.0, %v1466
        %v1468 = vpop.f32.mrb[0].mxu0
        %v1469 = vpop.f32.mrb[0].mxu0
        %v1470 = vadd.f32 0.0, %v1469
        %v1471 = vpop.f32.mrb[0].mxu0
        %1472 = vmatprep.mubr.bf16.mxu0 %v1195
        %1473 = vmatmul.mubr.bf16.gmra.mrb[0].mxu0 %v1194
        %v1474 = vpop.f32.mrb[0].mxu0
        %v1475 = vadd.f32 0.0, %v1474
        %v1476 = vpop.f32.mrb[0].mxu0
        %v1477 = vpop.f32.mrb[0].mxu0
        %v1478 = vadd.f32 0.0, %v1477
        %v1479 = vpop.f32.mrb[0].mxu0
        %1480 = vmatprep.mubr.bf16.mxu0 %v1198
        %1481 = vmatmul.mubr.bf16.gmra.mrb[0].mxu0 %v1197
        %v1482 = vpop.f32.mrb[0].mxu0
        %v1483 = vadd.f32 0.0, %v1482
        %v1484 = vpop.f32.mrb[0].mxu0
        %v1485 = vpop.f32.mrb[0].mxu0
        %v1486 = vadd.f32 0.0, %v1485
        %v1487 = vpop.f32.mrb[0].mxu0
        %1488 = vmatprep.mubr.bf16.mxu0 %v1201
        %1489 = vmatmul.mubr.bf16.gmra.mrb[0].mxu0 %v1200
        %v1490 = vpop.f32.mrb[0].mxu0
        %v1491 = vadd.f32 0.0, %v1490
        %v1492 = vpop.f32.mrb[0].mxu0
        %v1493 = vpop.f32.mrb[0].mxu0
        %v1494 = vadd.f32 0.0, %v1493
        %v1495 = vpop.f32.mrb[0].mxu0
        %1496 = vmatprep.mubr.bf16.mxu0 %v1204
        %1497 = vmatmul.mubr.bf16.gmra.mrb[0].mxu0 %v1203
        %v1498 = vpop.f32.mrb[0].mxu0
        %v1499 = vadd.f32 0.0, %v1498
        %v1500 = vpop.f32.mrb[0].mxu0
        %v1501 = vpop.f32.mrb[0].mxu0
        %v1502 = vadd.f32 0.0, %v1501
        %v1503 = vpop.f32.mrb[0].mxu0
        %1504 = vmatprep.mubr.bf16.mxu0 %v1207
        %1505 = vmatmul.mubr.bf16.gmra.mrb[0].mxu0 %v1206
        %v1506 = vpop.f32.mrb[0].mxu0
        %v1507 = vadd.f32 0.0, %v1506
        %v1508 = vpop.f32.mrb[0].mxu0
        %v1509 = vpop.f32.mrb[0].mxu0
        %v1510 = vadd.f32 0.0, %v1509
        %v1511 = vpop.f32.mrb[0].mxu0
        %1512 = vmatprep.mubr.bf16.mxu0 %v1210
        %1513 = vmatmul.mubr.bf16.gmra.mrb[0].mxu0 %v1209
        %v1514 = vpop.f32.mrb[0].mxu0
        %v1515 = vadd.f32 0.0, %v1514
        %v1516 = vpop.f32.mrb[0].mxu0
        %v1517 = vpop.f32.mrb[0].mxu0
        %v1518 = vadd.f32 0.0, %v1517
        %v1519 = vpop.f32.mrb[0].mxu0
        %1520 = vmatprep.mubr.bf16.mxu0 %v1213
        %1521 = vmatmul.mubr.bf16.gmra.mrb[0].mxu0 %v1212
        %v1522 = vpop.f32.mrb[0].mxu0
        %v1523 = vadd.f32 0.0, %v1522
        %v1524 = vpop.f32.mrb[0].mxu0
        %v1525 = vpop.f32.mrb[0].mxu0
        %v1526 = vadd.f32 0.0, %v1525
        %v1527 = vpop.f32.mrb[0].mxu0
        %1528 = vmatprep.mubr.bf16.mxu0 %v1216
        %1529 = vmatmul.mubr.bf16.gmra.mrb[0].mxu0 %v1215
        %v1530 = vpop.f32.mrb[0].mxu0
        %v1531 = vadd.f32 0.0, %v1530
        %v1532 = vpop.f32.mrb[0].mxu0
        %v1533 = vpop.f32.mrb[0].mxu0
        %v1534 = vadd.f32 0.0, %v1533
        %v1535 = vpop.f32.mrb[0].mxu0
        %1536 = vmatprep.mubr.bf16.mxu0 %v1219
        %1537 = vmatmul.mubr.bf16.gmra.mrb[0].mxu0 %v1218
        %v1538 = vpop.f32.mrb[0].mxu0
        %v1539 = vadd.f32 0.0, %v1538
        %v1540 = vpop.f32.mrb[0].mxu0
        %v1541 = vpop.f32.mrb[0].mxu0
        %v1542 = vadd.f32 0.0, %v1541
        %v1543 = vpop.f32.mrb[0].mxu0
        %1544 = vmatprep.mubr.bf16.mxu0 %v1222
        %1545 = vmatmul.mubr.bf16.gmra.mrb[0].mxu0 %v1221
        %v1546 = vpop.f32.mrb[0].mxu0
        %v1547 = vadd.f32 0.0, %v1546
        %v1548 = vpop.f32.mrb[0].mxu0
        %v1549 = vpop.f32.mrb[0].mxu0
        %v1550 = vadd.f32 0.0, %v1549
        %v1551 = vpop.f32.mrb[0].mxu0
        %1552 = vmatprep.mubr.bf16.mxu0 %v1225
        %1553 = vmatmul.mubr.bf16.gmra.mrb[0].mxu0 %v1224
        %v1554 = vpop.f32.mrb[0].mxu0
        %v1555 = vadd.f32 0.0, %v1554
        %v1556 = vpop.f32.mrb[0].mxu0
        %v1557 = vpop.f32.mrb[0].mxu0
        %v1558 = vadd.f32 0.0, %v1557
        %v1559 = vpop.f32.mrb[0].mxu0
        %1560 = vmatprep.mubr.bf16.mxu0 %v1228
        %1561 = vmatmul.mubr.bf16.gmra.mrb[0].mxu0 %v1227
        %v1562 = vpop.f32.mrb[0].mxu0
        %v1563 = vadd.f32 0.0, %v1562
        %v1564 = vpop.f32.mrb[0].mxu0
        %v1565 = vpop.f32.mrb[0].mxu0
        %v1566 = vadd.f32 0.0, %v1565
        %v1567 = vpop.f32.mrb[0].mxu0
        %1568 = vmatprep.mubr.bf16.mxu0 %v1231
        %1569 = vmatmul.mubr.bf16.gmra.mrb[0].mxu0 %v1230
        %v1570 = vpop.f32.mrb[0].mxu0
        %v1571 = vadd.f32 0.0, %v1570
        %v1572 = vpop.f32.mrb[0].mxu0
        %v1573 = vpop.f32.mrb[0].mxu0
        %v1574 = vadd.f32 0.0, %v1573
        %v1575 = vpop.f32.mrb[0].mxu0
        %1576 = vmatprep.mubr.bf16.mxu0 %v1234
        %1577 = vmatmul.mubr.bf16.gmra.mrb[0].mxu0 %v1233
        %v1578 = vpop.f32.mrb[0].mxu0
        %v1579 = vadd.f32 0.0, %v1578
        %v1580 = vpop.f32.mrb[0].mxu0
        %v1581 = vpop.f32.mrb[0].mxu0
        %v1582 = vadd.f32 0.0, %v1581
        %v1583 = vpop.f32.mrb[0].mxu0
        %1584 = vdwg.mxu0
        %1585 = vmatprep.subr.bf16.mxu0 0
        %1586 = vmatpush1.bf16.msra.mxu0 %v1356
        %1587 = vmatprep.subr.bf16.mxu0 0
        %1588 = vmatpush1.bf16.msra.mxu0 %v1357
        %1589 = vmatprep.subr.bf16.mxu0 0
        %1590 = vmatpush1.bf16.msra.mxu0 0
        %1591 = vmatprep.subr.bf16.mxu0 0
        %1592 = vmatpush1.bf16.msra.mxu0 0
        %1593 = vmatprep.subr.bf16.mxu0 0
        %1594 = vmatpush1.bf16.msra.mxu0 0
        %1595 = vmatprep.subr.bf16.mxu0 0
        %1596 = vmatpush1.bf16.msra.mxu0 0
        %1597 = vmatprep.subr.bf16.mxu0 0
        %1598 = vmatpush1.bf16.msra.mxu0 0
        %1599 = vmatprep.subr.bf16.mxu0 0
        %1600 = vmatpush1.bf16.msra.mxu0 0
        %1601 = vmatprep.subr.bf16.mxu0 0
        %1602 = vmatpush1.bf16.msra.mxu0 0
        %1603 = vmatprep.subr.bf16.mxu0 0
        %1604 = vmatpush1.bf16.msra.mxu0 0
        %1605 = vmatprep.subr.bf16.mxu0 0
        %1606 = vmatpush1.bf16.msra.mxu0 0
        %1607 = vmatprep.subr.bf16.mxu0 0
        %1608 = vmatpush1.bf16.msra.mxu0 0
        %1609 = vmatprep.subr.bf16.mxu0 0
        %1610 = vmatpush1.bf16.msra.mxu0 0
        %1611 = vmatprep.subr.bf16.mxu0 0
        %1612 = vmatpush1.bf16.msra.mxu0 0
        %1613 = vmatprep.subr.bf16.mxu0 0
        %1614 = vmatpush1.bf16.msra.mxu0 0
        %1615 = vmatprep.subr.bf16.mxu0 0
        %1616 = vmatpush1.bf16.msra.mxu0 0
        %1617 = vmatprep.mubr.bf16.mxu0 0
        %1618 = vmatmul.mubr.bf16.gmra.mrb[0].mxu0 %v1377
        %v1619 = vpop.f32.mrb[0].mxu0
        %v1620 = vadd.f32 %v1459, %v1619
        %v1621 = vpop.f32.mrb[0].mxu0
        %v1622 = vpop.f32.mrb[0].mxu0
        %v1623 = vadd.f32 %v1462, %v1622
        %v1624 = vpop.f32.mrb[0].mxu0
        %1625 = vmatprep.mubr.bf16.mxu0 0
        %1626 = vmatmul.mubr.bf16.gmra.mrb[0].mxu0 %v1380
        %v1627 = vpop.f32.mrb[0].mxu0
        %v1628 = vadd.f32 %v1467, %v1627
        %v1629 = vpop.f32.mrb[0].mxu0
        %v1630 = vpop.f32.mrb[0].mxu0
        %v1631 = vadd.f32 %v1470, %v1630
        %v1632 = vpop.f32.mrb[0].mxu0
        %1633 = vmatprep.mubr.bf16.mxu0 0
        %1634 = vmatmul.mubr.bf16.gmra.mrb[0].mxu0 %v1383
        %v1635 = vpop.f32.mrb[0].mxu0
        %v1636 = vadd.f32 %v1475, %v1635
        %v1637 = vpop.f32.mrb[0].mxu0
        %v1638 = vpop.f32.mrb[0].mxu0
        %v1639 = vadd.f32 %v1478, %v1638
        %v1640 = vpop.f32.mrb[0].mxu0
        %1641 = vmatprep.mubr.bf16.mxu0 0
        %1642 = vmatmul.mubr.bf16.gmra.mrb[0].mxu0 %v1386
        %v1643 = vpop.f32.mrb[0].mxu0
        %v1644 = vadd.f32 %v1483, %v1643
        %v1645 = vpop.f32.mrb[0].mxu0
        %v1646 = vpop.f32.mrb[0].mxu0
        %v1647 = vadd.f32 %v1486, %v1646
        %v1648 = vpop.f32.mrb[0].mxu0
        %1649 = vmatprep.mubr.bf16.mxu0 0
        %1650 = vmatmul.mubr.bf16.gmra.mrb[0].mxu0 %v1389
        %v1651 = vpop.f32.mrb[0].mxu0
        %v1652 = vadd.f32 %v1491, %v1651
        %v1653 = vpop.f32.mrb[0].mxu0
        %v1654 = vpop.f32.mrb[0].mxu0
        %v1655 = vadd.f32 %v1494, %v1654
        %v1656 = vpop.f32.mrb[0].mxu0
        %1657 = vmatprep.mubr.bf16.mxu0 0
        %1658 = vmatmul.mubr.bf16.gmra.mrb[0].mxu0 %v1392
        %v1659 = vpop.f32.mrb[0].mxu0
        %v1660 = vadd.f32 %v1499, %v1659
        %v1661 = vpop.f32.mrb[0].mxu0
        %v1662 = vpop.f32.mrb[0].mxu0
        %v1663 = vadd.f32 %v1502, %v1662
        %v1664 = vpop.f32.mrb[0].mxu0
        %1665 = vmatprep.mubr.bf16.mxu0 0
        %1666 = vmatmul.mubr.bf16.gmra.mrb[0].mxu0 %v1395
        %v1667 = vpop.f32.mrb[0].mxu0
        %v1668 = vadd.f32 %v1507, %v1667
        %v1669 = vpop.f32.mrb[0].mxu0
        %v1670 = vpop.f32.mrb[0].mxu0
        %v1671 = vadd.f32 %v1510, %v1670
        %v1672 = vpop.f32.mrb[0].mxu0
        %1673 = vmatprep.mubr.bf16.mxu0 0
        %1674 = vmatmul.mubr.bf16.gmra.mrb[0].mxu0 %v1398
        %v1675 = vpop.f32.mrb[0].mxu0
        %v1676 = vadd.f32 %v1515, %v1675
        %v1677 = vpop.f32.mrb[0].mxu0
        %v1678 = vpop.f32.mrb[0].mxu0
        %v1679 = vadd.f32 %v1518, %v1678
        %v1680 = vpop.f32.mrb[0].mxu0
        %1681 = vmatprep.mubr.bf16.mxu0 0
        %1682 = vmatmul.mubr.bf16.gmra.mrb[0].mxu0 %v1401
        %v1683 = vpop.f32.mrb[0].mxu0
        %v1684 = vadd.f32 %v1523, %v1683
        %v1685 = vpop.f32.mrb[0].mxu0
        %v1686 = vpop.f32.mrb[0].mxu0
        %v1687 = vadd.f32 %v1526, %v1686
        %v1688 = vpop.f32.mrb[0].mxu0
        %1689 = vmatprep.mubr.bf16.mxu0 0
        %1690 = vmatmul.mubr.bf16.gmra.mrb[0].mxu0 %v1404
        %v1691 = vpop.f32.mrb[0].mxu0
        %v1692 = vadd.f32 %v1531, %v1691
        %v1693 = vpop.f32.mrb[0].mxu0
        %v1694 = vpop.f32.mrb[0].mxu0
        %v1695 = vadd.f32 %v1534, %v1694
        %v1696 = vpop.f32.mrb[0].mxu0
        %1697 = vmatprep.mubr.bf16.mxu0 0
        %1698 = vmatmul.mubr.bf16.gmra.mrb[0].mxu0 %v1407
        %v1699 = vpop.f32.mrb[0].mxu0
        %v1700 = vadd.f32 %v1539, %v1699
        %v1701 = vpop.f32.mrb[0].mxu0
        %v1702 = vpop.f32.mrb[0].mxu0
        %v1703 = vadd.f32 %v1542, %v1702
        %v1704 = vpop.f32.mrb[0].mxu0
        %1705 = vmatprep.mubr.bf16.mxu0 0
        %1706 = vmatmul.mubr.bf16.gmra.mrb[0].mxu0 %v1410
        %v1707 = vpop.f32.mrb[0].mxu0
        %v1708 = vadd.f32 %v1547, %v1707
        %v1709 = vpop.f32.mrb[0].mxu0
        %v1710 = vpop.f32.mrb[0].mxu0
        %v1711 = vadd.f32 %v1550, %v1710
        %v1712 = vpop.f32.mrb[0].mxu0
        %1713 = vmatprep.mubr.bf16.mxu0 0
        %1714 = vmatmul.mubr.bf16.gmra.mrb[0].mxu0 %v1413
        %v1715 = vpop.f32.mrb[0].mxu0
        %v1716 = vadd.f32 %v1555, %v1715
        %v1717 = vpop.f32.mrb[0].mxu0
        %v1718 = vpop.f32.mrb[0].mxu0
        %v1719 = vadd.f32 %v1558, %v1718
        %v1720 = vpop.f32.mrb[0].mxu0
        %1721 = vmatprep.mubr.bf16.mxu0 0
        %1722 = vmatmul.mubr.bf16.gmra.mrb[0].mxu0 %v1416
        %v1723 = vpop.f32.mrb[0].mxu0
        %v1724 = vadd.f32 %v1563, %v1723
        %v1725 = vpop.f32.mrb[0].mxu0
        %v1726 = vpop.f32.mrb[0].mxu0
        %v1727 = vadd.f32 %v1566, %v1726
        %v1728 = vpop.f32.mrb[0].mxu0
        %1729 = vmatprep.mubr.bf16.mxu0 0
        %1730 = vmatmul.mubr.bf16.gmra.mrb[0].mxu0 %v1419
        %v1731 = vpop.f32.mrb[0].mxu0
        %v1732 = vadd.f32 %v1571, %v1731
        %v1733 = vpop.f32.mrb[0].mxu0
        %v1734 = vpop.f32.mrb[0].mxu0
        %v1735 = vadd.f32 %v1574, %v1734
        %v1736 = vpop.f32.mrb[0].mxu0
        %1737 = vmatprep.mubr.bf16.mxu0 0
        %1738 = vmatmul.mubr.bf16.gmra.mrb[0].mxu0 %v1422
        %v1739 = vpop.f32.mrb[0].mxu0
        %v1740 = vadd.f32 %v1579, %v1739
        %v1741 = vpop.f32.mrb[0].mxu0
        %v1742 = vpop.f32.mrb[0].mxu0
        %v1743 = vadd.f32 %v1582, %v1742
        %v1744 = vpop.f32.mrb[0].mxu0
        %1745 = vdwg.mxu0
        %v1746 = vld [vmem:[%s583] sm:$0xff]
        %v1747 = vld [vmem:[%s583 + $0x8] sm:$0xf]
        %v1748 = vld [vmem:[%s583 + $0xc] sm:$0xff]
        %v1749 = vld [vmem:[%s583 + $0x14] sm:$0xf]
        %v1750 = vld [vmem:[%s583 + $0x18] sm:$0xff]
        %v1751 = vld [vmem:[%s583 + $0x20] sm:$0xf]
        %v1752 = vld [vmem:[%s583 + $0x24] sm:$0xff]
        %v1753 = vld [vmem:[%s583 + $0x2c] sm:$0xf]
        %v1754 = vld [vmem:[%s583 + $0x30] sm:$0xff]
        %v1755 = vld [vmem:[%s583 + $0x38] sm:$0xf]
        %v1756 = vld [vmem:[%s583 + $0x3c] sm:$0xff]
        %v1757 = vld [vmem:[%s583 + $0x44] sm:$0xf]
        %v1758 = vld [vmem:[%s583 + $0x48] sm:$0xff]
        %v1759 = vld [vmem:[%s583 + $0x50] sm:$0xf]
        %v1760 = vld [vmem:[%s583 + $0x54] sm:$0xff]
        %v1761 = vld [vmem:[%s583 + $0x5c] sm:$0xf]
        %v1762 = vld [vmem:[%s583 + $0x60] sm:$0xff]
        %v1763 = vld [vmem:[%s583 + $0x68] sm:$0xf]
        %v1764 = vld [vmem:[%s583 + $0x6c] sm:$0xff]
        %v1765 = vld [vmem:[%s583 + $0x74] sm:$0xf]
        %v1766 = vld [vmem:[%s583 + $0x78] sm:$0xff]
        %v1767 = vld [vmem:[%s583 + $0x80] sm:$0xf]
        %v1768 = vld [vmem:[%s583 + $0x84] sm:$0xff]
        %v1769 = vld [vmem:[%s583 + $0x8c] sm:$0xf]
        %v1770 = vld [vmem:[%s583 + $0x90] sm:$0xff]
        %v1771 = vld [vmem:[%s583 + $0x98] sm:$0xf]
        %v1772 = vld [vmem:[%s583 + $0x9c] sm:$0xff]
        %v1773 = vld [vmem:[%s583 + $0xa4] sm:$0xf]
        %v1774 = vld [vmem:[%s583 + $0xa8] sm:$0xff]
        %v1775 = vld [vmem:[%s583 + $0xb0] sm:$0xf]
        %v1776 = vld [vmem:[%s583 + $0xb4] sm:$0xff]
        %v1777 = vld [vmem:[%s583 + $0xbc] sm:$0xf]
        %v1778 = vld [vmem:[%s583 + $0xc0] sm:$0xff]
        %v1779 = vld [vmem:[%s583 + $0xc8] sm:$0xf]
        %v1780 = vld [vmem:[%s583 + $0xcc] sm:$0xff]
        %v1781 = vld [vmem:[%s583 + $0xd4] sm:$0xf]
        %v1782 = vld [vmem:[%s583 + $0xd8] sm:$0xff]
        %v1783 = vld [vmem:[%s583 + $0xe0] sm:$0xf]
        %v1784 = vld [vmem:[%s583 + $0xe4] sm:$0xff]
        %v1785 = vld [vmem:[%s583 + $0xec] sm:$0xf]
        %v1786 = vld [vmem:[%s583 + $0xf0] sm:$0xff]
        %v1787 = vld [vmem:[%s583 + $0xf8] sm:$0xf]
        %v1788 = vld [vmem:[%s583 + $0xfc] sm:$0xff]
        %v1789 = vld [vmem:[%s583 + $0x104] sm:$0xf]
        %v1790 = vld [vmem:[%s583 + $0x108] sm:$0xff]
        %v1791 = vld [vmem:[%s583 + $0x110] sm:$0xf]
        %v1792 = vld [vmem:[%s583 + $0x114] sm:$0xff]
        %v1793 = vld [vmem:[%s583 + $0x11c] sm:$0xf]
        %v1794 = vld [vmem:[%s583 + $0x120] sm:$0xff]
        %v1795 = vld [vmem:[%s583 + $0x128] sm:$0xf]
        %v1796 = vld [vmem:[%s583 + $0x12c] sm:$0xff]
        %v1797 = vld [vmem:[%s583 + $0x134] sm:$0xf]
        %v1798 = vld [vmem:[%s583 + $0x138] sm:$0xff]
        %v1799 = vld [vmem:[%s583 + $0x140] sm:$0xf]
        %v1800 = vld [vmem:[%s583 + $0x144] sm:$0xff]
        %v1801 = vld [vmem:[%s583 + $0x14c] sm:$0xf]
        %v1802 = vld [vmem:[%s583 + $0x150] sm:$0xff]
        %v1803 = vld [vmem:[%s583 + $0x158] sm:$0xf]
        %v1804 = vld [vmem:[%s583 + $0x15c] sm:$0xff]
        %v1805 = vld [vmem:[%s583 + $0x164] sm:$0xf]
        %v1806 = vld [vmem:[%s583 + $0x168] sm:$0xff]
        %v1807 = vld [vmem:[%s583 + $0x170] sm:$0xf]
        %v1808 = vld [vmem:[%s583 + $0x174] sm:$0xff]
        %v1809 = vld [vmem:[%s583 + $0x17c] sm:$0xf]
        %v1810 = vld [vmem:[%s6] sm:$0xf]
        %v1811 = vld [vmem:[%s6 + $0x4] sm:$0xf]
        %v1812 = vld [vmem:[%s6 + $0x8] sm:$0xf]
        %v1813 = vld [vmem:[%s6 + $0xc] sm:$0xf]
        %v1814 = vld [vmem:[%s6 + $0x10] sm:$0xf]
        %v1815 = vld [vmem:[%s6 + $0x14] sm:$0xf]
        %v1816 = vld [vmem:[%s6 + $0x18] sm:$0xf]
        %v1817 = vld [vmem:[%s6 + $0x1c] sm:$0xf]
        %v1818 = vld [vmem:[%s6 + $0x20] sm:$0xf]
        %v1819 = vld [vmem:[%s6 + $0x24] sm:$0xf]
        %v1820 = vld [vmem:[%s6 + $0x28] sm:$0xf]
        %v1821 = vld [vmem:[%s6 + $0x2c] sm:$0xf]
        %v1822 = vld [vmem:[%s6 + $0x30] sm:$0xf]
        %v1823 = vld [vmem:[%s6 + $0x34] sm:$0xf]
        %v1824 = vld [vmem:[%s6 + $0x38] sm:$0xf]
        %v1825 = vld [vmem:[%s6 + $0x3c] sm:$0xf]
        %v1826 = vld [vmem:[%s6 + $0x40] sm:$0xf]
        %v1827 = vld [vmem:[%s6 + $0x44] sm:$0xf]
        %v1828 = vld [vmem:[%s6 + $0x48] sm:$0xf]
        %v1829 = vld [vmem:[%s6 + $0x4c] sm:$0xf]
        %v1830 = vld [vmem:[%s6 + $0x50] sm:$0xf]
        %v1831 = vld [vmem:[%s6 + $0x54] sm:$0xf]
        %v1832 = vld [vmem:[%s6 + $0x58] sm:$0xf]
        %v1833 = vld [vmem:[%s6 + $0x5c] sm:$0xf]
        %v1834 = vld [vmem:[%s6 + $0x60] sm:$0xf]
        %v1835 = vld [vmem:[%s6 + $0x64] sm:$0xf]
        %v1836 = vld [vmem:[%s6 + $0x68] sm:$0xf]
        %v1837 = vld [vmem:[%s6 + $0x6c] sm:$0xf]
        %v1838 = vld [vmem:[%s6 + $0x70] sm:$0xf]
        %v1839 = vld [vmem:[%s6 + $0x74] sm:$0xf]
        %v1840 = vld [vmem:[%s6 + $0x78] sm:$0xf]
        %v1841 = vld [vmem:[%s6 + $0x7c] sm:$0xf]
        %v1842 = vld [vmem:[%s6 + $0x80] sm:$0xf]
        %v1843 = vld [vmem:[%s6 + $0x84] sm:$0xf]
        %v1844 = vld [vmem:[%s6 + $0x88] sm:$0xf]
        %v1845 = vld [vmem:[%s6 + $0x8c] sm:$0xf]
        %v1910 = vunpack.c.l.b16 %v1746
        %v1911 = vunpack.c.h.b16 %v1746
        %v1912 = vunpack.c.l.b16 %v1747
        %v1913 = vunpack.c.l.b16 %v1748
        %v1914 = vunpack.c.h.b16 %v1748
        %v1915 = vunpack.c.l.b16 %v1749
        %v1916 = vunpack.c.l.b16 %v1750
        %v1917 = vunpack.c.h.b16 %v1750
        %v1918 = vunpack.c.l.b16 %v1751
        %v1919 = vunpack.c.l.b16 %v1752
        %v1920 = vunpack.c.h.b16 %v1752
        %v1921 = vunpack.c.l.b16 %v1753
        %v1922 = vunpack.c.l.b16 %v1754
        %v1923 = vunpack.c.h.b16 %v1754
        %v1924 = vunpack.c.l.b16 %v1755
        %v1925 = vunpack.c.l.b16 %v1756
        %v1926 = vunpack.c.h.b16 %v1756
        %v1927 = vunpack.c.l.b16 %v1757
        %v1928 = vunpack.c.l.b16 %v1758
        %v1929 = vunpack.c.h.b16 %v1758
        %v1930 = vunpack.c.l.b16 %v1759
        %v1931 = vunpack.c.l.b16 %v1760
        %v1932 = vunpack.c.h.b16 %v1760
        %v1933 = vunpack.c.l.b16 %v1761
        %v1934 = vunpack.c.l.b16 %v1762
        %v1935 = vunpack.c.h.b16 %v1762
        %v1936 = vunpack.c.l.b16 %v1763
        %v1937 = vunpack.c.l.b16 %v1764
        %v1938 = vunpack.c.h.b16 %v1764
        %v1939 = vunpack.c.l.b16 %v1765
        %v1940 = vunpack.c.l.b16 %v1766
        %v1941 = vunpack.c.h.b16 %v1766
        %v1942 = vunpack.c.l.b16 %v1767
        %v1943 = vunpack.c.l.b16 %v1768
        %v1944 = vunpack.c.h.b16 %v1768
        %v1945 = vunpack.c.l.b16 %v1769
        %v1946 = vunpack.c.l.b16 %v1770
        %v1947 = vunpack.c.h.b16 %v1770
        %v1948 = vunpack.c.l.b16 %v1771
        %v1949 = vunpack.c.l.b16 %v1772
        %v1950 = vunpack.c.h.b16 %v1772
        %v1951 = vunpack.c.l.b16 %v1773
        %v1952 = vunpack.c.l.b16 %v1774
        %v1953 = vunpack.c.h.b16 %v1774
        %v1954 = vunpack.c.l.b16 %v1775
        %v1955 = vunpack.c.l.b16 %v1776
        %v1956 = vunpack.c.h.b16 %v1776
        %v1957 = vunpack.c.l.b16 %v1777
        %v1958 = vunpack.c.l.b16 %v1778
        %v1959 = vunpack.c.h.b16 %v1778
        %v1960 = vunpack.c.l.b16 %v1779
        %v1961 = vunpack.c.l.b16 %v1780
        %v1962 = vunpack.c.h.b16 %v1780
        %v1963 = vunpack.c.l.b16 %v1781
        %v1964 = vunpack.c.l.b16 %v1782
        %v1965 = vunpack.c.h.b16 %v1782
        %v1966 = vunpack.c.l.b16 %v1783
        %v1967 = vunpack.c.l.b16 %v1784
        %v1968 = vunpack.c.h.b16 %v1784
        %v1969 = vunpack.c.l.b16 %v1785
        %v1970 = vunpack.c.l.b16 %v1786
        %v1971 = vunpack.c.h.b16 %v1786
        %v1972 = vunpack.c.l.b16 %v1787
        %v1973 = vunpack.c.l.b16 %v1788
        %v1974 = vunpack.c.h.b16 %v1788
        %v1975 = vunpack.c.l.b16 %v1789
        %v1976 = vunpack.c.l.b16 %v1790
        %v1977 = vunpack.c.h.b16 %v1790
        %v1978 = vunpack.c.l.b16 %v1791
        %v1979 = vunpack.c.l.b16 %v1792
        %v1980 = vunpack.c.h.b16 %v1792
        %v1981 = vunpack.c.l.b16 %v1793
        %v1982 = vunpack.c.l.b16 %v1794
        %v1983 = vunpack.c.h.b16 %v1794
        %v1984 = vunpack.c.l.b16 %v1795
        %v1985 = vunpack.c.l.b16 %v1796
        %v1986 = vunpack.c.h.b16 %v1796
        %v1987 = vunpack.c.l.b16 %v1797
        %v1988 = vunpack.c.l.b16 %v1798
        %v1989 = vunpack.c.h.b16 %v1798
        %v1990 = vunpack.c.l.b16 %v1799
        %v1991 = vunpack.c.l.b16 %v1800
        %v1992 = vunpack.c.h.b16 %v1800
        %v1993 = vunpack.c.l.b16 %v1801
        %v1994 = vunpack.c.l.b16 %v1802
        %v1995 = vunpack.c.h.b16 %v1802
        %v1996 = vunpack.c.l.b16 %v1803
        %v1997 = vunpack.c.l.b16 %v1804
        %v1998 = vunpack.c.h.b16 %v1804
        %v1999 = vunpack.c.l.b16 %v1805
        %v2000 = vunpack.c.l.b16 %v1806
        %v2001 = vunpack.c.h.b16 %v1806
        %v2002 = vunpack.c.l.b16 %v1807
        %v2003 = vunpack.c.l.b16 %v1808
        %v2004 = vunpack.c.h.b16 %v1808
        %v2005 = vunpack.c.l.b16 %v1809
        %v2006 = vpack.c.b16 %v1913, %v1910
        %v2007 = vpack.c.b16 %v1914, %v1911
        %v2008 = vpack.c.b16 %v1915, %v1912
        %v2009 = vpack.c.b16 %v1919, %v1916
        %v2010 = vpack.c.b16 %v1920, %v1917
        %v2011 = vpack.c.b16 %v1921, %v1918
        %v2012 = vpack.c.b16 %v1925, %v1922
        %v2013 = vpack.c.b16 %v1926, %v1923
        %v2014 = vpack.c.b16 %v1927, %v1924
        %v2015 = vpack.c.b16 %v1931, %v1928
        %v2016 = vpack.c.b16 %v1932, %v1929
        %v2017 = vpack.c.b16 %v1933, %v1930
        %v2018 = vpack.c.b16 %v1937, %v1934
        %v2019 = vpack.c.b16 %v1938, %v1935
        %v2020 = vpack.c.b16 %v1939, %v1936
        %v2021 = vpack.c.b16 %v1943, %v1940
        %v2022 = vpack.c.b16 %v1944, %v1941
        %v2023 = vpack.c.b16 %v1945, %v1942
        %v2024 = vpack.c.b16 %v1949, %v1946
        %v2025 = vpack.c.b16 %v1950, %v1947
        %v2026 = vpack.c.b16 %v1951, %v1948
        %v2027 = vpack.c.b16 %v1955, %v1952
        %v2028 = vpack.c.b16 %v1956, %v1953
        %v2029 = vpack.c.b16 %v1957, %v1954
        %v2030 = vpack.c.b16 %v1961, %v1958
        %v2031 = vpack.c.b16 %v1962, %v1959
        %v2032 = vpack.c.b16 %v1963, %v1960
        %v2033 = vpack.c.b16 %v1967, %v1964
        %v2034 = vpack.c.b16 %v1968, %v1965
        %v2035 = vpack.c.b16 %v1969, %v1966
        %v2036 = vpack.c.b16 %v1973, %v1970
        %v2037 = vpack.c.b16 %v1974, %v1971
        %v2038 = vpack.c.b16 %v1975, %v1972
        %v2039 = vpack.c.b16 %v1979, %v1976
        %v2040 = vpack.c.b16 %v1980, %v1977
        %v2041 = vpack.c.b16 %v1981, %v1978
        %v2042 = vpack.c.b16 %v1985, %v1982
        %v2043 = vpack.c.b16 %v1986, %v1983
        %v2044 = vpack.c.b16 %v1987, %v1984
        %v2045 = vpack.c.b16 %v1991, %v1988
        %v2046 = vpack.c.b16 %v1992, %v1989
        %v2047 = vpack.c.b16 %v1993, %v1990
        %v2048 = vpack.c.b16 %v1997, %v1994
        %v2049 = vpack.c.b16 %v1998, %v1995
        %v2050 = vpack.c.b16 %v1999, %v1996
        %v2051 = vpack.c.b16 %v2003, %v2000
        %v2052 = vpack.c.b16 %v2004, %v2001
        %v2053 = vpack.c.b16 %v2005, %v2002
        %v2122 = vunpack.c.l.b16 %v1810
        %v2123 = vunpack.c.l.b16 %v1811
        %v2124 = vunpack.c.l.b16 %v1812
        %v2125 = vunpack.c.l.b16 %v1813
        %v2126 = vunpack.c.l.b16 %v1814
        %v2127 = vunpack.c.l.b16 %v1815
        %v2128 = vunpack.c.l.b16 %v1816
        %v2129 = vunpack.c.l.b16 %v1817
        %v2130 = vunpack.c.l.b16 %v1818
        %v2131 = vunpack.c.l.b16 %v1819
        %v2132 = vunpack.c.l.b16 %v1820
        %v2133 = vunpack.c.l.b16 %v1821
        %v2134 = vunpack.c.l.b16 %v1822
        %v2135 = vunpack.c.l.b16 %v1823
        %v2136 = vunpack.c.l.b16 %v1824
        %v2137 = vunpack.c.l.b16 %v1825
        %v2138 = vunpack.c.l.b16 %v1826
        %v2139 = vunpack.c.l.b16 %v1827
        %v2140 = vunpack.c.l.b16 %v1828
        %v2141 = vunpack.c.l.b16 %v1829
        %v2142 = vunpack.c.l.b16 %v1830
        %v2143 = vunpack.c.l.b16 %v1831
        %v2144 = vunpack.c.l.b16 %v1832
        %v2145 = vunpack.c.l.b16 %v1833
        %v2146 = vunpack.c.l.b16 %v1834
        %v2147 = vunpack.c.l.b16 %v1835
        %v2148 = vunpack.c.l.b16 %v1836
        %v2149 = vunpack.c.l.b16 %v1837
        %v2150 = vunpack.c.l.b16 %v1838
        %v2151 = vunpack.c.l.b16 %v1839
        %v2152 = vunpack.c.l.b16 %v1840
        %v2153 = vunpack.c.l.b16 %v1841
        %v2154 = vunpack.c.l.b16 %v1842
        %v2155 = vunpack.c.l.b16 %v1843
        %v2156 = vunpack.c.l.b16 %v1844
        %v2157 = vunpack.c.l.b16 %v1845
        %v2158 = vpack.c.b16 %v2123, %v2122
        %v2159 = vpack.c.b16 %v2125, %v2124
        %v2160 = vpack.c.b16 %v2127, %v2126
        %v2161 = vpack.c.b16 %v2129, %v2128
        %v2162 = vpack.c.b16 %v2131, %v2130
        %v2163 = vpack.c.b16 %v2133, %v2132
        %v2164 = vpack.c.b16 %v2135, %v2134
        %v2165 = vpack.c.b16 %v2137, %v2136
        %v2166 = vpack.c.b16 %v2139, %v2138
        %v2167 = vpack.c.b16 %v2141, %v2140
        %v2168 = vpack.c.b16 %v2143, %v2142
        %v2169 = vpack.c.b16 %v2145, %v2144
        %v2170 = vpack.c.b16 %v2147, %v2146
        %v2171 = vpack.c.b16 %v2149, %v2148
        %v2172 = vpack.c.b16 %v2151, %v2150
        %v2173 = vpack.c.b16 %v2153, %v2152
        %v2174 = vpack.c.b16 %v2155, %v2154
        %v2175 = vpack.c.b16 %v2157, %v2156
        %v2195 = vsel %vm718, %v2008, 0
        %v2198 = vsel %vm718, %v2011, 0
        %v2201 = vsel %vm718, %v2014, 0
        %v2204 = vsel %vm718, %v2017, 0
        %v2207 = vsel %vm718, %v2020, 0
        %v2210 = vsel %vm718, %v2023, 0
        %v2213 = vsel %vm718, %v2026, 0
        %v2216 = vsel %vm718, %v2029, 0
        %v2219 = vsel %vm718, %v2032, 0
        %v2222 = vsel %vm718, %v2035, 0
        %v2225 = vsel %vm718, %v2038, 0
        %v2228 = vsel %vm718, %v2041, 0
        %v2231 = vsel %vm718, %v2044, 0
        %v2234 = vsel %vm718, %v2047, 0
        %v2237 = vsel %vm718, %v2050, 0
        %v2240 = vsel %vm718, %v2053, 0
        %2242 = vmatprep.subr.bf16.mxu0 0
        %2243 = vmatpush1.bf16.msra.mxu0 %v2158
        %2244 = vmatprep.subr.bf16.mxu0 0
        %2245 = vmatpush1.bf16.msra.mxu0 %v2159
        %2246 = vmatprep.subr.bf16.mxu0 0
        %2247 = vmatpush1.bf16.msra.mxu0 %v2160
        %2248 = vmatprep.subr.bf16.mxu0 0
        %2249 = vmatpush1.bf16.msra.mxu0 %v2161
        %2250 = vmatprep.subr.bf16.mxu0 0
        %2251 = vmatpush1.bf16.msra.mxu0 %v2162
        %2252 = vmatprep.subr.bf16.mxu0 0
        %2253 = vmatpush1.bf16.msra.mxu0 %v2163
        %2254 = vmatprep.subr.bf16.mxu0 0
        %2255 = vmatpush1.bf16.msra.mxu0 %v2164
        %2256 = vmatprep.subr.bf16.mxu0 0
        %2257 = vmatpush1.bf16.msra.mxu0 %v2165
        %2258 = vmatprep.subr.bf16.mxu0 0
        %2259 = vmatpush1.bf16.msra.mxu0 %v2166
        %2260 = vmatprep.subr.bf16.mxu0 0
        %2261 = vmatpush1.bf16.msra.mxu0 %v2167
        %2262 = vmatprep.subr.bf16.mxu0 0
        %2263 = vmatpush1.bf16.msra.mxu0 %v2168
        %2264 = vmatprep.subr.bf16.mxu0 0
        %2265 = vmatpush1.bf16.msra.mxu0 %v2169
        %2266 = vmatprep.subr.bf16.mxu0 0
        %2267 = vmatpush1.bf16.msra.mxu0 %v2170
        %2268 = vmatprep.subr.bf16.mxu0 0
        %2269 = vmatpush1.bf16.msra.mxu0 %v2171
        %2270 = vmatprep.subr.bf16.mxu0 0
        %2271 = vmatpush1.bf16.msra.mxu0 %v2172
        %2272 = vmatprep.subr.bf16.mxu0 0
        %2273 = vmatpush1.bf16.msra.mxu0 %v2173
        %2274 = vmatprep.mubr.bf16.mxu0 %v2007
        %2275 = vmatmul.mubr.bf16.gmra.mrb[0].mxu0 %v2006
        %v2276 = vpop.f32.mrb[0].mxu0
        %v2277 = vadd.f32 0.0, %v2276
        %v2278 = vpop.f32.mrb[0].mxu0
        %v2279 = vpop.f32.mrb[0].mxu0
        %v2280 = vadd.f32 0.0, %v2279
        %v2281 = vpop.f32.mrb[0].mxu0
        %2282 = vmatprep.mubr.bf16.mxu0 %v2010
        %2283 = vmatmul.mubr.bf16.gmra.mrb[0].mxu0 %v2009
        %v2284 = vpop.f32.mrb[0].mxu0
        %v2285 = vadd.f32 0.0, %v2284
        %v2286 = vpop.f32.mrb[0].mxu0
        %v2287 = vpop.f32.mrb[0].mxu0
        %v2288 = vadd.f32 0.0, %v2287
        %v2289 = vpop.f32.mrb[0].mxu0
        %2290 = vmatprep.mubr.bf16.mxu0 %v2013
        %2291 = vmatmul.mubr.bf16.gmra.mrb[0].mxu0 %v2012
        %v2292 = vpop.f32.mrb[0].mxu0
        %v2293 = vadd.f32 0.0, %v2292
        %v2294 = vpop.f32.mrb[0].mxu0
        %v2295 = vpop.f32.mrb[0].mxu0
        %v2296 = vadd.f32 0.0, %v2295
        %v2297 = vpop.f32.mrb[0].mxu0
        %2298 = vmatprep.mubr.bf16.mxu0 %v2016
        %2299 = vmatmul.mubr.bf16.gmra.mrb[0].mxu0 %v2015
        %v2300 = vpop.f32.mrb[0].mxu0
        %v2301 = vadd.f32 0.0, %v2300
        %v2302 = vpop.f32.mrb[0].mxu0
        %v2303 = vpop.f32.mrb[0].mxu0
        %v2304 = vadd.f32 0.0, %v2303
        %v2305 = vpop.f32.mrb[0].mxu0
        %2306 = vmatprep.mubr.bf16.mxu0 %v2019
        %2307 = vmatmul.mubr.bf16.gmra.mrb[0].mxu0 %v2018
        %v2308 = vpop.f32.mrb[0].mxu0
        %v2309 = vadd.f32 0.0, %v2308
        %v2310 = vpop.f32.mrb[0].mxu0
        %v2311 = vpop.f32.mrb[0].mxu0
        %v2312 = vadd.f32 0.0, %v2311
        %v2313 = vpop.f32.mrb[0].mxu0
        %2314 = vmatprep.mubr.bf16.mxu0 %v2022
        %2315 = vmatmul.mubr.bf16.gmra.mrb[0].mxu0 %v2021
        %v2316 = vpop.f32.mrb[0].mxu0
        %v2317 = vadd.f32 0.0, %v2316
        %v2318 = vpop.f32.mrb[0].mxu0
        %v2319 = vpop.f32.mrb[0].mxu0
        %v2320 = vadd.f32 0.0, %v2319
        %v2321 = vpop.f32.mrb[0].mxu0
        %2322 = vmatprep.mubr.bf16.mxu0 %v2025
        %2323 = vmatmul.mubr.bf16.gmra.mrb[0].mxu0 %v2024
        %v2324 = vpop.f32.mrb[0].mxu0
        %v2325 = vadd.f32 0.0, %v2324
        %v2326 = vpop.f32.mrb[0].mxu0
        %v2327 = vpop.f32.mrb[0].mxu0
        %v2328 = vadd.f32 0.0, %v2327
        %v2329 = vpop.f32.mrb[0].mxu0
        %2330 = vmatprep.mubr.bf16.mxu0 %v2028
        %2331 = vmatmul.mubr.bf16.gmra.mrb[0].mxu0 %v2027
        %v2332 = vpop.f32.mrb[0].mxu0
        %v2333 = vadd.f32 0.0, %v2332
        %v2334 = vpop.f32.mrb[0].mxu0
        %v2335 = vpop.f32.mrb[0].mxu0
        %v2336 = vadd.f32 0.0, %v2335
        %v2337 = vpop.f32.mrb[0].mxu0
        %2338 = vmatprep.mubr.bf16.mxu0 %v2031
        %2339 = vmatmul.mubr.bf16.gmra.mrb[0].mxu0 %v2030
        %v2340 = vpop.f32.mrb[0].mxu0
        %v2341 = vadd.f32 0.0, %v2340
        %v2342 = vpop.f32.mrb[0].mxu0
        %v2343 = vpop.f32.mrb[0].mxu0
        %v2344 = vadd.f32 0.0, %v2343
        %v2345 = vpop.f32.mrb[0].mxu0
        %2346 = vmatprep.mubr.bf16.mxu0 %v2034
        %2347 = vmatmul.mubr.bf16.gmra.mrb[0].mxu0 %v2033
        %v2348 = vpop.f32.mrb[0].mxu0
        %v2349 = vadd.f32 0.0, %v2348
        %v2350 = vpop.f32.mrb[0].mxu0
        %v2351 = vpop.f32.mrb[0].mxu0
        %v2352 = vadd.f32 0.0, %v2351
        %v2353 = vpop.f32.mrb[0].mxu0
        %2354 = vmatprep.mubr.bf16.mxu0 %v2037
        %2355 = vmatmul.mubr.bf16.gmra.mrb[0].mxu0 %v2036
        %v2356 = vpop.f32.mrb[0].mxu0
        %v2357 = vadd.f32 0.0, %v2356
        %v2358 = vpop.f32.mrb[0].mxu0
        %v2359 = vpop.f32.mrb[0].mxu0
        %v2360 = vadd.f32 0.0, %v2359
        %v2361 = vpop.f32.mrb[0].mxu0
        %2362 = vmatprep.mubr.bf16.mxu0 %v2040
        %2363 = vmatmul.mubr.bf16.gmra.mrb[0].mxu0 %v2039
        %v2364 = vpop.f32.mrb[0].mxu0
        %v2365 = vadd.f32 0.0, %v2364
        %v2366 = vpop.f32.mrb[0].mxu0
        %v2367 = vpop.f32.mrb[0].mxu0
        %v2368 = vadd.f32 0.0, %v2367
        %v2369 = vpop.f32.mrb[0].mxu0
        %2370 = vmatprep.mubr.bf16.mxu0 %v2043
        %2371 = vmatmul.mubr.bf16.gmra.mrb[0].mxu0 %v2042
        %v2372 = vpop.f32.mrb[0].mxu0
        %v2373 = vadd.f32 0.0, %v2372
        %v2374 = vpop.f32.mrb[0].mxu0
        %v2375 = vpop.f32.mrb[0].mxu0
        %v2376 = vadd.f32 0.0, %v2375
        %v2377 = vpop.f32.mrb[0].mxu0
        %2378 = vmatprep.mubr.bf16.mxu0 %v2046
        %2379 = vmatmul.mubr.bf16.gmra.mrb[0].mxu0 %v2045
        %v2380 = vpop.f32.mrb[0].mxu0
        %v2381 = vadd.f32 0.0, %v2380
        %v2382 = vpop.f32.mrb[0].mxu0
        %v2383 = vpop.f32.mrb[0].mxu0
        %v2384 = vadd.f32 0.0, %v2383
        %v2385 = vpop.f32.mrb[0].mxu0
        %2386 = vmatprep.mubr.bf16.mxu0 %v2049
        %2387 = vmatmul.mubr.bf16.gmra.mrb[0].mxu0 %v2048
        %v2388 = vpop.f32.mrb[0].mxu0
        %v2389 = vadd.f32 0.0, %v2388
        %v2390 = vpop.f32.mrb[0].mxu0
        %v2391 = vpop.f32.mrb[0].mxu0
        %v2392 = vadd.f32 0.0, %v2391
        %v2393 = vpop.f32.mrb[0].mxu0
        %2394 = vmatprep.mubr.bf16.mxu0 %v2052
        %2395 = vmatmul.mubr.bf16.gmra.mrb[0].mxu0 %v2051
        %v2396 = vpop.f32.mrb[0].mxu0
        %v2397 = vadd.f32 0.0, %v2396
        %v2398 = vpop.f32.mrb[0].mxu0
        %v2399 = vpop.f32.mrb[0].mxu0
        %v2400 = vadd.f32 0.0, %v2399
        %v2401 = vpop.f32.mrb[0].mxu0
        %2402 = vdwg.mxu0
        %2403 = vmatprep.subr.bf16.mxu0 0
        %2404 = vmatpush1.bf16.msra.mxu0 %v2174
        %2405 = vmatprep.subr.bf16.mxu0 0
        %2406 = vmatpush1.bf16.msra.mxu0 %v2175
        %2407 = vmatprep.subr.bf16.mxu0 0
        %2408 = vmatpush1.bf16.msra.mxu0 0
        %2409 = vmatprep.subr.bf16.mxu0 0
        %2410 = vmatpush1.bf16.msra.mxu0 0
        %2411 = vmatprep.subr.bf16.mxu0 0
        %2412 = vmatpush1.bf16.msra.mxu0 0
        %2413 = vmatprep.subr.bf16.mxu0 0
        %2414 = vmatpush1.bf16.msra.mxu0 0
        %2415 = vmatprep.subr.bf16.mxu0 0
        %2416 = vmatpush1.bf16.msra.mxu0 0
        %2417 = vmatprep.subr.bf16.mxu0 0
        %2418 = vmatpush1.bf16.msra.mxu0 0
        %2419 = vmatprep.subr.bf16.mxu0 0
        %2420 = vmatpush1.bf16.msra.mxu0 0
        %2421 = vmatprep.subr.bf16.mxu0 0
        %2422 = vmatpush1.bf16.msra.mxu0 0
        %2423 = vmatprep.subr.bf16.mxu0 0
        %2424 = vmatpush1.bf16.msra.mxu0 0
        %2425 = vmatprep.subr.bf16.mxu0 0
        %2426 = vmatpush1.bf16.msra.mxu0 0
        %2427 = vmatprep.subr.bf16.mxu0 0
        %2428 = vmatpush1.bf16.msra.mxu0 0
        %2429 = vmatprep.subr.bf16.mxu0 0
        %2430 = vmatpush1.bf16.msra.mxu0 0
        %2431 = vmatprep.subr.bf16.mxu0 0
        %2432 = vmatpush1.bf16.msra.mxu0 0
        %2433 = vmatprep.subr.bf16.mxu0 0
        %2434 = vmatpush1.bf16.msra.mxu0 0
        %2435 = vmatprep.mubr.bf16.mxu0 0
        %2436 = vmatmul.mubr.bf16.gmra.mrb[0].mxu0 %v2195
        %v2437 = vpop.f32.mrb[0].mxu0
        %v2438 = vadd.f32 %v2277, %v2437
        %v2439 = vpop.f32.mrb[0].mxu0
        %v2440 = vpop.f32.mrb[0].mxu0
        %v2441 = vadd.f32 %v2280, %v2440
        %v2442 = vpop.f32.mrb[0].mxu0
        %2443 = vmatprep.mubr.bf16.mxu0 0
        %2444 = vmatmul.mubr.bf16.gmra.mrb[0].mxu0 %v2198
        %v2445 = vpop.f32.mrb[0].mxu0
        %v2446 = vadd.f32 %v2285, %v2445
        %v2447 = vpop.f32.mrb[0].mxu0
        %v2448 = vpop.f32.mrb[0].mxu0
        %v2449 = vadd.f32 %v2288, %v2448
        %v2450 = vpop.f32.mrb[0].mxu0
        %2451 = vmatprep.mubr.bf16.mxu0 0
        %2452 = vmatmul.mubr.bf16.gmra.mrb[0].mxu0 %v2201
        %v2453 = vpop.f32.mrb[0].mxu0
        %v2454 = vadd.f32 %v2293, %v2453
        %v2455 = vpop.f32.mrb[0].mxu0
        %v2456 = vpop.f32.mrb[0].mxu0
        %v2457 = vadd.f32 %v2296, %v2456
        %v2458 = vpop.f32.mrb[0].mxu0
        %2459 = vmatprep.mubr.bf16.mxu0 0
        %2460 = vmatmul.mubr.bf16.gmra.mrb[0].mxu0 %v2204
        %v2461 = vpop.f32.mrb[0].mxu0
        %v2462 = vadd.f32 %v2301, %v2461
        %v2463 = vpop.f32.mrb[0].mxu0
        %v2464 = vpop.f32.mrb[0].mxu0
        %v2465 = vadd.f32 %v2304, %v2464
        %v2466 = vpop.f32.mrb[0].mxu0
        %2467 = vmatprep.mubr.bf16.mxu0 0
        %2468 = vmatmul.mubr.bf16.gmra.mrb[0].mxu0 %v2207
        %v2469 = vpop.f32.mrb[0].mxu0
        %v2470 = vadd.f32 %v2309, %v2469
        %v2471 = vpop.f32.mrb[0].mxu0
        %v2472 = vpop.f32.mrb[0].mxu0
        %v2473 = vadd.f32 %v2312, %v2472
        %v2474 = vpop.f32.mrb[0].mxu0
        %2475 = vmatprep.mubr.bf16.mxu0 0
        %2476 = vmatmul.mubr.bf16.gmra.mrb[0].mxu0 %v2210
        %v2477 = vpop.f32.mrb[0].mxu0
        %v2478 = vadd.f32 %v2317, %v2477
        %v2479 = vpop.f32.mrb[0].mxu0
        %v2480 = vpop.f32.mrb[0].mxu0
        %v2481 = vadd.f32 %v2320, %v2480
        %v2482 = vpop.f32.mrb[0].mxu0
        %2483 = vmatprep.mubr.bf16.mxu0 0
        %2484 = vmatmul.mubr.bf16.gmra.mrb[0].mxu0 %v2213
        %v2485 = vpop.f32.mrb[0].mxu0
        %v2486 = vadd.f32 %v2325, %v2485
        %v2487 = vpop.f32.mrb[0].mxu0
        %v2488 = vpop.f32.mrb[0].mxu0
        %v2489 = vadd.f32 %v2328, %v2488
        %v2490 = vpop.f32.mrb[0].mxu0
        %2491 = vmatprep.mubr.bf16.mxu0 0
        %2492 = vmatmul.mubr.bf16.gmra.mrb[0].mxu0 %v2216
        %v2493 = vpop.f32.mrb[0].mxu0
        %v2494 = vadd.f32 %v2333, %v2493
        %v2495 = vpop.f32.mrb[0].mxu0
        %v2496 = vpop.f32.mrb[0].mxu0
        %v2497 = vadd.f32 %v2336, %v2496
        %v2498 = vpop.f32.mrb[0].mxu0
        %2499 = vmatprep.mubr.bf16.mxu0 0
        %2500 = vmatmul.mubr.bf16.gmra.mrb[0].mxu0 %v2219
        %v2501 = vpop.f32.mrb[0].mxu0
        %v2502 = vadd.f32 %v2341, %v2501
        %v2503 = vpop.f32.mrb[0].mxu0
        %v2504 = vpop.f32.mrb[0].mxu0
        %v2505 = vadd.f32 %v2344, %v2504
        %v2506 = vpop.f32.mrb[0].mxu0
        %2507 = vmatprep.mubr.bf16.mxu0 0
        %2508 = vmatmul.mubr.bf16.gmra.mrb[0].mxu0 %v2222
        %v2509 = vpop.f32.mrb[0].mxu0
        %v2510 = vadd.f32 %v2349, %v2509
        %v2511 = vpop.f32.mrb[0].mxu0
        %v2512 = vpop.f32.mrb[0].mxu0
        %v2513 = vadd.f32 %v2352, %v2512
        %v2514 = vpop.f32.mrb[0].mxu0
        %2515 = vmatprep.mubr.bf16.mxu0 0
        %2516 = vmatmul.mubr.bf16.gmra.mrb[0].mxu0 %v2225
        %v2517 = vpop.f32.mrb[0].mxu0
        %v2518 = vadd.f32 %v2357, %v2517
        %v2519 = vpop.f32.mrb[0].mxu0
        %v2520 = vpop.f32.mrb[0].mxu0
        %v2521 = vadd.f32 %v2360, %v2520
        %v2522 = vpop.f32.mrb[0].mxu0
        %2523 = vmatprep.mubr.bf16.mxu0 0
        %2524 = vmatmul.mubr.bf16.gmra.mrb[0].mxu0 %v2228
        %v2525 = vpop.f32.mrb[0].mxu0
        %v2526 = vadd.f32 %v2365, %v2525
        %v2527 = vpop.f32.mrb[0].mxu0
        %v2528 = vpop.f32.mrb[0].mxu0
        %v2529 = vadd.f32 %v2368, %v2528
        %v2530 = vpop.f32.mrb[0].mxu0
        %2531 = vmatprep.mubr.bf16.mxu0 0
        %2532 = vmatmul.mubr.bf16.gmra.mrb[0].mxu0 %v2231
        %v2533 = vpop.f32.mrb[0].mxu0
        %v2534 = vadd.f32 %v2373, %v2533
        %v2535 = vpop.f32.mrb[0].mxu0
        %v2536 = vpop.f32.mrb[0].mxu0
        %v2537 = vadd.f32 %v2376, %v2536
        %v2538 = vpop.f32.mrb[0].mxu0
        %2539 = vmatprep.mubr.bf16.mxu0 0
        %2540 = vmatmul.mubr.bf16.gmra.mrb[0].mxu0 %v2234
        %v2541 = vpop.f32.mrb[0].mxu0
        %v2542 = vadd.f32 %v2381, %v2541
        %v2543 = vpop.f32.mrb[0].mxu0
        %v2544 = vpop.f32.mrb[0].mxu0
        %v2545 = vadd.f32 %v2384, %v2544
        %v2546 = vpop.f32.mrb[0].mxu0
        %2547 = vmatprep.mubr.bf16.mxu0 0
        %2548 = vmatmul.mubr.bf16.gmra.mrb[0].mxu0 %v2237
        %v2549 = vpop.f32.mrb[0].mxu0
        %v2550 = vadd.f32 %v2389, %v2549
        %v2551 = vpop.f32.mrb[0].mxu0
        %v2552 = vpop.f32.mrb[0].mxu0
        %v2553 = vadd.f32 %v2392, %v2552
        %v2554 = vpop.f32.mrb[0].mxu0
        %2555 = vmatprep.mubr.bf16.mxu0 0
        %2556 = vmatmul.mubr.bf16.gmra.mrb[0].mxu0 %v2240
        %v2557 = vpop.f32.mrb[0].mxu0
        %v2558 = vadd.f32 %v2397, %v2557
        %v2559 = vpop.f32.mrb[0].mxu0
        %v2560 = vpop.f32.mrb[0].mxu0
        %v2561 = vadd.f32 %v2400, %v2560
        %v2562 = vpop.f32.mrb[0].mxu0
        %2563 = vdwg.mxu0
        %2596 = vrot.lane.b32.xlu0 %v1620, 64
        %v2597 = vpop.permute.xlu0 %2596
        %2598 = vrot.lane.b32.xlu0 %v1623, 64
        %v2599 = vpop.permute.xlu0 %2598
        %2600 = vrot.lane.b32.xlu0 %v1628, 64
        %v2601 = vpop.permute.xlu0 %2600
        %2602 = vrot.lane.b32.xlu0 %v1631, 64
        %v2603 = vpop.permute.xlu0 %2602
        %2604 = vrot.lane.b32.xlu0 %v1636, 64
        %v2605 = vpop.permute.xlu0 %2604
        %2606 = vrot.lane.b32.xlu0 %v1639, 64
        %v2607 = vpop.permute.xlu0 %2606
        %2608 = vrot.lane.b32.xlu0 %v1644, 64
        %v2609 = vpop.permute.xlu0 %2608
        %2610 = vrot.lane.b32.xlu0 %v1647, 64
        %v2611 = vpop.permute.xlu0 %2610
        %2612 = vrot.lane.b32.xlu0 %v1652, 64
        %v2613 = vpop.permute.xlu0 %2612
        %2614 = vrot.lane.b32.xlu0 %v1655, 64
        %v2615 = vpop.permute.xlu0 %2614
        %2616 = vrot.lane.b32.xlu0 %v1660, 64
        %v2617 = vpop.permute.xlu0 %2616
        %2618 = vrot.lane.b32.xlu0 %v1663, 64
        %v2619 = vpop.permute.xlu0 %2618
        %2620 = vrot.lane.b32.xlu0 %v1668, 64
        %v2621 = vpop.permute.xlu0 %2620
        %2622 = vrot.lane.b32.xlu0 %v1671, 64
        %v2623 = vpop.permute.xlu0 %2622
        %2624 = vrot.lane.b32.xlu0 %v1676, 64
        %v2625 = vpop.permute.xlu0 %2624
        %2626 = vrot.lane.b32.xlu0 %v1679, 64
        %v2627 = vpop.permute.xlu0 %2626
        %2628 = vrot.lane.b32.xlu0 %v1684, 64
        %v2629 = vpop.permute.xlu0 %2628
        %2630 = vrot.lane.b32.xlu0 %v1687, 64
        %v2631 = vpop.permute.xlu0 %2630
        %2632 = vrot.lane.b32.xlu0 %v1692, 64
        %v2633 = vpop.permute.xlu0 %2632
        %2634 = vrot.lane.b32.xlu0 %v1695, 64
        %v2635 = vpop.permute.xlu0 %2634
        %2636 = vrot.lane.b32.xlu0 %v1700, 64
        %v2637 = vpop.permute.xlu0 %2636
        %2638 = vrot.lane.b32.xlu0 %v1703, 64
        %v2639 = vpop.permute.xlu0 %2638
        %2640 = vrot.lane.b32.xlu0 %v1708, 64
        %v2641 = vpop.permute.xlu0 %2640
        %2642 = vrot.lane.b32.xlu0 %v1711, 64
        %v2643 = vpop.permute.xlu0 %2642
        %2644 = vrot.lane.b32.xlu0 %v1716, 64
        %v2645 = vpop.permute.xlu0 %2644
        %2646 = vrot.lane.b32.xlu0 %v1719, 64
        %v2647 = vpop.permute.xlu0 %2646
        %2648 = vrot.lane.b32.xlu0 %v1724, 64
        %v2649 = vpop.permute.xlu0 %2648
        %2650 = vrot.lane.b32.xlu0 %v1727, 64
        %v2651 = vpop.permute.xlu0 %2650
        %2652 = vrot.lane.b32.xlu0 %v1732, 64
        %v2653 = vpop.permute.xlu0 %2652
        %2654 = vrot.lane.b32.xlu0 %v1735, 64
        %v2655 = vpop.permute.xlu0 %2654
        %2656 = vrot.lane.b32.xlu0 %v1740, 64
        %v2657 = vpop.permute.xlu0 %2656
        %2658 = vrot.lane.b32.xlu0 %v1743, 64
        %v2659 = vpop.permute.xlu0 %2658
        %vm2692 = vcmask 523264
        %v2693 = vsel %vm2692, %v802, %v2597
        %v2694 = vsel %vm2692, %v805, %v2599
        %v2695 = vsel %vm2692, %v810, %v2601
        %v2696 = vsel %vm2692, %v813, %v2603
        %v2697 = vsel %vm2692, %v818, %v2605
        %v2698 = vsel %vm2692, %v821, %v2607
        %v2699 = vsel %vm2692, %v826, %v2609
        %v2700 = vsel %vm2692, %v829, %v2611
        %v2701 = vsel %vm2692, %v834, %v2613
        %v2702 = vsel %vm2692, %v837, %v2615
        %v2703 = vsel %vm2692, %v842, %v2617
        %v2704 = vsel %vm2692, %v845, %v2619
        %v2705 = vsel %vm2692, %v850, %v2621
        %v2706 = vsel %vm2692, %v853, %v2623
        %v2707 = vsel %vm2692, %v858, %v2625
        %v2708 = vsel %vm2692, %v861, %v2627
        %v2709 = vsel %vm2692, %v866, %v2629
        %v2710 = vsel %vm2692, %v869, %v2631
        %v2711 = vsel %vm2692, %v874, %v2633
        %v2712 = vsel %vm2692, %v877, %v2635
        %v2713 = vsel %vm2692, %v882, %v2637
        %v2714 = vsel %vm2692, %v885, %v2639
        %v2715 = vsel %vm2692, %v890, %v2641
        %v2716 = vsel %vm2692, %v893, %v2643
        %v2717 = vsel %vm2692, %v898, %v2645
        %v2718 = vsel %vm2692, %v901, %v2647
        %v2719 = vsel %vm2692, %v906, %v2649
        %v2720 = vsel %vm2692, %v909, %v2651
        %v2721 = vsel %vm2692, %v914, %v2653
        %v2722 = vsel %vm2692, %v917, %v2655
        %v2723 = vsel %vm2692, %v922, %v2657
        %v2724 = vsel %vm2692, %v925, %v2659
        %v2725 = vld [vmem:[%s7] sm:$0x3]
        %v2727 = vlaneseq
        %v2728 = vshrl.u32 %v2727, 7
        %v2729 = vsub.s32 0, %v2728
        %v2730 = vrot.slane %v2725, %v2729
        %v2731 = vlaneseq
        %v2732 = vshrl.u32 %v2731, 7
        %v2733 = vsub.s32 1, %v2732
        %v2734 = vrot.slane %v2725, %v2733
        %v2737 = vadd.f32 %v2693, %v2730
        %v2738 = vadd.f32 %v2438, %v2734
        %v2739 = vadd.f32 %v2694, %v2730
        %v2740 = vadd.f32 %v2441, %v2734
        %v2741 = vadd.f32 %v2695, %v2730
        %v2742 = vadd.f32 %v2446, %v2734
        %v2743 = vadd.f32 %v2696, %v2730
        %v2744 = vadd.f32 %v2449, %v2734
        %v2745 = vadd.f32 %v2697, %v2730
        %v2746 = vadd.f32 %v2454, %v2734
        %v2747 = vadd.f32 %v2698, %v2730
        %v2748 = vadd.f32 %v2457, %v2734
        %v2749 = vadd.f32 %v2699, %v2730
        %v2750 = vadd.f32 %v2462, %v2734
        %v2751 = vadd.f32 %v2700, %v2730
        %v2752 = vadd.f32 %v2465, %v2734
        %v2753 = vadd.f32 %v2701, %v2730
        %v2754 = vadd.f32 %v2470, %v2734
        %v2755 = vadd.f32 %v2702, %v2730
        %v2756 = vadd.f32 %v2473, %v2734
        %v2757 = vadd.f32 %v2703, %v2730
        %v2758 = vadd.f32 %v2478, %v2734
        %v2759 = vadd.f32 %v2704, %v2730
        %v2760 = vadd.f32 %v2481, %v2734
        %v2761 = vadd.f32 %v2705, %v2730
        %v2762 = vadd.f32 %v2486, %v2734
        %v2763 = vadd.f32 %v2706, %v2730
        %v2764 = vadd.f32 %v2489, %v2734
        %v2765 = vadd.f32 %v2707, %v2730
        %v2766 = vadd.f32 %v2494, %v2734
        %v2767 = vadd.f32 %v2708, %v2730
        %v2768 = vadd.f32 %v2497, %v2734
        %v2769 = vadd.f32 %v2709, %v2730
        %v2770 = vadd.f32 %v2502, %v2734
        %v2771 = vadd.f32 %v2710, %v2730
        %v2772 = vadd.f32 %v2505, %v2734
        %v2773 = vadd.f32 %v2711, %v2730
        %v2774 = vadd.f32 %v2510, %v2734
        %v2775 = vadd.f32 %v2712, %v2730
        %v2776 = vadd.f32 %v2513, %v2734
        %v2777 = vadd.f32 %v2713, %v2730
        %v2778 = vadd.f32 %v2518, %v2734
        %v2779 = vadd.f32 %v2714, %v2730
        %v2780 = vadd.f32 %v2521, %v2734
        %v2781 = vadd.f32 %v2715, %v2730
        %v2782 = vadd.f32 %v2526, %v2734
        %v2783 = vadd.f32 %v2716, %v2730
        %v2784 = vadd.f32 %v2529, %v2734
        %v2785 = vadd.f32 %v2717, %v2730
        %v2786 = vadd.f32 %v2534, %v2734
        %v2787 = vadd.f32 %v2718, %v2730
        %v2788 = vadd.f32 %v2537, %v2734
        %v2789 = vadd.f32 %v2719, %v2730
        %v2790 = vadd.f32 %v2542, %v2734
        %v2791 = vadd.f32 %v2720, %v2730
        %v2792 = vadd.f32 %v2545, %v2734
        %v2793 = vadd.f32 %v2721, %v2730
        %v2794 = vadd.f32 %v2550, %v2734
        %v2795 = vadd.f32 %v2722, %v2730
        %v2796 = vadd.f32 %v2553, %v2734
        %v2797 = vadd.f32 %v2723, %v2730
        %v2798 = vadd.f32 %v2558, %v2734
        %v2799 = vadd.f32 %v2724, %v2730
        %v2800 = vadd.f32 %v2561, %v2734
        %v2801 = vld [vmem:[%s587] sm:$0x1]
        %v2803 = vlaneseq
        %v2804 = vshrl.u32 %v2803, 7
        %v2805 = vsub.s32 0, %v2804
        %v2806 = vrot.slane %v2801, %v2805
        %2807 = vrot.lane.b32.xlu0 %v2806, 64
        %v2808 = vpop.permute.xlu0 %2807
        %v2810 = vsel %vm2692, %v2738, %v2808
        %v2811 = vsel %vm2692, %v2740, %v2808
        %v2812 = vsel %vm2692, %v2742, %v2808
        %v2813 = vsel %vm2692, %v2744, %v2808
        %v2814 = vsel %vm2692, %v2746, %v2808
        %v2815 = vsel %vm2692, %v2748, %v2808
        %v2816 = vsel %vm2692, %v2750, %v2808
        %v2817 = vsel %vm2692, %v2752, %v2808
        %v2818 = vsel %vm2692, %v2754, %v2808
        %v2819 = vsel %vm2692, %v2756, %v2808
        %v2820 = vsel %vm2692, %v2758, %v2808
        %v2821 = vsel %vm2692, %v2760, %v2808
        %v2822 = vsel %vm2692, %v2762, %v2808
        %v2823 = vsel %vm2692, %v2764, %v2808
        %v2824 = vsel %vm2692, %v2766, %v2808
        %v2825 = vsel %vm2692, %v2768, %v2808
        %v2826 = vsel %vm2692, %v2770, %v2808
        %v2827 = vsel %vm2692, %v2772, %v2808
        %v2828 = vsel %vm2692, %v2774, %v2808
        %v2829 = vsel %vm2692, %v2776, %v2808
        %v2830 = vsel %vm2692, %v2778, %v2808
        %v2831 = vsel %vm2692, %v2780, %v2808
        %v2832 = vsel %vm2692, %v2782, %v2808
        %v2833 = vsel %vm2692, %v2784, %v2808
        %v2834 = vsel %vm2692, %v2786, %v2808
        %v2835 = vsel %vm2692, %v2788, %v2808
        %v2836 = vsel %vm2692, %v2790, %v2808
        %v2837 = vsel %vm2692, %v2792, %v2808
        %v2838 = vsel %vm2692, %v2794, %v2808
        %v2839 = vsel %vm2692, %v2796, %v2808
        %v2840 = vsel %vm2692, %v2798, %v2808
        %v2841 = vsel %vm2692, %v2800, %v2808
        %v2842 = vmax.f32 %v2737, 0.0
        %v2843 = vmax.f32 %v2810, 0.0
        %v2844 = vmax.f32 %v2739, 0.0
        %v2845 = vmax.f32 %v2811, 0.0
        %v2846 = vmax.f32 %v2741, 0.0
        %v2847 = vmax.f32 %v2812, 0.0
        %v2848 = vmax.f32 %v2743, 0.0
        %v2849 = vmax.f32 %v2813, 0.0
        %v2850 = vmax.f32 %v2745, 0.0
        %v2851 = vmax.f32 %v2814, 0.0
        %v2852 = vmax.f32 %v2747, 0.0
        %v2853 = vmax.f32 %v2815, 0.0
        %v2854 = vmax.f32 %v2749, 0.0
        %v2855 = vmax.f32 %v2816, 0.0
        %v2856 = vmax.f32 %v2751, 0.0
        %v2857 = vmax.f32 %v2817, 0.0
        %v2858 = vmax.f32 %v2753, 0.0
        %v2859 = vmax.f32 %v2818, 0.0
        %v2860 = vmax.f32 %v2755, 0.0
        %v2861 = vmax.f32 %v2819, 0.0
        %v2862 = vmax.f32 %v2757, 0.0
        %v2863 = vmax.f32 %v2820, 0.0
        %v2864 = vmax.f32 %v2759, 0.0
        %v2865 = vmax.f32 %v2821, 0.0
        %v2866 = vmax.f32 %v2761, 0.0
        %v2867 = vmax.f32 %v2822, 0.0
        %v2868 = vmax.f32 %v2763, 0.0
        %v2869 = vmax.f32 %v2823, 0.0
        %v2870 = vmax.f32 %v2765, 0.0
        %v2871 = vmax.f32 %v2824, 0.0
        %v2872 = vmax.f32 %v2767, 0.0
        %v2873 = vmax.f32 %v2825, 0.0
        %v2874 = vmax.f32 %v2769, 0.0
        %v2875 = vmax.f32 %v2826, 0.0
        %v2876 = vmax.f32 %v2771, 0.0
        %v2877 = vmax.f32 %v2827, 0.0
        %v2878 = vmax.f32 %v2773, 0.0
        %v2879 = vmax.f32 %v2828, 0.0
        %v2880 = vmax.f32 %v2775, 0.0
        %v2881 = vmax.f32 %v2829, 0.0
        %v2882 = vmax.f32 %v2777, 0.0
        %v2883 = vmax.f32 %v2830, 0.0
        %v2884 = vmax.f32 %v2779, 0.0
        %v2885 = vmax.f32 %v2831, 0.0
        %v2886 = vmax.f32 %v2781, 0.0
        %v2887 = vmax.f32 %v2832, 0.0
        %v2888 = vmax.f32 %v2783, 0.0
        %v2889 = vmax.f32 %v2833, 0.0
        %v2890 = vmax.f32 %v2785, 0.0
        %v2891 = vmax.f32 %v2834, 0.0
        %v2892 = vmax.f32 %v2787, 0.0
        %v2893 = vmax.f32 %v2835, 0.0
        %v2894 = vmax.f32 %v2789, 0.0
        %v2895 = vmax.f32 %v2836, 0.0
        %v2896 = vmax.f32 %v2791, 0.0
        %v2897 = vmax.f32 %v2837, 0.0
        %v2898 = vmax.f32 %v2793, 0.0
        %v2899 = vmax.f32 %v2838, 0.0
        %v2900 = vmax.f32 %v2795, 0.0
        %v2901 = vmax.f32 %v2839, 0.0
        %v2902 = vmax.f32 %v2797, 0.0
        %v2903 = vmax.f32 %v2840, 0.0
        %v2904 = vmax.f32 %v2799, 0.0
        %v2905 = vmax.f32 %v2841, 0.0
        %v2906 = vpack.c.bf16 %v2844, %v2842
        %v2907 = vpack.c.bf16 %v2845, %v2843
        %v2908 = vpack.c.bf16 %v2848, %v2846
        %v2909 = vpack.c.bf16 %v2849, %v2847
        %v2910 = vpack.c.bf16 %v2852, %v2850
        %v2911 = vpack.c.bf16 %v2853, %v2851
        %v2912 = vpack.c.bf16 %v2856, %v2854
        %v2913 = vpack.c.bf16 %v2857, %v2855
        %v2914 = vpack.c.bf16 %v2860, %v2858
        %v2915 = vpack.c.bf16 %v2861, %v2859
        %v2916 = vpack.c.bf16 %v2864, %v2862
        %v2917 = vpack.c.bf16 %v2865, %v2863
        %v2918 = vpack.c.bf16 %v2868, %v2866
        %v2919 = vpack.c.bf16 %v2869, %v2867
        %v2920 = vpack.c.bf16 %v2872, %v2870
        %v2921 = vpack.c.bf16 %v2873, %v2871
        %v2922 = vpack.c.bf16 %v2876, %v2874
        %v2923 = vpack.c.bf16 %v2877, %v2875
        %v2924 = vpack.c.bf16 %v2880, %v2878
        %v2925 = vpack.c.bf16 %v2881, %v2879
        %v2926 = vpack.c.bf16 %v2884, %v2882
        %v2927 = vpack.c.bf16 %v2885, %v2883
        %v2928 = vpack.c.bf16 %v2888, %v2886
        %v2929 = vpack.c.bf16 %v2889, %v2887
        %v2930 = vpack.c.bf16 %v2892, %v2890
        %v2931 = vpack.c.bf16 %v2893, %v2891
        %v2932 = vpack.c.bf16 %v2896, %v2894
        %v2933 = vpack.c.bf16 %v2897, %v2895
        %v2934 = vpack.c.bf16 %v2900, %v2898
        %v2935 = vpack.c.bf16 %v2901, %v2899
        %v2936 = vpack.c.bf16 %v2904, %v2902
        %v2937 = vpack.c.bf16 %v2905, %v2903
        %v2938 = vld [vmem:[%s8] sm:$0xff]
        %v2939 = vld [vmem:[%s8 + $0x8] sm:$0xff]
        %v2940 = vld [vmem:[%s8 + $0x10] sm:$0xff]
        %v2941 = vld [vmem:[%s8 + $0x18] sm:$0xff]
        %v2942 = vld [vmem:[%s8 + $0x20] sm:$0xff]
        %v2943 = vld [vmem:[%s8 + $0x28] sm:$0xff]
        %v2944 = vld [vmem:[%s8 + $0x30] sm:$0xff]
        %v2945 = vld [vmem:[%s8 + $0x38] sm:$0xff]
        %v2946 = vld [vmem:[%s8 + $0x40] sm:$0xff]
        %v2947 = vld [vmem:[%s8 + $0x48] sm:$0xff]
        %v2948 = vld [vmem:[%s8 + $0x50] sm:$0xff]
        %v2949 = vld [vmem:[%s8 + $0x58] sm:$0xff]
        %v2950 = vld [vmem:[%s8 + $0x60] sm:$0xff]
        %v2951 = vld [vmem:[%s8 + $0x68] sm:$0xff]
        %v2952 = vld [vmem:[%s8 + $0x70] sm:$0xff]
        %v2953 = vld [vmem:[%s8 + $0x78] sm:$0xff]
        %v2954 = vld [vmem:[%s8 + $0x80] sm:$0xff]
        %v2955 = vld [vmem:[%s8 + $0x88] sm:$0xff]
        %v2956 = vld [vmem:[%s8 + $0x90] sm:$0xff]
        %v2957 = vld [vmem:[%s8 + $0x98] sm:$0xff]
        %v2958 = vld [vmem:[%s8 + $0xa0] sm:$0xff]
        %v2959 = vld [vmem:[%s8 + $0xa8] sm:$0xff]
        %v2960 = vld [vmem:[%s8 + $0xb0] sm:$0xff]
        %v2961 = vld [vmem:[%s8 + $0xb8] sm:$0xff]
        %v2962 = vld [vmem:[%s8 + $0xc0] sm:$0xff]
        %v2963 = vld [vmem:[%s8 + $0xc8] sm:$0xff]
        %v2964 = vld [vmem:[%s8 + $0xd0] sm:$0xff]
        %v2965 = vld [vmem:[%s8 + $0xd8] sm:$0xff]
        %v2966 = vld [vmem:[%s8 + $0xe0] sm:$0xff]
        %v2967 = vld [vmem:[%s8 + $0xe8] sm:$0xff]
        %v2968 = vld [vmem:[%s8 + $0xf0] sm:$0xff]
        %v2969 = vld [vmem:[%s8 + $0xf8] sm:$0xff]
        %v2970 = vld [vmem:[%s9] sm:$0x3]
        %v2972 = vlaneseq
        %v2973 = vshrl.u32 %v2972, 7
        %v2974 = vsub.s32 0, %v2973
        %v2975 = vrot.slane %v2970, %v2974
        %v2976 = vlaneseq
        %v2977 = vshrl.u32 %v2976, 7
        %v2978 = vsub.s32 1, %v2977
        %v2979 = vrot.slane %v2970, %v2978
        %v3014 = vunpack.c.l.b16 %v2938
        %v3015 = vunpack.c.h.b16 %v2938
        %v3016 = vunpack.c.l.b16 %v2939
        %v3017 = vunpack.c.h.b16 %v2939
        %v3018 = vunpack.c.l.b16 %v2940
        %v3019 = vunpack.c.h.b16 %v2940
        %v3020 = vunpack.c.l.b16 %v2941
        %v3021 = vunpack.c.h.b16 %v2941
        %v3022 = vunpack.c.l.b16 %v2942
        %v3023 = vunpack.c.h.b16 %v2942
        %v3024 = vunpack.c.l.b16 %v2943
        %v3025 = vunpack.c.h.b16 %v2943
        %v3026 = vunpack.c.l.b16 %v2944
        %v3027 = vunpack.c.h.b16 %v2944
        %v3028 = vunpack.c.l.b16 %v2945
        %v3029 = vunpack.c.h.b16 %v2945
        %v3030 = vunpack.c.l.b16 %v2946
        %v3031 = vunpack.c.h.b16 %v2946
        %v3032 = vunpack.c.l.b16 %v2947
        %v3033 = vunpack.c.h.b16 %v2947
        %v3034 = vunpack.c.l.b16 %v2948
        %v3035 = vunpack.c.h.b16 %v2948
        %v3036 = vunpack.c.l.b16 %v2949
        %v3037 = vunpack.c.h.b16 %v2949
        %v3038 = vunpack.c.l.b16 %v2950
        %v3039 = vunpack.c.h.b16 %v2950
        %v3040 = vunpack.c.l.b16 %v2951
        %v3041 = vunpack.c.h.b16 %v2951
        %v3042 = vunpack.c.l.b16 %v2952
        %v3043 = vunpack.c.h.b16 %v2952
        %v3044 = vunpack.c.l.b16 %v2953
        %v3045 = vunpack.c.h.b16 %v2953
        %v3046 = vunpack.c.l.b16 %v2954
        %v3047 = vunpack.c.h.b16 %v2954
        %v3048 = vunpack.c.l.b16 %v2955
        %v3049 = vunpack.c.h.b16 %v2955
        %v3050 = vunpack.c.l.b16 %v2956
        %v3051 = vunpack.c.h.b16 %v2956
        %v3052 = vunpack.c.l.b16 %v2957
        %v3053 = vunpack.c.h.b16 %v2957
        %v3054 = vunpack.c.l.b16 %v2958
        %v3055 = vunpack.c.h.b16 %v2958
        %v3056 = vunpack.c.l.b16 %v2959
        %v3057 = vunpack.c.h.b16 %v2959
        %v3058 = vunpack.c.l.b16 %v2960
        %v3059 = vunpack.c.h.b16 %v2960
        %v3060 = vunpack.c.l.b16 %v2961
        %v3061 = vunpack.c.h.b16 %v2961
        %v3062 = vunpack.c.l.b16 %v2962
        %v3063 = vunpack.c.h.b16 %v2962
        %v3064 = vunpack.c.l.b16 %v2963
        %v3065 = vunpack.c.h.b16 %v2963
        %v3066 = vunpack.c.l.b16 %v2964
        %v3067 = vunpack.c.h.b16 %v2964
        %v3068 = vunpack.c.l.b16 %v2965
        %v3069 = vunpack.c.h.b16 %v2965
        %v3070 = vunpack.c.l.b16 %v2966
        %v3071 = vunpack.c.h.b16 %v2966
        %v3072 = vunpack.c.l.b16 %v2967
        %v3073 = vunpack.c.h.b16 %v2967
        %v3074 = vunpack.c.l.b16 %v2968
        %v3075 = vunpack.c.h.b16 %v2968
        %v3076 = vunpack.c.l.b16 %v2969
        %v3077 = vunpack.c.h.b16 %v2969
        %v3078 = vpack.c.b16 %v3016, %v3014
        %v3079 = vpack.c.b16 %v3017, %v3015
        %v3080 = vpack.c.b16 %v3020, %v3018
        %v3081 = vpack.c.b16 %v3021, %v3019
        %v3082 = vpack.c.b16 %v3024, %v3022
        %v3083 = vpack.c.b16 %v3025, %v3023
        %v3084 = vpack.c.b16 %v3028, %v3026
        %v3085 = vpack.c.b16 %v3029, %v3027
        %v3086 = vpack.c.b16 %v3032, %v3030
        %v3087 = vpack.c.b16 %v3033, %v3031
        %v3088 = vpack.c.b16 %v3036, %v3034
        %v3089 = vpack.c.b16 %v3037, %v3035
        %v3090 = vpack.c.b16 %v3040, %v3038
        %v3091 = vpack.c.b16 %v3041, %v3039
        %v3092 = vpack.c.b16 %v3044, %v3042
        %v3093 = vpack.c.b16 %v3045, %v3043
        %v3094 = vpack.c.b16 %v3048, %v3046
        %v3095 = vpack.c.b16 %v3049, %v3047
        %v3096 = vpack.c.b16 %v3052, %v3050
        %v3097 = vpack.c.b16 %v3053, %v3051
        %v3098 = vpack.c.b16 %v3056, %v3054
        %v3099 = vpack.c.b16 %v3057, %v3055
        %v3100 = vpack.c.b16 %v3060, %v3058
        %v3101 = vpack.c.b16 %v3061, %v3059
        %v3102 = vpack.c.b16 %v3064, %v3062
        %v3103 = vpack.c.b16 %v3065, %v3063
        %v3104 = vpack.c.b16 %v3068, %v3066
        %v3105 = vpack.c.b16 %v3069, %v3067
        %v3106 = vpack.c.b16 %v3072, %v3070
        %v3107 = vpack.c.b16 %v3073, %v3071
        %v3108 = vpack.c.b16 %v3076, %v3074
        %v3109 = vpack.c.b16 %v3077, %v3075
        %3142 = vmatprep.subr.bf16.mxu0 %v3079
        %3143 = vmatpush1.bf16.msra.mxu0 %v3078
        %3144 = vmatprep.subr.bf16.mxu0 %v3081
        %3145 = vmatpush1.bf16.msra.mxu0 %v3080
        %3146 = vmatprep.subr.bf16.mxu0 %v3083
        %3147 = vmatpush1.bf16.msra.mxu0 %v3082
        %3148 = vmatprep.subr.bf16.mxu0 %v3085
        %3149 = vmatpush1.bf16.msra.mxu0 %v3084
        %3150 = vmatprep.subr.bf16.mxu0 %v3087
        %3151 = vmatpush1.bf16.msra.mxu0 %v3086
        %3152 = vmatprep.subr.bf16.mxu0 %v3089
        %3153 = vmatpush1.bf16.msra.mxu0 %v3088
        %3154 = vmatprep.subr.bf16.mxu0 %v3091
        %3155 = vmatpush1.bf16.msra.mxu0 %v3090
        %3156 = vmatprep.subr.bf16.mxu0 %v3093
        %3157 = vmatpush1.bf16.msra.mxu0 %v3092
        %3158 = vmatprep.subr.bf16.mxu0 %v3095
        %3159 = vmatpush1.bf16.msra.mxu0 %v3094
        %3160 = vmatprep.subr.bf16.mxu0 %v3097
        %3161 = vmatpush1.bf16.msra.mxu0 %v3096
        %3162 = vmatprep.subr.bf16.mxu0 %v3099
        %3163 = vmatpush1.bf16.msra.mxu0 %v3098
        %3164 = vmatprep.subr.bf16.mxu0 %v3101
        %3165 = vmatpush1.bf16.msra.mxu0 %v3100
        %3166 = vmatprep.subr.bf16.mxu0 %v3103
        %3167 = vmatpush1.bf16.msra.mxu0 %v3102
        %3168 = vmatprep.subr.bf16.mxu0 %v3105
        %3169 = vmatpush1.bf16.msra.mxu0 %v3104
        %3170 = vmatprep.subr.bf16.mxu0 %v3107
        %3171 = vmatpush1.bf16.msra.mxu0 %v3106
        %3172 = vmatprep.subr.bf16.mxu0 %v3109
        %3173 = vmatpush1.bf16.msra.mxu0 %v3108
        %3174 = vmatprep.mubr.bf16.mxu0 %v2907
        %3175 = vmatmul.mubr.bf16.gmra.mrb[0].mxu0 %v2906
        %v3176 = vpop.f32.mrb[0].mxu0
        %v3177 = vadd.f32 %v2975, %v3176
        %v3178 = vpop.f32.mrb[0].mxu0
        %v3179 = vadd.f32 %v2979, %v3178
        %v3180 = vpop.f32.mrb[0].mxu0
        %v3181 = vadd.f32 %v2975, %v3180
        %v3182 = vpop.f32.mrb[0].mxu0
        %v3183 = vadd.f32 %v2979, %v3182
        %3184 = vmatprep.mubr.bf16.mxu0 %v2909
        %3185 = vmatmul.mubr.bf16.gmra.mrb[0].mxu0 %v2908
        %v3186 = vpop.f32.mrb[0].mxu0
        %v3187 = vadd.f32 %v2975, %v3186
        %v3188 = vpop.f32.mrb[0].mxu0
        %v3189 = vadd.f32 %v2979, %v3188
        %v3190 = vpop.f32.mrb[0].mxu0
        %v3191 = vadd.f32 %v2975, %v3190
        %v3192 = vpop.f32.mrb[0].mxu0
        %v3193 = vadd.f32 %v2979, %v3192
        %3194 = vmatprep.mubr.bf16.mxu0 %v2911
        %3195 = vmatmul.mubr.bf16.gmra.mrb[0].mxu0 %v2910
        %v3196 = vpop.f32.mrb[0].mxu0
        %v3197 = vadd.f32 %v2975, %v3196
        %v3198 = vpop.f32.mrb[0].mxu0
        %v3199 = vadd.f32 %v2979, %v3198
        %v3200 = vpop.f32.mrb[0].mxu0
        %v3201 = vadd.f32 %v2975, %v3200
        %v3202 = vpop.f32.mrb[0].mxu0
        %v3203 = vadd.f32 %v2979, %v3202
        %3204 = vmatprep.mubr.bf16.mxu0 %v2913
        %3205 = vmatmul.mubr.bf16.gmra.mrb[0].mxu0 %v2912
        %v3206 = vpop.f32.mrb[0].mxu0
        %v3207 = vadd.f32 %v2975, %v3206
        %v3208 = vpop.f32.mrb[0].mxu0
        %v3209 = vadd.f32 %v2979, %v3208
        %v3210 = vpop.f32.mrb[0].mxu0
        %v3211 = vadd.f32 %v2975, %v3210
        %v3212 = vpop.f32.mrb[0].mxu0
        %v3213 = vadd.f32 %v2979, %v3212
        %3214 = vmatprep.mubr.bf16.mxu0 %v2915
        %3215 = vmatmul.mubr.bf16.gmra.mrb[0].mxu0 %v2914
        %v3216 = vpop.f32.mrb[0].mxu0
        %v3217 = vadd.f32 %v2975, %v3216
        %v3218 = vpop.f32.mrb[0].mxu0
        %v3219 = vadd.f32 %v2979, %v3218
        %v3220 = vpop.f32.mrb[0].mxu0
        %v3221 = vadd.f32 %v2975, %v3220
        %v3222 = vpop.f32.mrb[0].mxu0
        %v3223 = vadd.f32 %v2979, %v3222
        %3224 = vmatprep.mubr.bf16.mxu0 %v2917
        %3225 = vmatmul.mubr.bf16.gmra.mrb[0].mxu0 %v2916
        %v3226 = vpop.f32.mrb[0].mxu0
        %v3227 = vadd.f32 %v2975, %v3226
        %v3228 = vpop.f32.mrb[0].mxu0
        %v3229 = vadd.f32 %v2979, %v3228
        %v3230 = vpop.f32.mrb[0].mxu0
        %v3231 = vadd.f32 %v2975, %v3230
        %v3232 = vpop.f32.mrb[0].mxu0
        %v3233 = vadd.f32 %v2979, %v3232
        %3234 = vmatprep.mubr.bf16.mxu0 %v2919
        %3235 = vmatmul.mubr.bf16.gmra.mrb[0].mxu0 %v2918
        %v3236 = vpop.f32.mrb[0].mxu0
        %v3237 = vadd.f32 %v2975, %v3236
        %v3238 = vpop.f32.mrb[0].mxu0
        %v3239 = vadd.f32 %v2979, %v3238
        %v3240 = vpop.f32.mrb[0].mxu0
        %v3241 = vadd.f32 %v2975, %v3240
        %v3242 = vpop.f32.mrb[0].mxu0
        %v3243 = vadd.f32 %v2979, %v3242
        %3244 = vmatprep.mubr.bf16.mxu0 %v2921
        %3245 = vmatmul.mubr.bf16.gmra.mrb[0].mxu0 %v2920
        %v3246 = vpop.f32.mrb[0].mxu0
        %v3247 = vadd.f32 %v2975, %v3246
        %v3248 = vpop.f32.mrb[0].mxu0
        %v3249 = vadd.f32 %v2979, %v3248
        %v3250 = vpop.f32.mrb[0].mxu0
        %v3251 = vadd.f32 %v2975, %v3250
        %v3252 = vpop.f32.mrb[0].mxu0
        %v3253 = vadd.f32 %v2979, %v3252
        %3254 = vmatprep.mubr.bf16.mxu0 %v2923
        %3255 = vmatmul.mubr.bf16.gmra.mrb[0].mxu0 %v2922
        %v3256 = vpop.f32.mrb[0].mxu0
        %v3257 = vadd.f32 %v2975, %v3256
        %v3258 = vpop.f32.mrb[0].mxu0
        %v3259 = vadd.f32 %v2979, %v3258
        %v3260 = vpop.f32.mrb[0].mxu0
        %v3261 = vadd.f32 %v2975, %v3260
        %v3262 = vpop.f32.mrb[0].mxu0
        %v3263 = vadd.f32 %v2979, %v3262
        %3264 = vmatprep.mubr.bf16.mxu0 %v2925
        %3265 = vmatmul.mubr.bf16.gmra.mrb[0].mxu0 %v2924
        %v3266 = vpop.f32.mrb[0].mxu0
        %v3267 = vadd.f32 %v2975, %v3266
        %v3268 = vpop.f32.mrb[0].mxu0
        %v3269 = vadd.f32 %v2979, %v3268
        %v3270 = vpop.f32.mrb[0].mxu0
        %v3271 = vadd.f32 %v2975, %v3270
        %v3272 = vpop.f32.mrb[0].mxu0
        %v3273 = vadd.f32 %v2979, %v3272
        %3274 = vmatprep.mubr.bf16.mxu0 %v2927
        %3275 = vmatmul.mubr.bf16.gmra.mrb[0].mxu0 %v2926
        %v3276 = vpop.f32.mrb[0].mxu0
        %v3277 = vadd.f32 %v2975, %v3276
        %v3278 = vpop.f32.mrb[0].mxu0
        %v3279 = vadd.f32 %v2979, %v3278
        %v3280 = vpop.f32.mrb[0].mxu0
        %v3281 = vadd.f32 %v2975, %v3280
        %v3282 = vpop.f32.mrb[0].mxu0
        %v3283 = vadd.f32 %v2979, %v3282
        %3284 = vmatprep.mubr.bf16.mxu0 %v2929
        %3285 = vmatmul.mubr.bf16.gmra.mrb[0].mxu0 %v2928
        %v3286 = vpop.f32.mrb[0].mxu0
        %v3287 = vadd.f32 %v2975, %v3286
        %v3288 = vpop.f32.mrb[0].mxu0
        %v3289 = vadd.f32 %v2979, %v3288
        %v3290 = vpop.f32.mrb[0].mxu0
        %v3291 = vadd.f32 %v2975, %v3290
        %v3292 = vpop.f32.mrb[0].mxu0
        %v3293 = vadd.f32 %v2979, %v3292
        %3294 = vmatprep.mubr.bf16.mxu0 %v2931
        %3295 = vmatmul.mubr.bf16.gmra.mrb[0].mxu0 %v2930
        %v3296 = vpop.f32.mrb[0].mxu0
        %v3297 = vadd.f32 %v2975, %v3296
        %v3298 = vpop.f32.mrb[0].mxu0
        %v3299 = vadd.f32 %v2979, %v3298
        %v3300 = vpop.f32.mrb[0].mxu0
        %v3301 = vadd.f32 %v2975, %v3300
        %v3302 = vpop.f32.mrb[0].mxu0
        %v3303 = vadd.f32 %v2979, %v3302
        %3304 = vmatprep.mubr.bf16.mxu0 %v2933
        %3305 = vmatmul.mubr.bf16.gmra.mrb[0].mxu0 %v2932
        %v3306 = vpop.f32.mrb[0].mxu0
        %v3307 = vadd.f32 %v2975, %v3306
        %v3308 = vpop.f32.mrb[0].mxu0
        %v3309 = vadd.f32 %v2979, %v3308
        %v3310 = vpop.f32.mrb[0].mxu0
        %v3311 = vadd.f32 %v2975, %v3310
        %v3312 = vpop.f32.mrb[0].mxu0
        %v3313 = vadd.f32 %v2979, %v3312
        %3314 = vmatprep.mubr.bf16.mxu0 %v2935
        %3315 = vmatmul.mubr.bf16.gmra.mrb[0].mxu0 %v2934
        %v3316 = vpop.f32.mrb[0].mxu0
        %v3317 = vadd.f32 %v2975, %v3316
        %v3318 = vpop.f32.mrb[0].mxu0
        %v3319 = vadd.f32 %v2979, %v3318
        %v3320 = vpop.f32.mrb[0].mxu0
        %v3321 = vadd.f32 %v2975, %v3320
        %v3322 = vpop.f32.mrb[0].mxu0
        %v3323 = vadd.f32 %v2979, %v3322
        %3324 = vmatprep.mubr.bf16.mxu0 %v2937
        %3325 = vmatmul.mubr.bf16.gmra.mrb[0].mxu0 %v2936
        %v3326 = vpop.f32.mrb[0].mxu0
        %v3327 = vadd.f32 %v2975, %v3326
        %v3328 = vpop.f32.mrb[0].mxu0
        %v3329 = vadd.f32 %v2979, %v3328
        %v3330 = vpop.f32.mrb[0].mxu0
        %v3331 = vadd.f32 %v2975, %v3330
        %v3332 = vpop.f32.mrb[0].mxu0
        %v3333 = vadd.f32 %v2979, %v3332
        %3334 = vdwg.mxu0
        %v3335 = vsel %vm2692, %v3179, 0.0
        %v3336 = vadd.f32 %v3177, %v3335
        %3337 = vadd.xlane.f32.xlu0 %v3336
        %v3338 = vpop.xlane.xlu0 %3337
        %v3339 = vsel %vm2692, %v3183, 0.0
        %v3340 = vadd.f32 %v3181, %v3339
        %3341 = vadd.xlane.f32.xlu0 %v3340
        %v3342 = vpop.xlane.xlu0 %3341
        %v3343 = vsel %vm2692, %v3189, 0.0
        %v3344 = vadd.f32 %v3187, %v3343
        %3345 = vadd.xlane.f32.xlu0 %v3344
        %v3346 = vpop.xlane.xlu0 %3345
        %v3347 = vsel %vm2692, %v3193, 0.0
        %v3348 = vadd.f32 %v3191, %v3347
        %3349 = vadd.xlane.f32.xlu0 %v3348
        %v3350 = vpop.xlane.xlu0 %3349
        %v3351 = vsel %vm2692, %v3199, 0.0
        %v3352 = vadd.f32 %v3197, %v3351
        %3353 = vadd.xlane.f32.xlu0 %v3352
        %v3354 = vpop.xlane.xlu0 %3353
        %v3355 = vsel %vm2692, %v3203, 0.0
        %v3356 = vadd.f32 %v3201, %v3355
        %3357 = vadd.xlane.f32.xlu0 %v3356
        %v3358 = vpop.xlane.xlu0 %3357
        %v3359 = vsel %vm2692, %v3209, 0.0
        %v3360 = vadd.f32 %v3207, %v3359
        %3361 = vadd.xlane.f32.xlu0 %v3360
        %v3362 = vpop.xlane.xlu0 %3361
        %v3363 = vsel %vm2692, %v3213, 0.0
        %v3364 = vadd.f32 %v3211, %v3363
        %3365 = vadd.xlane.f32.xlu0 %v3364
        %v3366 = vpop.xlane.xlu0 %3365
        %v3367 = vsel %vm2692, %v3219, 0.0
        %v3368 = vadd.f32 %v3217, %v3367
        %3369 = vadd.xlane.f32.xlu0 %v3368
        %v3370 = vpop.xlane.xlu0 %3369
        %v3371 = vsel %vm2692, %v3223, 0.0
        %v3372 = vadd.f32 %v3221, %v3371
        %3373 = vadd.xlane.f32.xlu0 %v3372
        %v3374 = vpop.xlane.xlu0 %3373
        %v3375 = vsel %vm2692, %v3229, 0.0
        %v3376 = vadd.f32 %v3227, %v3375
        %3377 = vadd.xlane.f32.xlu0 %v3376
        %v3378 = vpop.xlane.xlu0 %3377
        %v3379 = vsel %vm2692, %v3233, 0.0
        %v3380 = vadd.f32 %v3231, %v3379
        %3381 = vadd.xlane.f32.xlu0 %v3380
        %v3382 = vpop.xlane.xlu0 %3381
        %v3383 = vsel %vm2692, %v3239, 0.0
        %v3384 = vadd.f32 %v3237, %v3383
        %3385 = vadd.xlane.f32.xlu0 %v3384
        %v3386 = vpop.xlane.xlu0 %3385
        %v3387 = vsel %vm2692, %v3243, 0.0
        %v3388 = vadd.f32 %v3241, %v3387
        %3389 = vadd.xlane.f32.xlu0 %v3388
        %v3390 = vpop.xlane.xlu0 %3389
        %v3391 = vsel %vm2692, %v3249, 0.0
        %v3392 = vadd.f32 %v3247, %v3391
        %3393 = vadd.xlane.f32.xlu0 %v3392
        %v3394 = vpop.xlane.xlu0 %3393
        %v3395 = vsel %vm2692, %v3253, 0.0
        %v3396 = vadd.f32 %v3251, %v3395
        %3397 = vadd.xlane.f32.xlu0 %v3396
        %v3398 = vpop.xlane.xlu0 %3397
        %v3399 = vsel %vm2692, %v3259, 0.0
        %v3400 = vadd.f32 %v3257, %v3399
        %3401 = vadd.xlane.f32.xlu0 %v3400
        %v3402 = vpop.xlane.xlu0 %3401
        %v3403 = vsel %vm2692, %v3263, 0.0
        %v3404 = vadd.f32 %v3261, %v3403
        %3405 = vadd.xlane.f32.xlu0 %v3404
        %v3406 = vpop.xlane.xlu0 %3405
        %v3407 = vsel %vm2692, %v3269, 0.0
        %v3408 = vadd.f32 %v3267, %v3407
        %3409 = vadd.xlane.f32.xlu0 %v3408
        %v3410 = vpop.xlane.xlu0 %3409
        %v3411 = vsel %vm2692, %v3273, 0.0
        %v3412 = vadd.f32 %v3271, %v3411
        %3413 = vadd.xlane.f32.xlu0 %v3412
        %v3414 = vpop.xlane.xlu0 %3413
        %v3415 = vsel %vm2692, %v3279, 0.0
        %v3416 = vadd.f32 %v3277, %v3415
        %3417 = vadd.xlane.f32.xlu0 %v3416
        %v3418 = vpop.xlane.xlu0 %3417
        %v3419 = vsel %vm2692, %v3283, 0.0
        %v3420 = vadd.f32 %v3281, %v3419
        %3421 = vadd.xlane.f32.xlu0 %v3420
        %v3422 = vpop.xlane.xlu0 %3421
        %v3423 = vsel %vm2692, %v3289, 0.0
        %v3424 = vadd.f32 %v3287, %v3423
        %3425 = vadd.xlane.f32.xlu0 %v3424
        %v3426 = vpop.xlane.xlu0 %3425
        %v3427 = vsel %vm2692, %v3293, 0.0
        %v3428 = vadd.f32 %v3291, %v3427
        %3429 = vadd.xlane.f32.xlu0 %v3428
        %v3430 = vpop.xlane.xlu0 %3429
        %v3431 = vsel %vm2692, %v3299, 0.0
        %v3432 = vadd.f32 %v3297, %v3431
        %3433 = vadd.xlane.f32.xlu0 %v3432
        %v3434 = vpop.xlane.xlu0 %3433
        %v3435 = vsel %vm2692, %v3303, 0.0
        %v3436 = vadd.f32 %v3301, %v3435
        %3437 = vadd.xlane.f32.xlu0 %v3436
        %v3438 = vpop.xlane.xlu0 %3437
        %v3439 = vsel %vm2692, %v3309, 0.0
        %v3440 = vadd.f32 %v3307, %v3439
        %3441 = vadd.xlane.f32.xlu0 %v3440
        %v3442 = vpop.xlane.xlu0 %3441
        %v3443 = vsel %vm2692, %v3313, 0.0
        %v3444 = vadd.f32 %v3311, %v3443
        %3445 = vadd.xlane.f32.xlu0 %v3444
        %v3446 = vpop.xlane.xlu0 %3445
        %v3447 = vsel %vm2692, %v3319, 0.0
        %v3448 = vadd.f32 %v3317, %v3447
        %3449 = vadd.xlane.f32.xlu0 %v3448
        %v3450 = vpop.xlane.xlu0 %3449
        %v3451 = vsel %vm2692, %v3323, 0.0
        %v3452 = vadd.f32 %v3321, %v3451
        %3453 = vadd.xlane.f32.xlu0 %v3452
        %v3454 = vpop.xlane.xlu0 %3453
        %v3455 = vsel %vm2692, %v3329, 0.0
        %v3456 = vadd.f32 %v3327, %v3455
        %3457 = vadd.xlane.f32.xlu0 %v3456
        %v3458 = vpop.xlane.xlu0 %3457
        %v3459 = vsel %vm2692, %v3333, 0.0
        %v3460 = vadd.f32 %v3331, %v3459
        %3461 = vadd.xlane.f32.xlu0 %v3460
        %v3462 = vpop.xlane.xlu0 %3461
        %v3463 = vrcp.pop 192.0
        %v3464 = vmul.f32 %v3338, %v3463
        %v3465 = vmul.f32 %v3342, %v3463
        %v3466 = vmul.f32 %v3346, %v3463
        %v3467 = vmul.f32 %v3350, %v3463
        %v3468 = vmul.f32 %v3354, %v3463
        %v3469 = vmul.f32 %v3358, %v3463
        %v3470 = vmul.f32 %v3362, %v3463
        %v3471 = vmul.f32 %v3366, %v3463
        %v3472 = vmul.f32 %v3370, %v3463
        %v3473 = vmul.f32 %v3374, %v3463
        %v3474 = vmul.f32 %v3378, %v3463
        %v3475 = vmul.f32 %v3382, %v3463
        %v3476 = vmul.f32 %v3386, %v3463
        %v3477 = vmul.f32 %v3390, %v3463
        %v3478 = vmul.f32 %v3394, %v3463
        %v3479 = vmul.f32 %v3398, %v3463
        %v3480 = vmul.f32 %v3402, %v3463
        %v3481 = vmul.f32 %v3406, %v3463
        %v3482 = vmul.f32 %v3410, %v3463
        %v3483 = vmul.f32 %v3414, %v3463
        %v3484 = vmul.f32 %v3418, %v3463
        %v3485 = vmul.f32 %v3422, %v3463
        %v3486 = vmul.f32 %v3426, %v3463
        %v3487 = vmul.f32 %v3430, %v3463
        %v3488 = vmul.f32 %v3434, %v3463
        %v3489 = vmul.f32 %v3438, %v3463
        %v3490 = vmul.f32 %v3442, %v3463
        %v3491 = vmul.f32 %v3446, %v3463
        %v3492 = vmul.f32 %v3450, %v3463
        %v3493 = vmul.f32 %v3454, %v3463
        %v3494 = vmul.f32 %v3458, %v3463
        %v3495 = vmul.f32 %v3462, %v3463
        %v3496 = vsub.f32 %v3177, %v3464
        %v3497 = vsub.f32 %v3179, %v3464
        %v3498 = vsub.f32 %v3181, %v3465
        %v3499 = vsub.f32 %v3183, %v3465
        %v3500 = vsub.f32 %v3187, %v3466
        %v3501 = vsub.f32 %v3189, %v3466
        %v3502 = vsub.f32 %v3191, %v3467
        %v3503 = vsub.f32 %v3193, %v3467
        %v3504 = vsub.f32 %v3197, %v3468
        %v3505 = vsub.f32 %v3199, %v3468
        %v3506 = vsub.f32 %v3201, %v3469
        %v3507 = vsub.f32 %v3203, %v3469
        %v3508 = vsub.f32 %v3207, %v3470
        %v3509 = vsub.f32 %v3209, %v3470
        %v3510 = vsub.f32 %v3211, %v3471
        %v3511 = vsub.f32 %v3213, %v3471
        %v3512 = vsub.f32 %v3217, %v3472
        %v3513 = vsub.f32 %v3219, %v3472
        %v3514 = vsub.f32 %v3221, %v3473
        %v3515 = vsub.f32 %v3223, %v3473
        %v3516 = vsub.f32 %v3227, %v3474
        %v3517 = vsub.f32 %v3229, %v3474
        %v3518 = vsub.f32 %v3231, %v3475
        %v3519 = vsub.f32 %v3233, %v3475
        %v3520 = vsub.f32 %v3237, %v3476
        %v3521 = vsub.f32 %v3239, %v3476
        %v3522 = vsub.f32 %v3241, %v3477
        %v3523 = vsub.f32 %v3243, %v3477
        %v3524 = vsub.f32 %v3247, %v3478
        %v3525 = vsub.f32 %v3249, %v3478
        %v3526 = vsub.f32 %v3251, %v3479
        %v3527 = vsub.f32 %v3253, %v3479
        %v3528 = vsub.f32 %v3257, %v3480
        %v3529 = vsub.f32 %v3259, %v3480
        %v3530 = vsub.f32 %v3261, %v3481
        %v3531 = vsub.f32 %v3263, %v3481
        %v3532 = vsub.f32 %v3267, %v3482
        %v3533 = vsub.f32 %v3269, %v3482
        %v3534 = vsub.f32 %v3271, %v3483
        %v3535 = vsub.f32 %v3273, %v3483
        %v3536 = vsub.f32 %v3277, %v3484
        %v3537 = vsub.f32 %v3279, %v3484
        %v3538 = vsub.f32 %v3281, %v3485
        %v3539 = vsub.f32 %v3283, %v3485
        %v3540 = vsub.f32 %v3287, %v3486
        %v3541 = vsub.f32 %v3289, %v3486
        %v3542 = vsub.f32 %v3291, %v3487
        %v3543 = vsub.f32 %v3293, %v3487
        %v3544 = vsub.f32 %v3297, %v3488
        %v3545 = vsub.f32 %v3299, %v3488
        %v3546 = vsub.f32 %v3301, %v3489
        %v3547 = vsub.f32 %v3303, %v3489
        %v3548 = vsub.f32 %v3307, %v3490
        %v3549 = vsub.f32 %v3309, %v3490
        %v3550 = vsub.f32 %v3311, %v3491
        %v3551 = vsub.f32 %v3313, %v3491
        %v3552 = vsub.f32 %v3317, %v3492
        %v3553 = vsub.f32 %v3319, %v3492
        %v3554 = vsub.f32 %v3321, %v3493
        %v3555 = vsub.f32 %v3323, %v3493
        %v3556 = vsub.f32 %v3327, %v3494
        %v3557 = vsub.f32 %v3329, %v3494
        %v3558 = vsub.f32 %v3331, %v3495
        %v3559 = vsub.f32 %v3333, %v3495
        %v3560 = vmul.f32 %v3496, %v3496
        %v3561 = vmul.f32 %v3497, %v3497
        %v3562 = vmul.f32 %v3498, %v3498
        %v3563 = vmul.f32 %v3499, %v3499
        %v3564 = vmul.f32 %v3500, %v3500
        %v3565 = vmul.f32 %v3501, %v3501
        %v3566 = vmul.f32 %v3502, %v3502
        %v3567 = vmul.f32 %v3503, %v3503
        %v3568 = vmul.f32 %v3504, %v3504
        %v3569 = vmul.f32 %v3505, %v3505
        %v3570 = vmul.f32 %v3506, %v3506
        %v3571 = vmul.f32 %v3507, %v3507
        %v3572 = vmul.f32 %v3508, %v3508
        %v3573 = vmul.f32 %v3509, %v3509
        %v3574 = vmul.f32 %v3510, %v3510
        %v3575 = vmul.f32 %v3511, %v3511
        %v3576 = vmul.f32 %v3512, %v3512
        %v3577 = vmul.f32 %v3513, %v3513
        %v3578 = vmul.f32 %v3514, %v3514
        %v3579 = vmul.f32 %v3515, %v3515
        %v3580 = vmul.f32 %v3516, %v3516
        %v3581 = vmul.f32 %v3517, %v3517
        %v3582 = vmul.f32 %v3518, %v3518
        %v3583 = vmul.f32 %v3519, %v3519
        %v3584 = vmul.f32 %v3520, %v3520
        %v3585 = vmul.f32 %v3521, %v3521
        %v3586 = vmul.f32 %v3522, %v3522
        %v3587 = vmul.f32 %v3523, %v3523
        %v3588 = vmul.f32 %v3524, %v3524
        %v3589 = vmul.f32 %v3525, %v3525
        %v3590 = vmul.f32 %v3526, %v3526
        %v3591 = vmul.f32 %v3527, %v3527
        %v3592 = vmul.f32 %v3528, %v3528
        %v3593 = vmul.f32 %v3529, %v3529
        %v3594 = vmul.f32 %v3530, %v3530
        %v3595 = vmul.f32 %v3531, %v3531
        %v3596 = vmul.f32 %v3532, %v3532
        %v3597 = vmul.f32 %v3533, %v3533
        %v3598 = vmul.f32 %v3534, %v3534
        %v3599 = vmul.f32 %v3535, %v3535
        %v3600 = vmul.f32 %v3536, %v3536
        %v3601 = vmul.f32 %v3537, %v3537
        %v3602 = vmul.f32 %v3538, %v3538
        %v3603 = vmul.f32 %v3539, %v3539
        %v3604 = vmul.f32 %v3540, %v3540
        %v3605 = vmul.f32 %v3541, %v3541
        %v3606 = vmul.f32 %v3542, %v3542
        %v3607 = vmul.f32 %v3543, %v3543
        %v3608 = vmul.f32 %v3544, %v3544
        %v3609 = vmul.f32 %v3545, %v3545
        %v3610 = vmul.f32 %v3546, %v3546
        %v3611 = vmul.f32 %v3547, %v3547
        %v3612 = vmul.f32 %v3548, %v3548
        %v3613 = vmul.f32 %v3549, %v3549
        %v3614 = vmul.f32 %v3550, %v3550
        %v3615 = vmul.f32 %v3551, %v3551
        %v3616 = vmul.f32 %v3552, %v3552
        %v3617 = vmul.f32 %v3553, %v3553
        %v3618 = vmul.f32 %v3554, %v3554
        %v3619 = vmul.f32 %v3555, %v3555
        %v3620 = vmul.f32 %v3556, %v3556
        %v3621 = vmul.f32 %v3557, %v3557
        %v3622 = vmul.f32 %v3558, %v3558
        %v3623 = vmul.f32 %v3559, %v3559
        %v3624 = vsel %vm2692, %v3561, 0.0
        %v3625 = vadd.f32 %v3560, %v3624
        %3626 = vadd.xlane.f32.xlu0 %v3625
        %v3627 = vpop.xlane.xlu0 %3626
        %v3628 = vsel %vm2692, %v3563, 0.0
        %v3629 = vadd.f32 %v3562, %v3628
        %3630 = vadd.xlane.f32.xlu0 %v3629
        %v3631 = vpop.xlane.xlu0 %3630
        %v3632 = vsel %vm2692, %v3565, 0.0
        %v3633 = vadd.f32 %v3564, %v3632
        %3634 = vadd.xlane.f32.xlu0 %v3633
        %v3635 = vpop.xlane.xlu0 %3634
        %v3636 = vsel %vm2692, %v3567, 0.0
        %v3637 = vadd.f32 %v3566, %v3636
        %3638 = vadd.xlane.f32.xlu0 %v3637
        %v3639 = vpop.xlane.xlu0 %3638
        %v3640 = vsel %vm2692, %v3569, 0.0
        %v3641 = vadd.f32 %v3568, %v3640
        %3642 = vadd.xlane.f32.xlu0 %v3641
        %v3643 = vpop.xlane.xlu0 %3642
        %v3644 = vsel %vm2692, %v3571, 0.0
        %v3645 = vadd.f32 %v3570, %v3644
        %3646 = vadd.xlane.f32.xlu0 %v3645
        %v3647 = vpop.xlane.xlu0 %3646
        %v3648 = vsel %vm2692, %v3573, 0.0
        %v3649 = vadd.f32 %v3572, %v3648
        %3650 = vadd.xlane.f32.xlu0 %v3649
        %v3651 = vpop.xlane.xlu0 %3650
        %v3652 = vsel %vm2692, %v3575, 0.0
        %v3653 = vadd.f32 %v3574, %v3652
        %3654 = vadd.xlane.f32.xlu0 %v3653
        %v3655 = vpop.xlane.xlu0 %3654
        %v3656 = vsel %vm2692, %v3577, 0.0
        %v3657 = vadd.f32 %v3576, %v3656
        %3658 = vadd.xlane.f32.xlu0 %v3657
        %v3659 = vpop.xlane.xlu0 %3658
        %v3660 = vsel %vm2692, %v3579, 0.0
        %v3661 = vadd.f32 %v3578, %v3660
        %3662 = vadd.xlane.f32.xlu0 %v3661
        %v3663 = vpop.xlane.xlu0 %3662
        %v3664 = vsel %vm2692, %v3581, 0.0
        %v3665 = vadd.f32 %v3580, %v3664
        %3666 = vadd.xlane.f32.xlu0 %v3665
        %v3667 = vpop.xlane.xlu0 %3666
        %v3668 = vsel %vm2692, %v3583, 0.0
        %v3669 = vadd.f32 %v3582, %v3668
        %3670 = vadd.xlane.f32.xlu0 %v3669
        %v3671 = vpop.xlane.xlu0 %3670
        %v3672 = vsel %vm2692, %v3585, 0.0
        %v3673 = vadd.f32 %v3584, %v3672
        %3674 = vadd.xlane.f32.xlu0 %v3673
        %v3675 = vpop.xlane.xlu0 %3674
        %v3676 = vsel %vm2692, %v3587, 0.0
        %v3677 = vadd.f32 %v3586, %v3676
        %3678 = vadd.xlane.f32.xlu0 %v3677
        %v3679 = vpop.xlane.xlu0 %3678
        %v3680 = vsel %vm2692, %v3589, 0.0
        %v3681 = vadd.f32 %v3588, %v3680
        %3682 = vadd.xlane.f32.xlu0 %v3681
        %v3683 = vpop.xlane.xlu0 %3682
        %v3684 = vsel %vm2692, %v3591, 0.0
        %v3685 = vadd.f32 %v3590, %v3684
        %3686 = vadd.xlane.f32.xlu0 %v3685
        %v3687 = vpop.xlane.xlu0 %3686
        %v3688 = vsel %vm2692, %v3593, 0.0
        %v3689 = vadd.f32 %v3592, %v3688
        %3690 = vadd.xlane.f32.xlu0 %v3689
        %v3691 = vpop.xlane.xlu0 %3690
        %v3692 = vsel %vm2692, %v3595, 0.0
        %v3693 = vadd.f32 %v3594, %v3692
        %3694 = vadd.xlane.f32.xlu0 %v3693
        %v3695 = vpop.xlane.xlu0 %3694
        %v3696 = vsel %vm2692, %v3597, 0.0
        %v3697 = vadd.f32 %v3596, %v3696
        %3698 = vadd.xlane.f32.xlu0 %v3697
        %v3699 = vpop.xlane.xlu0 %3698
        %v3700 = vsel %vm2692, %v3599, 0.0
        %v3701 = vadd.f32 %v3598, %v3700
        %3702 = vadd.xlane.f32.xlu0 %v3701
        %v3703 = vpop.xlane.xlu0 %3702
        %v3704 = vsel %vm2692, %v3601, 0.0
        %v3705 = vadd.f32 %v3600, %v3704
        %3706 = vadd.xlane.f32.xlu0 %v3705
        %v3707 = vpop.xlane.xlu0 %3706
        %v3708 = vsel %vm2692, %v3603, 0.0
        %v3709 = vadd.f32 %v3602, %v3708
        %3710 = vadd.xlane.f32.xlu0 %v3709
        %v3711 = vpop.xlane.xlu0 %3710
        %v3712 = vsel %vm2692, %v3605, 0.0
        %v3713 = vadd.f32 %v3604, %v3712
        %3714 = vadd.xlane.f32.xlu0 %v3713
        %v3715 = vpop.xlane.xlu0 %3714
        %v3716 = vsel %vm2692, %v3607, 0.0
        %v3717 = vadd.f32 %v3606, %v3716
        %3718 = vadd.xlane.f32.xlu0 %v3717
        %v3719 = vpop.xlane.xlu0 %3718
        %v3720 = vsel %vm2692, %v3609, 0.0
        %v3721 = vadd.f32 %v3608, %v3720
        %3722 = vadd.xlane.f32.xlu0 %v3721
        %v3723 = vpop.xlane.xlu0 %3722
        %v3724 = vsel %vm2692, %v3611, 0.0
        %v3725 = vadd.f32 %v3610, %v3724
        %3726 = vadd.xlane.f32.xlu0 %v3725
        %v3727 = vpop.xlane.xlu0 %3726
        %v3728 = vsel %vm2692, %v3613, 0.0
        %v3729 = vadd.f32 %v3612, %v3728
        %3730 = vadd.xlane.f32.xlu0 %v3729
        %v3731 = vpop.xlane.xlu0 %3730
        %v3732 = vsel %vm2692, %v3615, 0.0
        %v3733 = vadd.f32 %v3614, %v3732
        %3734 = vadd.xlane.f32.xlu0 %v3733
        %v3735 = vpop.xlane.xlu0 %3734
        %v3736 = vsel %vm2692, %v3617, 0.0
        %v3737 = vadd.f32 %v3616, %v3736
        %3738 = vadd.xlane.f32.xlu0 %v3737
        %v3739 = vpop.xlane.xlu0 %3738
        %v3740 = vsel %vm2692, %v3619, 0.0
        %v3741 = vadd.f32 %v3618, %v3740
        %3742 = vadd.xlane.f32.xlu0 %v3741
        %v3743 = vpop.xlane.xlu0 %3742
        %v3744 = vsel %vm2692, %v3621, 0.0
        %v3745 = vadd.f32 %v3620, %v3744
        %3746 = vadd.xlane.f32.xlu0 %v3745
        %v3747 = vpop.xlane.xlu0 %3746
        %v3748 = vsel %vm2692, %v3623, 0.0
        %v3749 = vadd.f32 %v3622, %v3748
        %3750 = vadd.xlane.f32.xlu0 %v3749
        %v3751 = vpop.xlane.xlu0 %3750
        %v3752 = vmul.f32 %v3627, %v3463
        %v3753 = vmul.f32 %v3631, %v3463
        %v3754 = vmul.f32 %v3635, %v3463
        %v3755 = vmul.f32 %v3639, %v3463
        %v3756 = vmul.f32 %v3643, %v3463
        %v3757 = vmul.f32 %v3647, %v3463
        %v3758 = vmul.f32 %v3651, %v3463
        %v3759 = vmul.f32 %v3655, %v3463
        %v3760 = vmul.f32 %v3659, %v3463
        %v3761 = vmul.f32 %v3663, %v3463
        %v3762 = vmul.f32 %v3667, %v3463
        %v3763 = vmul.f32 %v3671, %v3463
        %v3764 = vmul.f32 %v3675, %v3463
        %v3765 = vmul.f32 %v3679, %v3463
        %v3766 = vmul.f32 %v3683, %v3463
        %v3767 = vmul.f32 %v3687, %v3463
        %v3768 = vmul.f32 %v3691, %v3463
        %v3769 = vmul.f32 %v3695, %v3463
        %v3770 = vmul.f32 %v3699, %v3463
        %v3771 = vmul.f32 %v3703, %v3463
        %v3772 = vmul.f32 %v3707, %v3463
        %v3773 = vmul.f32 %v3711, %v3463
        %v3774 = vmul.f32 %v3715, %v3463
        %v3775 = vmul.f32 %v3719, %v3463
        %v3776 = vmul.f32 %v3723, %v3463
        %v3777 = vmul.f32 %v3727, %v3463
        %v3778 = vmul.f32 %v3731, %v3463
        %v3779 = vmul.f32 %v3735, %v3463
        %v3780 = vmul.f32 %v3739, %v3463
        %v3781 = vmul.f32 %v3743, %v3463
        %v3782 = vmul.f32 %v3747, %v3463
        %v3783 = vmul.f32 %v3751, %v3463
        %v3784 = vadd.f32 %v3752, 1e-05
        %v3785 = vadd.f32 %v3753, 1e-05
        %v3786 = vadd.f32 %v3754, 1e-05
        %v3787 = vadd.f32 %v3755, 1e-05
        %v3788 = vadd.f32 %v3756, 1e-05
        %v3789 = vadd.f32 %v3757, 1e-05
        %v3790 = vadd.f32 %v3758, 1e-05
        %v3791 = vadd.f32 %v3759, 1e-05
        %v3792 = vadd.f32 %v3760, 1e-05
        %v3793 = vadd.f32 %v3761, 1e-05
        %v3794 = vadd.f32 %v3762, 1e-05
        %v3795 = vadd.f32 %v3763, 1e-05
        %v3796 = vadd.f32 %v3764, 1e-05
        %v3797 = vadd.f32 %v3765, 1e-05
        %v3798 = vadd.f32 %v3766, 1e-05
        %v3799 = vadd.f32 %v3767, 1e-05
        %v3800 = vadd.f32 %v3768, 1e-05
        %v3801 = vadd.f32 %v3769, 1e-05
        %v3802 = vadd.f32 %v3770, 1e-05
        %v3803 = vadd.f32 %v3771, 1e-05
        %v3804 = vadd.f32 %v3772, 1e-05
        %v3805 = vadd.f32 %v3773, 1e-05
        %v3806 = vadd.f32 %v3774, 1e-05
        %v3807 = vadd.f32 %v3775, 1e-05
        %v3808 = vadd.f32 %v3776, 1e-05
        %v3809 = vadd.f32 %v3777, 1e-05
        %v3810 = vadd.f32 %v3778, 1e-05
        %v3811 = vadd.f32 %v3779, 1e-05
        %v3812 = vadd.f32 %v3780, 1e-05
        %v3813 = vadd.f32 %v3781, 1e-05
        %v3814 = vadd.f32 %v3782, 1e-05
        %v3815 = vadd.f32 %v3783, 1e-05
        %v3816 = vrsqrt.pop %v3784
        %v3817 = vrsqrt.pop %v3785
        %v3818 = vrsqrt.pop %v3786
        %v3819 = vrsqrt.pop %v3787
        %v3820 = vrsqrt.pop %v3788
        %v3821 = vrsqrt.pop %v3789
        %v3822 = vrsqrt.pop %v3790
        %v3823 = vrsqrt.pop %v3791
        %v3824 = vrsqrt.pop %v3792
        %v3825 = vrsqrt.pop %v3793
        %v3826 = vrsqrt.pop %v3794
        %v3827 = vrsqrt.pop %v3795
        %v3828 = vrsqrt.pop %v3796
        %v3829 = vrsqrt.pop %v3797
        %v3830 = vrsqrt.pop %v3798
        %v3831 = vrsqrt.pop %v3799
        %v3832 = vrsqrt.pop %v3800
        %v3833 = vrsqrt.pop %v3801
        %v3834 = vrsqrt.pop %v3802
        %v3835 = vrsqrt.pop %v3803
        %v3836 = vrsqrt.pop %v3804
        %v3837 = vrsqrt.pop %v3805
        %v3838 = vrsqrt.pop %v3806
        %v3839 = vrsqrt.pop %v3807
        %v3840 = vrsqrt.pop %v3808
        %v3841 = vrsqrt.pop %v3809
        %v3842 = vrsqrt.pop %v3810
        %v3843 = vrsqrt.pop %v3811
        %v3844 = vrsqrt.pop %v3812
        %v3845 = vrsqrt.pop %v3813
        %v3846 = vrsqrt.pop %v3814
        %v3847 = vrsqrt.pop %v3815
        %v3848 = vmul.f32 %v3496, %v3816
        %v3849 = vmul.f32 %v3497, %v3816
        %v3850 = vmul.f32 %v3498, %v3817
        %v3851 = vmul.f32 %v3499, %v3817
        %v3852 = vmul.f32 %v3500, %v3818
        %v3853 = vmul.f32 %v3501, %v3818
        %v3854 = vmul.f32 %v3502, %v3819
        %v3855 = vmul.f32 %v3503, %v3819
        %v3856 = vmul.f32 %v3504, %v3820
        %v3857 = vmul.f32 %v3505, %v3820
        %v3858 = vmul.f32 %v3506, %v3821
        %v3859 = vmul.f32 %v3507, %v3821
        %v3860 = vmul.f32 %v3508, %v3822
        %v3861 = vmul.f32 %v3509, %v3822
        %v3862 = vmul.f32 %v3510, %v3823
        %v3863 = vmul.f32 %v3511, %v3823
        %v3864 = vmul.f32 %v3512, %v3824
        %v3865 = vmul.f32 %v3513, %v3824
        %v3866 = vmul.f32 %v3514, %v3825
        %v3867 = vmul.f32 %v3515, %v3825
        %v3868 = vmul.f32 %v3516, %v3826
        %v3869 = vmul.f32 %v3517, %v3826
        %v3870 = vmul.f32 %v3518, %v3827
        %v3871 = vmul.f32 %v3519, %v3827
        %v3872 = vmul.f32 %v3520, %v3828
        %v3873 = vmul.f32 %v3521, %v3828
        %v3874 = vmul.f32 %v3522, %v3829
        %v3875 = vmul.f32 %v3523, %v3829
        %v3876 = vmul.f32 %v3524, %v3830
        %v3877 = vmul.f32 %v3525, %v3830
        %v3878 = vmul.f32 %v3526, %v3831
        %v3879 = vmul.f32 %v3527, %v3831
        %v3880 = vmul.f32 %v3528, %v3832
        %v3881 = vmul.f32 %v3529, %v3832
        %v3882 = vmul.f32 %v3530, %v3833
        %v3883 = vmul.f32 %v3531, %v3833
        %v3884 = vmul.f32 %v3532, %v3834
        %v3885 = vmul.f32 %v3533, %v3834
        %v3886 = vmul.f32 %v3534, %v3835
        %v3887 = vmul.f32 %v3535, %v3835
        %v3888 = vmul.f32 %v3536, %v3836
        %v3889 = vmul.f32 %v3537, %v3836
        %v3890 = vmul.f32 %v3538, %v3837
        %v3891 = vmul.f32 %v3539, %v3837
        %v3892 = vmul.f32 %v3540, %v3838
        %v3893 = vmul.f32 %v3541, %v3838
        %v3894 = vmul.f32 %v3542, %v3839
        %v3895 = vmul.f32 %v3543, %v3839
        %v3896 = vmul.f32 %v3544, %v3840
        %v3897 = vmul.f32 %v3545, %v3840
        %v3898 = vmul.f32 %v3546, %v3841
        %v3899 = vmul.f32 %v3547, %v3841
        %v3900 = vmul.f32 %v3548, %v3842
        %v3901 = vmul.f32 %v3549, %v3842
        %v3902 = vmul.f32 %v3550, %v3843
        %v3903 = vmul.f32 %v3551, %v3843
        %v3904 = vmul.f32 %v3552, %v3844
        %v3905 = vmul.f32 %v3553, %v3844
        %v3906 = vmul.f32 %v3554, %v3845
        %v3907 = vmul.f32 %v3555, %v3845
        %v3908 = vmul.f32 %v3556, %v3846
        %v3909 = vmul.f32 %v3557, %v3846
        %v3910 = vmul.f32 %v3558, %v3847
        %v3911 = vmul.f32 %v3559, %v3847
        %v3912 = vld [vmem:[%s10] sm:$0x3]
        %v3914 = vlaneseq
        %v3915 = vshrl.u32 %v3914, 7
        %v3916 = vsub.s32 0, %v3915
        %v3917 = vrot.slane %v3912, %v3916
        %v3918 = vlaneseq
        %v3919 = vshrl.u32 %v3918, 7
        %v3920 = vsub.s32 1, %v3919
        %v3921 = vrot.slane %v3912, %v3920
        %v3924 = vmul.f32 %v3848, %v3917
        %v3925 = vmul.f32 %v3849, %v3921
        %v3926 = vmul.f32 %v3850, %v3917
        %v3927 = vmul.f32 %v3851, %v3921
        %v3928 = vmul.f32 %v3852, %v3917
        %v3929 = vmul.f32 %v3853, %v3921
        %v3930 = vmul.f32 %v3854, %v3917
        %v3931 = vmul.f32 %v3855, %v3921
        %v3932 = vmul.f32 %v3856, %v3917
        %v3933 = vmul.f32 %v3857, %v3921
        %v3934 = vmul.f32 %v3858, %v3917
        %v3935 = vmul.f32 %v3859, %v3921
        %v3936 = vmul.f32 %v3860, %v3917
        %v3937 = vmul.f32 %v3861, %v3921
        %v3938 = vmul.f32 %v3862, %v3917
        %v3939 = vmul.f32 %v3863, %v3921
        %v3940 = vmul.f32 %v3864, %v3917
        %v3941 = vmul.f32 %v3865, %v3921
        %v3942 = vmul.f32 %v3866, %v3917
        %v3943 = vmul.f32 %v3867, %v3921
        %v3944 = vmul.f32 %v3868, %v3917
        %v3945 = vmul.f32 %v3869, %v3921
        %v3946 = vmul.f32 %v3870, %v3917
        %v3947 = vmul.f32 %v3871, %v3921
        %v3948 = vmul.f32 %v3872, %v3917
        %v3949 = vmul.f32 %v3873, %v3921
        %v3950 = vmul.f32 %v3874, %v3917
        %v3951 = vmul.f32 %v3875, %v3921
        %v3952 = vmul.f32 %v3876, %v3917
        %v3953 = vmul.f32 %v3877, %v3921
        %v3954 = vmul.f32 %v3878, %v3917
        %v3955 = vmul.f32 %v3879, %v3921
        %v3956 = vmul.f32 %v3880, %v3917
        %v3957 = vmul.f32 %v3881, %v3921
        %v3958 = vmul.f32 %v3882, %v3917
        %v3959 = vmul.f32 %v3883, %v3921
        %v3960 = vmul.f32 %v3884, %v3917
        %v3961 = vmul.f32 %v3885, %v3921
        %v3962 = vmul.f32 %v3886, %v3917
        %v3963 = vmul.f32 %v3887, %v3921
        %v3964 = vmul.f32 %v3888, %v3917
        %v3965 = vmul.f32 %v3889, %v3921
        %v3966 = vmul.f32 %v3890, %v3917
        %v3967 = vmul.f32 %v3891, %v3921
        %v3968 = vmul.f32 %v3892, %v3917
        %v3969 = vmul.f32 %v3893, %v3921
        %v3970 = vmul.f32 %v3894, %v3917
        %v3971 = vmul.f32 %v3895, %v3921
        %v3972 = vmul.f32 %v3896, %v3917
        %v3973 = vmul.f32 %v3897, %v3921
        %v3974 = vmul.f32 %v3898, %v3917
        %v3975 = vmul.f32 %v3899, %v3921
        %v3976 = vmul.f32 %v3900, %v3917
        %v3977 = vmul.f32 %v3901, %v3921
        %v3978 = vmul.f32 %v3902, %v3917
        %v3979 = vmul.f32 %v3903, %v3921
        %v3980 = vmul.f32 %v3904, %v3917
        %v3981 = vmul.f32 %v3905, %v3921
        %v3982 = vmul.f32 %v3906, %v3917
        %v3983 = vmul.f32 %v3907, %v3921
        %v3984 = vmul.f32 %v3908, %v3917
        %v3985 = vmul.f32 %v3909, %v3921
        %v3986 = vmul.f32 %v3910, %v3917
        %v3987 = vmul.f32 %v3911, %v3921
        %v3988 = vld [vmem:[%s11] sm:$0x3]
        %v3990 = vlaneseq
        %v3991 = vshrl.u32 %v3990, 7
        %v3992 = vsub.s32 0, %v3991
        %v3993 = vrot.slane %v3988, %v3992
        %v3994 = vlaneseq
        %v3995 = vshrl.u32 %v3994, 7
        %v3996 = vsub.s32 1, %v3995
        %v3997 = vrot.slane %v3988, %v3996
        %v4000 = vadd.f32 %v3924, %v3993
        %v4001 = vadd.f32 %v3925, %v3997
        %v4002 = vadd.f32 %v3926, %v3993
        %v4003 = vadd.f32 %v3927, %v3997
        %v4004 = vadd.f32 %v3928, %v3993
        %v4005 = vadd.f32 %v3929, %v3997
        %v4006 = vadd.f32 %v3930, %v3993
        %v4007 = vadd.f32 %v3931, %v3997
        %v4008 = vadd.f32 %v3932, %v3993
        %v4009 = vadd.f32 %v3933, %v3997
        %v4010 = vadd.f32 %v3934, %v3993
        %v4011 = vadd.f32 %v3935, %v3997
        %v4012 = vadd.f32 %v3936, %v3993
        %v4013 = vadd.f32 %v3937, %v3997
        %v4014 = vadd.f32 %v3938, %v3993
        %v4015 = vadd.f32 %v3939, %v3997
        %v4016 = vadd.f32 %v3940, %v3993
        %v4017 = vadd.f32 %v3941, %v3997
        %v4018 = vadd.f32 %v3942, %v3993
        %v4019 = vadd.f32 %v3943, %v3997
        %v4020 = vadd.f32 %v3944, %v3993
        %v4021 = vadd.f32 %v3945, %v3997
        %v4022 = vadd.f32 %v3946, %v3993
        %v4023 = vadd.f32 %v3947, %v3997
        %v4024 = vadd.f32 %v3948, %v3993
        %v4025 = vadd.f32 %v3949, %v3997
        %v4026 = vadd.f32 %v3950, %v3993
        %v4027 = vadd.f32 %v3951, %v3997
        %v4028 = vadd.f32 %v3952, %v3993
        %v4029 = vadd.f32 %v3953, %v3997
        %v4030 = vadd.f32 %v3954, %v3993
        %v4031 = vadd.f32 %v3955, %v3997
        %v4032 = vadd.f32 %v3956, %v3993
        %v4033 = vadd.f32 %v3957, %v3997
        %v4034 = vadd.f32 %v3958, %v3993
        %v4035 = vadd.f32 %v3959, %v3997
        %v4036 = vadd.f32 %v3960, %v3993
        %v4037 = vadd.f32 %v3961, %v3997
        %v4038 = vadd.f32 %v3962, %v3993
        %v4039 = vadd.f32 %v3963, %v3997
        %v4040 = vadd.f32 %v3964, %v3993
        %v4041 = vadd.f32 %v3965, %v3997
        %v4042 = vadd.f32 %v3966, %v3993
        %v4043 = vadd.f32 %v3967, %v3997
        %v4044 = vadd.f32 %v3968, %v3993
        %v4045 = vadd.f32 %v3969, %v3997
        %v4046 = vadd.f32 %v3970, %v3993
        %v4047 = vadd.f32 %v3971, %v3997
        %v4048 = vadd.f32 %v3972, %v3993
        %v4049 = vadd.f32 %v3973, %v3997
        %v4050 = vadd.f32 %v3974, %v3993
        %v4051 = vadd.f32 %v3975, %v3997
        %v4052 = vadd.f32 %v3976, %v3993
        %v4053 = vadd.f32 %v3977, %v3997
        %v4054 = vadd.f32 %v3978, %v3993
        %v4055 = vadd.f32 %v3979, %v3997
        %v4056 = vadd.f32 %v3980, %v3993
        %v4057 = vadd.f32 %v3981, %v3997
        %v4058 = vadd.f32 %v3982, %v3993
        %v4059 = vadd.f32 %v3983, %v3997
        %v4060 = vadd.f32 %v3984, %v3993
        %v4061 = vadd.f32 %v3985, %v3997
        %v4062 = vadd.f32 %v3986, %v3993
        %v4063 = vadd.f32 %v3987, %v3997
        %v4064 = vpack.c.bf16 %v4002, %v4000
        %v4065 = vpack.c.bf16 %v4003, %v4001
        %v4066 = vpack.c.bf16 %v4006, %v4004
        %v4067 = vpack.c.bf16 %v4007, %v4005
        %v4068 = vpack.c.bf16 %v4010, %v4008
        %v4069 = vpack.c.bf16 %v4011, %v4009
        %v4070 = vpack.c.bf16 %v4014, %v4012
        %v4071 = vpack.c.bf16 %v4015, %v4013
        %v4072 = vpack.c.bf16 %v4018, %v4016
        %v4073 = vpack.c.bf16 %v4019, %v4017
        %v4074 = vpack.c.bf16 %v4022, %v4020
        %v4075 = vpack.c.bf16 %v4023, %v4021
        %v4076 = vpack.c.bf16 %v4026, %v4024
        %v4077 = vpack.c.bf16 %v4027, %v4025
        %v4078 = vpack.c.bf16 %v4030, %v4028
        %v4079 = vpack.c.bf16 %v4031, %v4029
        %v4080 = vpack.c.bf16 %v4034, %v4032
        %v4081 = vpack.c.bf16 %v4035, %v4033
        %v4082 = vpack.c.bf16 %v4038, %v4036
        %v4083 = vpack.c.bf16 %v4039, %v4037
        %v4084 = vpack.c.bf16 %v4042, %v4040
        %v4085 = vpack.c.bf16 %v4043, %v4041
        %v4086 = vpack.c.bf16 %v4046, %v4044
        %v4087 = vpack.c.bf16 %v4047, %v4045
        %v4088 = vpack.c.bf16 %v4050, %v4048
        %v4089 = vpack.c.bf16 %v4051, %v4049
        %v4090 = vpack.c.bf16 %v4054, %v4052
        %v4091 = vpack.c.bf16 %v4055, %v4053
        %v4092 = vpack.c.bf16 %v4058, %v4056
        %v4093 = vpack.c.bf16 %v4059, %v4057
        %v4094 = vpack.c.bf16 %v4062, %v4060
        %v4095 = vpack.c.bf16 %v4063, %v4061
        %v4096 = vld [vmem:[%s12] sm:$0xff]
        %v4097 = vld [vmem:[%s12 + $0x8] sm:$0xff]
        %v4098 = vld [vmem:[%s12 + $0x10] sm:$0xff]
        %v4099 = vld [vmem:[%s12 + $0x18] sm:$0xff]
        %v4100 = vld [vmem:[%s12 + $0x20] sm:$0xff]
        %v4101 = vld [vmem:[%s12 + $0x28] sm:$0xff]
        %v4102 = vld [vmem:[%s12 + $0x30] sm:$0xff]
        %v4103 = vld [vmem:[%s12 + $0x38] sm:$0xff]
        %v4104 = vld [vmem:[%s12 + $0x40] sm:$0xff]
        %v4105 = vld [vmem:[%s12 + $0x48] sm:$0xff]
        %v4106 = vld [vmem:[%s12 + $0x50] sm:$0xff]
        %v4107 = vld [vmem:[%s12 + $0x58] sm:$0xff]
        %v4108 = vld [vmem:[%s12 + $0x60] sm:$0xff]
        %v4109 = vld [vmem:[%s12 + $0x68] sm:$0xff]
        %v4110 = vld [vmem:[%s12 + $0x70] sm:$0xff]
        %v4111 = vld [vmem:[%s12 + $0x78] sm:$0xff]
        %v4112 = vld [vmem:[%s12 + $0x80] sm:$0xff]
        %v4113 = vld [vmem:[%s12 + $0x88] sm:$0xff]
        %v4114 = vld [vmem:[%s12 + $0x90] sm:$0xff]
        %v4115 = vld [vmem:[%s12 + $0x98] sm:$0xff]
        %v4116 = vld [vmem:[%s12 + $0xa0] sm:$0xff]
        %v4117 = vld [vmem:[%s12 + $0xa8] sm:$0xff]
        %v4118 = vld [vmem:[%s12 + $0xb0] sm:$0xff]
        %v4119 = vld [vmem:[%s12 + $0xb8] sm:$0xff]
        %v4120 = vld [vmem:[%s13] sm:$0x3]
        %v4122 = vlaneseq
        %v4123 = vshrl.u32 %v4122, 7
        %v4124 = vsub.s32 0, %v4123
        %v4125 = vrot.slane %v4120, %v4124
        %v4126 = vlaneseq
        %v4127 = vshrl.u32 %v4126, 7
        %v4128 = vsub.s32 1, %v4127
        %v4129 = vrot.slane %v4120, %v4128
        %v4156 = vunpack.c.l.b16 %v4096
        %v4157 = vunpack.c.h.b16 %v4096
        %v4158 = vunpack.c.l.b16 %v4097
        %v4159 = vunpack.c.h.b16 %v4097
        %v4160 = vunpack.c.l.b16 %v4098
        %v4161 = vunpack.c.h.b16 %v4098
        %v4162 = vunpack.c.l.b16 %v4099
        %v4163 = vunpack.c.h.b16 %v4099
        %v4164 = vunpack.c.l.b16 %v4100
        %v4165 = vunpack.c.h.b16 %v4100
        %v4166 = vunpack.c.l.b16 %v4101
        %v4167 = vunpack.c.h.b16 %v4101
        %v4168 = vunpack.c.l.b16 %v4102
        %v4169 = vunpack.c.h.b16 %v4102
        %v4170 = vunpack.c.l.b16 %v4103
        %v4171 = vunpack.c.h.b16 %v4103
        %v4172 = vunpack.c.l.b16 %v4104
        %v4173 = vunpack.c.h.b16 %v4104
        %v4174 = vunpack.c.l.b16 %v4105
        %v4175 = vunpack.c.h.b16 %v4105
        %v4176 = vunpack.c.l.b16 %v4106
        %v4177 = vunpack.c.h.b16 %v4106
        %v4178 = vunpack.c.l.b16 %v4107
        %v4179 = vunpack.c.h.b16 %v4107
        %v4180 = vunpack.c.l.b16 %v4108
        %v4181 = vunpack.c.h.b16 %v4108
        %v4182 = vunpack.c.l.b16 %v4109
        %v4183 = vunpack.c.h.b16 %v4109
        %v4184 = vunpack.c.l.b16 %v4110
        %v4185 = vunpack.c.h.b16 %v4110
        %v4186 = vunpack.c.l.b16 %v4111
        %v4187 = vunpack.c.h.b16 %v4111
        %v4188 = vunpack.c.l.b16 %v4112
        %v4189 = vunpack.c.h.b16 %v4112
        %v4190 = vunpack.c.l.b16 %v4113
        %v4191 = vunpack.c.h.b16 %v4113
        %v4192 = vunpack.c.l.b16 %v4114
        %v4193 = vunpack.c.h.b16 %v4114
        %v4194 = vunpack.c.l.b16 %v4115
        %v4195 = vunpack.c.h.b16 %v4115
        %v4196 = vunpack.c.l.b16 %v4116
        %v4197 = vunpack.c.h.b16 %v4116
        %v4198 = vunpack.c.l.b16 %v4117
        %v4199 = vunpack.c.h.b16 %v4117
        %v4200 = vunpack.c.l.b16 %v4118
        %v4201 = vunpack.c.h.b16 %v4118
        %v4202 = vunpack.c.l.b16 %v4119
        %v4203 = vunpack.c.h.b16 %v4119
        %v4204 = vpack.c.b16 %v4158, %v4156
        %v4205 = vpack.c.b16 %v4159, %v4157
        %v4206 = vpack.c.b16 %v4162, %v4160
        %v4207 = vpack.c.b16 %v4163, %v4161
        %v4208 = vpack.c.b16 %v4166, %v4164
        %v4209 = vpack.c.b16 %v4167, %v4165
        %v4210 = vpack.c.b16 %v4170, %v4168
        %v4211 = vpack.c.b16 %v4171, %v4169
        %v4212 = vpack.c.b16 %v4174, %v4172
        %v4213 = vpack.c.b16 %v4175, %v4173
        %v4214 = vpack.c.b16 %v4178, %v4176
        %v4215 = vpack.c.b16 %v4179, %v4177
        %v4216 = vpack.c.b16 %v4182, %v4180
        %v4217 = vpack.c.b16 %v4183, %v4181
        %v4218 = vpack.c.b16 %v4186, %v4184
        %v4219 = vpack.c.b16 %v4187, %v4185
        %v4220 = vpack.c.b16 %v4190, %v4188
        %v4221 = vpack.c.b16 %v4191, %v4189
        %v4222 = vpack.c.b16 %v4194, %v4192
        %v4223 = vpack.c.b16 %v4195, %v4193
        %v4224 = vpack.c.b16 %v4198, %v4196
        %v4225 = vpack.c.b16 %v4199, %v4197
        %v4226 = vpack.c.b16 %v4202, %v4200
        %v4227 = vpack.c.b16 %v4203, %v4201
        %v4253 = vsel %vm2692, %v4065, 0
        %v4256 = vsel %vm2692, %v4067, 0
        %v4259 = vsel %vm2692, %v4069, 0
        %v4262 = vsel %vm2692, %v4071, 0
        %v4265 = vsel %vm2692, %v4073, 0
        %v4268 = vsel %vm2692, %v4075, 0
        %v4271 = vsel %vm2692, %v4077, 0
        %v4274 = vsel %vm2692, %v4079, 0
        %v4277 = vsel %vm2692, %v4081, 0
        %v4280 = vsel %vm2692, %v4083, 0
        %v4283 = vsel %vm2692, %v4085, 0
        %v4286 = vsel %vm2692, %v4087, 0
        %v4289 = vsel %vm2692, %v4089, 0
        %v4292 = vsel %vm2692, %v4091, 0
        %v4295 = vsel %vm2692, %v4093, 0
        %v4298 = vsel %vm2692, %v4095, 0
        %4300 = vmatprep.subr.bf16.mxu0 %v4205
        %4301 = vmatpush1.bf16.msra.mxu0 %v4204
        %4302 = vmatprep.subr.bf16.mxu0 %v4207
        %4303 = vmatpush1.bf16.msra.mxu0 %v4206
        %4304 = vmatprep.subr.bf16.mxu0 %v4209
        %4305 = vmatpush1.bf16.msra.mxu0 %v4208
        %4306 = vmatprep.subr.bf16.mxu0 %v4211
        %4307 = vmatpush1.bf16.msra.mxu0 %v4210
        %4308 = vmatprep.subr.bf16.mxu0 %v4213
        %4309 = vmatpush1.bf16.msra.mxu0 %v4212
        %4310 = vmatprep.subr.bf16.mxu0 %v4215
        %4311 = vmatpush1.bf16.msra.mxu0 %v4214
        %4312 = vmatprep.subr.bf16.mxu0 %v4217
        %4313 = vmatpush1.bf16.msra.mxu0 %v4216
        %4314 = vmatprep.subr.bf16.mxu0 %v4219
        %4315 = vmatpush1.bf16.msra.mxu0 %v4218
        %4316 = vmatprep.subr.bf16.mxu0 %v4221
        %4317 = vmatpush1.bf16.msra.mxu0 %v4220
        %4318 = vmatprep.subr.bf16.mxu0 %v4223
        %4319 = vmatpush1.bf16.msra.mxu0 %v4222
        %4320 = vmatprep.subr.bf16.mxu0 %v4225
        %4321 = vmatpush1.bf16.msra.mxu0 %v4224
        %4322 = vmatprep.subr.bf16.mxu0 %v4227
        %4323 = vmatpush1.bf16.msra.mxu0 %v4226
        %4324 = vmatprep.subr.bf16.mxu0 0
        %4325 = vmatpush1.bf16.msra.mxu0 0
        %4326 = vmatprep.subr.bf16.mxu0 0
        %4327 = vmatpush1.bf16.msra.mxu0 0
        %4328 = vmatprep.subr.bf16.mxu0 0
        %4329 = vmatpush1.bf16.msra.mxu0 0
        %4330 = vmatprep.subr.bf16.mxu0 0
        %4331 = vmatpush1.bf16.msra.mxu0 0
        %4332 = vmatprep.mubr.bf16.mxu0 %v4253
        %4333 = vmatmul.mubr.bf16.gmra.mrb[0].mxu0 %v4064
        %v4334 = vpop.f32.mrb[0].mxu0
        %v4335 = vadd.f32 %v4125, %v4334
        %v4336 = vpop.f32.mrb[0].mxu0
        %v4337 = vadd.f32 %v4129, %v4336
        %v4338 = vpop.f32.mrb[0].mxu0
        %v4339 = vadd.f32 %v4125, %v4338
        %v4340 = vpop.f32.mrb[0].mxu0
        %v4341 = vadd.f32 %v4129, %v4340
        %4342 = vmatprep.mubr.bf16.mxu0 %v4256
        %4343 = vmatmul.mubr.bf16.gmra.mrb[0].mxu0 %v4066
        %v4344 = vpop.f32.mrb[0].mxu0
        %v4345 = vadd.f32 %v4125, %v4344
        %v4346 = vpop.f32.mrb[0].mxu0
        %v4347 = vadd.f32 %v4129, %v4346
        %v4348 = vpop.f32.mrb[0].mxu0
        %v4349 = vadd.f32 %v4125, %v4348
        %v4350 = vpop.f32.mrb[0].mxu0
        %v4351 = vadd.f32 %v4129, %v4350
        %4352 = vmatprep.mubr.bf16.mxu0 %v4259
        %4353 = vmatmul.mubr.bf16.gmra.mrb[0].mxu0 %v4068
        %v4354 = vpop.f32.mrb[0].mxu0
        %v4355 = vadd.f32 %v4125, %v4354
        %v4356 = vpop.f32.mrb[0].mxu0
        %v4357 = vadd.f32 %v4129, %v4356
        %v4358 = vpop.f32.mrb[0].mxu0
        %v4359 = vadd.f32 %v4125, %v4358
        %v4360 = vpop.f32.mrb[0].mxu0
        %v4361 = vadd.f32 %v4129, %v4360
        %4362 = vmatprep.mubr.bf16.mxu0 %v4262
        %4363 = vmatmul.mubr.bf16.gmra.mrb[0].mxu0 %v4070
        %v4364 = vpop.f32.mrb[0].mxu0
        %v4365 = vadd.f32 %v4125, %v4364
        %v4366 = vpop.f32.mrb[0].mxu0
        %v4367 = vadd.f32 %v4129, %v4366
        %v4368 = vpop.f32.mrb[0].mxu0
        %v4369 = vadd.f32 %v4125, %v4368
        %v4370 = vpop.f32.mrb[0].mxu0
        %v4371 = vadd.f32 %v4129, %v4370
        %4372 = vmatprep.mubr.bf16.mxu0 %v4265
        %4373 = vmatmul.mubr.bf16.gmra.mrb[0].mxu0 %v4072
        %v4374 = vpop.f32.mrb[0].mxu0
        %v4375 = vadd.f32 %v4125, %v4374
        %v4376 = vpop.f32.mrb[0].mxu0
        %v4377 = vadd.f32 %v4129, %v4376
        %v4378 = vpop.f32.mrb[0].mxu0
        %v4379 = vadd.f32 %v4125, %v4378
        %v4380 = vpop.f32.mrb[0].mxu0
        %v4381 = vadd.f32 %v4129, %v4380
        %4382 = vmatprep.mubr.bf16.mxu0 %v4268
        %4383 = vmatmul.mubr.bf16.gmra.mrb[0].mxu0 %v4074
        %v4384 = vpop.f32.mrb[0].mxu0
        %v4385 = vadd.f32 %v4125, %v4384
        %v4386 = vpop.f32.mrb[0].mxu0
        %v4387 = vadd.f32 %v4129, %v4386
        %v4388 = vpop.f32.mrb[0].mxu0
        %v4389 = vadd.f32 %v4125, %v4388
        %v4390 = vpop.f32.mrb[0].mxu0
        %v4391 = vadd.f32 %v4129, %v4390
        %4392 = vmatprep.mubr.bf16.mxu0 %v4271
        %4393 = vmatmul.mubr.bf16.gmra.mrb[0].mxu0 %v4076
        %v4394 = vpop.f32.mrb[0].mxu0
        %v4395 = vadd.f32 %v4125, %v4394
        %v4396 = vpop.f32.mrb[0].mxu0
        %v4397 = vadd.f32 %v4129, %v4396
        %v4398 = vpop.f32.mrb[0].mxu0
        %v4399 = vadd.f32 %v4125, %v4398
        %v4400 = vpop.f32.mrb[0].mxu0
        %v4401 = vadd.f32 %v4129, %v4400
        %4402 = vmatprep.mubr.bf16.mxu0 %v4274
        %4403 = vmatmul.mubr.bf16.gmra.mrb[0].mxu0 %v4078
        %v4404 = vpop.f32.mrb[0].mxu0
        %v4405 = vadd.f32 %v4125, %v4404
        %v4406 = vpop.f32.mrb[0].mxu0
        %v4407 = vadd.f32 %v4129, %v4406
        %v4408 = vpop.f32.mrb[0].mxu0
        %v4409 = vadd.f32 %v4125, %v4408
        %v4410 = vpop.f32.mrb[0].mxu0
        %v4411 = vadd.f32 %v4129, %v4410
        %4412 = vmatprep.mubr.bf16.mxu0 %v4277
        %4413 = vmatmul.mubr.bf16.gmra.mrb[0].mxu0 %v4080
        %v4414 = vpop.f32.mrb[0].mxu0
        %v4415 = vadd.f32 %v4125, %v4414
        %v4416 = vpop.f32.mrb[0].mxu0
        %v4417 = vadd.f32 %v4129, %v4416
        %v4418 = vpop.f32.mrb[0].mxu0
        %v4419 = vadd.f32 %v4125, %v4418
        %v4420 = vpop.f32.mrb[0].mxu0
        %v4421 = vadd.f32 %v4129, %v4420
        %4422 = vmatprep.mubr.bf16.mxu0 %v4280
        %4423 = vmatmul.mubr.bf16.gmra.mrb[0].mxu0 %v4082
        %v4424 = vpop.f32.mrb[0].mxu0
        %v4425 = vadd.f32 %v4125, %v4424
        %v4426 = vpop.f32.mrb[0].mxu0
        %v4427 = vadd.f32 %v4129, %v4426
        %v4428 = vpop.f32.mrb[0].mxu0
        %v4429 = vadd.f32 %v4125, %v4428
        %v4430 = vpop.f32.mrb[0].mxu0
        %v4431 = vadd.f32 %v4129, %v4430
        %4432 = vmatprep.mubr.bf16.mxu0 %v4283
        %4433 = vmatmul.mubr.bf16.gmra.mrb[0].mxu0 %v4084
        %v4434 = vpop.f32.mrb[0].mxu0
        %v4435 = vadd.f32 %v4125, %v4434
        %v4436 = vpop.f32.mrb[0].mxu0
        %v4437 = vadd.f32 %v4129, %v4436
        %v4438 = vpop.f32.mrb[0].mxu0
        %v4439 = vadd.f32 %v4125, %v4438
        %v4440 = vpop.f32.mrb[0].mxu0
        %v4441 = vadd.f32 %v4129, %v4440
        %4442 = vmatprep.mubr.bf16.mxu0 %v4286
        %4443 = vmatmul.mubr.bf16.gmra.mrb[0].mxu0 %v4086
        %v4444 = vpop.f32.mrb[0].mxu0
        %v4445 = vadd.f32 %v4125, %v4444
        %v4446 = vpop.f32.mrb[0].mxu0
        %v4447 = vadd.f32 %v4129, %v4446
        %v4448 = vpop.f32.mrb[0].mxu0
        %v4449 = vadd.f32 %v4125, %v4448
        %v4450 = vpop.f32.mrb[0].mxu0
        %v4451 = vadd.f32 %v4129, %v4450
        %4452 = vmatprep.mubr.bf16.mxu0 %v4289
        %4453 = vmatmul.mubr.bf16.gmra.mrb[0].mxu0 %v4088
        %v4454 = vpop.f32.mrb[0].mxu0
        %v4455 = vadd.f32 %v4125, %v4454
        %v4456 = vpop.f32.mrb[0].mxu0
        %v4457 = vadd.f32 %v4129, %v4456
        %v4458 = vpop.f32.mrb[0].mxu0
        %v4459 = vadd.f32 %v4125, %v4458
        %v4460 = vpop.f32.mrb[0].mxu0
        %v4461 = vadd.f32 %v4129, %v4460
        %4462 = vmatprep.mubr.bf16.mxu0 %v4292
        %4463 = vmatmul.mubr.bf16.gmra.mrb[0].mxu0 %v4090
        %v4464 = vpop.f32.mrb[0].mxu0
        %v4465 = vadd.f32 %v4125, %v4464
        %v4466 = vpop.f32.mrb[0].mxu0
        %v4467 = vadd.f32 %v4129, %v4466
        %v4468 = vpop.f32.mrb[0].mxu0
        %v4469 = vadd.f32 %v4125, %v4468
        %v4470 = vpop.f32.mrb[0].mxu0
        %v4471 = vadd.f32 %v4129, %v4470
        %4472 = vmatprep.mubr.bf16.mxu0 %v4295
        %4473 = vmatmul.mubr.bf16.gmra.mrb[0].mxu0 %v4092
        %v4474 = vpop.f32.mrb[0].mxu0
        %v4475 = vadd.f32 %v4125, %v4474
        %v4476 = vpop.f32.mrb[0].mxu0
        %v4477 = vadd.f32 %v4129, %v4476
        %v4478 = vpop.f32.mrb[0].mxu0
        %v4479 = vadd.f32 %v4125, %v4478
        %v4480 = vpop.f32.mrb[0].mxu0
        %v4481 = vadd.f32 %v4129, %v4480
        %4482 = vmatprep.mubr.bf16.mxu0 %v4298
        %4483 = vmatmul.mubr.bf16.gmra.mrb[0].mxu0 %v4094
        %v4484 = vpop.f32.mrb[0].mxu0
        %v4485 = vadd.f32 %v4125, %v4484
        %v4486 = vpop.f32.mrb[0].mxu0
        %v4487 = vadd.f32 %v4129, %v4486
        %v4488 = vpop.f32.mrb[0].mxu0
        %v4489 = vadd.f32 %v4125, %v4488
        %v4490 = vpop.f32.mrb[0].mxu0
        %v4491 = vadd.f32 %v4129, %v4490
        %4492 = vdwg.mxu0
        %4493 = vst [vmem:[%s552] sm:$0xff] %v4335
        %4494 = vst [vmem:[%s552 + $0x8] sm:$0xff] %v4337
        %4495 = vst [vmem:[%s552 + $0x10] sm:$0xff] %v4339
        %4496 = vst [vmem:[%s552 + $0x18] sm:$0xff] %v4341
        %4497 = vst [vmem:[%s552 + $0x20] sm:$0xff] %v4345
        %4498 = vst [vmem:[%s552 + $0x28] sm:$0xff] %v4347
        %4499 = vst [vmem:[%s552 + $0x30] sm:$0xff] %v4349
        %4500 = vst [vmem:[%s552 + $0x38] sm:$0xff] %v4351
        %4501 = vst [vmem:[%s552 + $0x40] sm:$0xff] %v4355
        %4502 = vst [vmem:[%s552 + $0x48] sm:$0xff] %v4357
        %4503 = vst [vmem:[%s552 + $0x50] sm:$0xff] %v4359
        %4504 = vst [vmem:[%s552 + $0x58] sm:$0xff] %v4361
        %4505 = vst [vmem:[%s552 + $0x60] sm:$0xff] %v4365
        %4506 = vst [vmem:[%s552 + $0x68] sm:$0xff] %v4367
        %4507 = vst [vmem:[%s552 + $0x70] sm:$0xff] %v4369
        %4508 = vst [vmem:[%s552 + $0x78] sm:$0xff] %v4371
        %4509 = vst [vmem:[%s552 + $0x80] sm:$0xff] %v4375
        %4510 = vst [vmem:[%s552 + $0x88] sm:$0xff] %v4377
        %4511 = vst [vmem:[%s552 + $0x90] sm:$0xff] %v4379
        %4512 = vst [vmem:[%s552 + $0x98] sm:$0xff] %v4381
        %4513 = vst [vmem:[%s552 + $0xa0] sm:$0xff] %v4385
        %4514 = vst [vmem:[%s552 + $0xa8] sm:$0xff] %v4387
        %4515 = vst [vmem:[%s552 + $0xb0] sm:$0xff] %v4389
        %4516 = vst [vmem:[%s552 + $0xb8] sm:$0xff] %v4391
        %4517 = vst [vmem:[%s552 + $0xc0] sm:$0xff] %v4395
        %4518 = vst [vmem:[%s552 + $0xc8] sm:$0xff] %v4397
        %4519 = vst [vmem:[%s552 + $0xd0] sm:$0xff] %v4399
        %4520 = vst [vmem:[%s552 + $0xd8] sm:$0xff] %v4401
        %4521 = vst [vmem:[%s552 + $0xe0] sm:$0xff] %v4405
        %4522 = vst [vmem:[%s552 + $0xe8] sm:$0xff] %v4407
        %4523 = vst [vmem:[%s552 + $0xf0] sm:$0xff] %v4409
        %4524 = vst [vmem:[%s552 + $0xf8] sm:$0xff] %v4411
        %4525 = vst [vmem:[%s552 + $0x100] sm:$0xff] %v4415
        %4526 = vst [vmem:[%s552 + $0x108] sm:$0xff] %v4417
        %4527 = vst [vmem:[%s552 + $0x110] sm:$0xff] %v4419
        %4528 = vst [vmem:[%s552 + $0x118] sm:$0xff] %v4421
        %4529 = vst [vmem:[%s552 + $0x120] sm:$0xff] %v4425
        %4530 = vst [vmem:[%s552 + $0x128] sm:$0xff] %v4427
        %4531 = vst [vmem:[%s552 + $0x130] sm:$0xff] %v4429
        %4532 = vst [vmem:[%s552 + $0x138] sm:$0xff] %v4431
        %4533 = vst [vmem:[%s552 + $0x140] sm:$0xff] %v4435
        %4534 = vst [vmem:[%s552 + $0x148] sm:$0xff] %v4437
        %4535 = vst [vmem:[%s552 + $0x150] sm:$0xff] %v4439
        %4536 = vst [vmem:[%s552 + $0x158] sm:$0xff] %v4441
        %4537 = vst [vmem:[%s552 + $0x160] sm:$0xff] %v4445
        %4538 = vst [vmem:[%s552 + $0x168] sm:$0xff] %v4447
        %4539 = vst [vmem:[%s552 + $0x170] sm:$0xff] %v4449
        %4540 = vst [vmem:[%s552 + $0x178] sm:$0xff] %v4451
        %4541 = vst [vmem:[%s552 + $0x180] sm:$0xff] %v4455
        %4542 = vst [vmem:[%s552 + $0x188] sm:$0xff] %v4457
        %4543 = vst [vmem:[%s552 + $0x190] sm:$0xff] %v4459
        %4544 = vst [vmem:[%s552 + $0x198] sm:$0xff] %v4461
        %4545 = vst [vmem:[%s552 + $0x1a0] sm:$0xff] %v4465
        %4546 = vst [vmem:[%s552 + $0x1a8] sm:$0xff] %v4467
        %4547 = vst [vmem:[%s552 + $0x1b0] sm:$0xff] %v4469
        %4548 = vst [vmem:[%s552 + $0x1b8] sm:$0xff] %v4471
        %4549 = vst [vmem:[%s552 + $0x1c0] sm:$0xff] %v4475
        %4550 = vst [vmem:[%s552 + $0x1c8] sm:$0xff] %v4477
        %4551 = vst [vmem:[%s552 + $0x1d0] sm:$0xff] %v4479
        %4552 = vst [vmem:[%s552 + $0x1d8] sm:$0xff] %v4481
        %4553 = vst [vmem:[%s552 + $0x1e0] sm:$0xff] %v4485
        %4554 = vst [vmem:[%s552 + $0x1e8] sm:$0xff] %v4487
        %4555 = vst [vmem:[%s552 + $0x1f0] sm:$0xff] %v4489
        %4556 = vst [vmem:[%s552 + $0x1f8] sm:$0xff] %v4491
        %s4557 = sand.u32 %s370, 1
        %s4558 = scalar_lea.sflag [#allocation3], %s4557
        %s4559 = sand.u32 %s370, 1
        %s4560 = smul.addr %s4559, 512
        %s4561 = scalar_lea.vmem [#allocation2], %s4560
        // Predicated region
        $region77: #{aspp_forward.3} parent=75 // pred_check
          %p4562 = pneg %p380
        $region78: #{aspp_forward.3} parent=75 // pred_check_branch
          %4564 = sbr.rel (%p4562) target = $region80
        $region79: #{aspp_forward.3} parent=75 // pred_region
          %s4565 = smul.u32 32, %s33
          %s4567 = ssub.s32 8192, 8192
          %4568 = vsyncadd %s4558, %s4567
          %s4569 = smul.addr %s4565, 2
          %s4570 = smul.addr %s32, 64
          %s4571 = sadd.s32 %s4569, %s4570
          %s4572 = smul.addr %s4571, 128
          %s4573 = scalar_lea.hbm %s14, %s4572
          %s4574 = sshll.u32 %s4561, 4
          %s4575 = int_to_ptr.vmem [resolvable:$true] %s4574
          %4580 = dma.vmem_to_hbm [thread:$0]  %s4575, 8192, %s4573, %s4558, 256, 256, 16
        $region80: #{aspp_forward.3} parent=75 // pred_fallthru
          _
      $region76: #{aspp_forward.3} parent=5 // pred_fallthru
        _
      %p4581 = scmp.le.s32.totalorder 2, %s23
      // Predicated region
      $region81: #{aspp_forward.3} parent=5 // pred_check
        %p4582 = pneg %p4581
      $region82: #{aspp_forward.3} parent=5 // pred_check_branch
        %4584 = sbr.rel (%p4582) target = $region84
      $region83: #{aspp_forward.3} parent=5 // pred_region
        %s4585 = ssub.s32 %s23, 2
        // Predicated region
        $region85: #{aspp_forward.3} parent=83 // pred_check
          %p4586 = pneg %p386
        $region86: #{aspp_forward.3} parent=83 // pred_check_branch
          %4588 = sbr.rel (%p4586) target = $region88
        $region87: #{aspp_forward.3} parent=83 // pred_region
          %s4589 = sand.u32 %s371, 1
          %s4590 = scalar_lea.sflag [#allocation3], %s4589
          %s4591 = sand.u32 %s371, 1
          %s4592 = smul.addr %s4591, 512
          %s4593 = scalar_lea.vmem [#allocation2], %s4592
          %4594 = dma.done %s4590, 8192
        $region88: #{aspp_forward.3} parent=83 // pred_fallthru
          _
      $region84: #{aspp_forward.3} parent=5 // pred_fallthru
        _
    $region6: #{aspp_forward.3} parent=1 // loop_footer
      %s27 = sadd.s32 1, %s23
    $region7: #{aspp_forward.3} parent=1 // loop_footer_branch
      %22 = sbr.rel target = $region3
    $region8: #{aspp_forward.3} parent=1 // loop_exit
      _
    %4595 = vsyncpa [#allocation3], 1
    %s4596 = scalar_lea.sflag [#allocation3], 1
    %4597 = vsyncpa %s4596, 1

</llo_original>
